<compile_context>
chip_gen: v7x
topology: tpu7x:2x2x1
jax: 0.10.0
libtpu: 0.0.40
codegen_flags: <defaults>
</compile_context>

<pallas_src>
import functools
import math

import jax
import jax.numpy as jnp
from jax import lax
from jax.experimental import pallas as pl
from jax.experimental.pallas import tpu as pltpu

# ----------------------------- config ---------------------------------------
HIDDEN       = 32
NUM_HEADS    = 4
HEAD_DIM     = HIDDEN // NUM_HEADS
INTERMEDIATE = 64
NUM_LAYERS   = 2
VOCAB        = 128
MAX_POS      = 32
TYPE_VOCAB   = 2
NUM_CLASSES  = 5
PAD_CLASSES  = 128          # lane-dense classifier output (sliced outside)
LN_EPS       = 1e-12
SEQ          = 8
BATCH        = 2

_VMEM = pl.BlockSpec(memory_space=pltpu.MemorySpace.VMEM)


# ----------------------------- fused kernel ---------------------------------
def _encoder_kernel(
    x_ref,       # (B*S, H)   summed embeddings
    bias_ref,    # (B, 1, S)  additive attention-mask bias
    emb_g_ref, emb_b_ref,            # (1, H)
    wqkv_ref, bqkv_ref,              # (L, H, 3H), (L, 1, 3H)
    wo_ref, bo_ref,                  # (L, H, H),  (L, 1, H)
    ln1_g_ref, ln1_b_ref,            # (L, 1, H)
    w1_ref, b1_ref,                  # (L, H, I),  (L, 1, I)
    w2_ref, b2_ref,                  # (L, I, H),  (L, 1, H)
    ln2_g_ref, ln2_b_ref,            # (L, 1, H)
    pool_w_ref, pool_b_ref,          # (H, H), (1, H)
    cls_w_ref, cls_b_ref,            # (H, PAD_CLASSES), (1, PAD_CLASSES)
    logits_ref,                      # (B, PAD_CLASSES)
):
    B, S, H = BATCH, SEQ, HIDDEN
    Hh, Dh = NUM_HEADS, HEAD_DIM
    scale = 1.0 / math.sqrt(Dh)

    def layer_norm(x, g, b):
        mu = jnp.mean(x, axis=-1, keepdims=True)
        xc = x - mu
        var = jnp.mean(xc * xc, axis=-1, keepdims=True)
        return xc * lax.rsqrt(var + LN_EPS) * g + b

    # --- embedding LayerNorm (residual-free) ---
    x2 = layer_norm(x_ref[...], emb_g_ref[...], emb_b_ref[...])       # (B*S, H)
    bias = bias_ref[...]                                              # (B, 1, S)

    # --- encoder layers (static unroll; all weights resident in VMEM) ---
    for l in range(NUM_LAYERS):
        # fused QKV projection: one (B*S, H) @ (H, 3H) matmul
        qkv = jnp.dot(x2, wqkv_ref[l],
                      preferred_element_type=jnp.float32) + bqkv_ref[l]
        wo = wo_ref[l]

        # multi-head attention: static per-head loop, heads split in-kernel
        attn_out = jnp.zeros((B * S, H), jnp.float32)
        for h in range(Hh):
            qh = qkv[:, h * Dh:(h + 1) * Dh].reshape(B, S, Dh)
            kh = qkv[:, H + h * Dh:H + (h + 1) * Dh].reshape(B, S, Dh)
            vh = qkv[:, 2 * H + h * Dh:2 * H + (h + 1) * Dh].reshape(B, S, Dh)

            s = jnp.einsum("bqd,bkd->bqk", qh, kh,
                           preferred_element_type=jnp.float32) * scale
            s = s + bias                                            # (B,1,S) bcast
            m = jnp.max(s, axis=-1, keepdims=True)
            p = jnp.exp(s - m)
            p = p * pl.reciprocal(jnp.sum(p, axis=-1, keepdims=True), approx=True)
            ctx = jnp.einsum("bqk,bkd->bqd", p, vh,
                             preferred_element_type=jnp.float32)    # (B,S,Dh)

            # per-head slice of the output projection, accumulated
            # (equivalent to concat(heads) @ wo)
            attn_out = attn_out + jnp.dot(
                ctx.reshape(B * S, Dh), wo[h * Dh:(h + 1) * Dh, :],
                preferred_element_type=jnp.float32)

        attn_out = attn_out + bo_ref[l]
        x2 = layer_norm(attn_out + x2, ln1_g_ref[l], ln1_b_ref[l])

        # feed-forward
        hmid = jnp.dot(x2, w1_ref[l],
                       preferred_element_type=jnp.float32) + b1_ref[l]
        # TODO(synk): HF BERT uses exact erf-GELU; tanh approximation used here.
        c = math.sqrt(2.0 / math.pi)
        hmid = 0.5 * hmid * (1.0 + jnp.tanh(c * (hmid + 0.044715 * hmid * hmid * hmid)))
        ffn = jnp.dot(hmid, w2_ref[l],
                      preferred_element_type=jnp.float32) + b2_ref[l]
        x2 = layer_norm(ffn + x2, ln2_g_ref[l], ln2_b_ref[l])

    # --- pooler: tanh(W . h_CLS + b); CLS = token 0 of each sequence ---
    # Row-gather via a tiny select matmul (MXU-friendly, no sublane gather).
    row_ids = lax.broadcasted_iota(jnp.int32, (B, B * S), 0)
    col_ids = lax.broadcasted_iota(jnp.int32, (B, B * S), 1)
    sel = (col_ids == row_ids * S).astype(jnp.float32)                # (B, B*S)
    cls_tok = jnp.dot(sel, x2, preferred_element_type=jnp.float32)    # (B, H)

    pooled = jnp.tanh(jnp.dot(cls_tok, pool_w_ref[...],
                              preferred_element_type=jnp.float32) + pool_b_ref[...])

    # dropout(p=0.1): identity in eval mode
    # --- classifier head: lane-dense (B, 128) store, sliced outside ---
    logits_ref[...] = jnp.dot(pooled, cls_w_ref[...],
                              preferred_element_type=jnp.float32) + cls_b_ref[...]


# ----------------------------- parameters -----------------------------------
def init_params(key):
    def dense(k, shape, scale=0.02):
        return scale * jax.random.normal(k, shape, dtype=jnp.float32)

    keys = iter(jax.random.split(key, 64))
    L, H, I = NUM_LAYERS, HIDDEN, INTERMEDIATE

    cls_w = jnp.zeros((H, PAD_CLASSES), jnp.float32)
    cls_w = cls_w.at[:, :NUM_CLASSES].set(dense(next(keys), (H, NUM_CLASSES)))

    p = {
        "word_emb": dense(next(keys), (VOCAB, H)),
        "pos_emb":  dense(next(keys), (MAX_POS, H)),
        "type_emb": dense(next(keys), (TYPE_VOCAB, H)),
        "emb_ln_g": jnp.ones((1, H), jnp.float32),
        "emb_ln_b": jnp.zeros((1, H), jnp.float32),
        # stacked per-layer weights (fused QKV)
        "wqkv": dense(next(keys), (L, H, 3 * H)),
        "bqkv": jnp.zeros((L, 1, 3 * H), jnp.float32),
        "wo":   dense(next(keys), (L, H, H)),
        "bo":   jnp.zeros((L, 1, H), jnp.float32),
        "ln1_g": jnp.ones((L, 1, H), jnp.float32),
        "ln1_b": jnp.zeros((L, 1, H), jnp.float32),
        "w1":   dense(next(keys), (L, H, I)),
        "b1":   jnp.zeros((L, 1, I), jnp.float32),
        "w2":   dense(next(keys), (L, I, H)),
        "b2":   jnp.zeros((L, 1, H), jnp.float32),
        "ln2_g": jnp.ones((L, 1, H), jnp.float32),
        "ln2_b": jnp.zeros((L, 1, H), jnp.float32),
        "pool_w": dense(next(keys), (H, H)),
        "pool_b": jnp.zeros((1, H), jnp.float32),
        "cls_w":  cls_w,                                   # zero-padded to 128 cols
        "cls_b":  jnp.zeros((1, PAD_CLASSES), jnp.float32),
    }
    return p


# ----------------------------- forward --------------------------------------
@jax.jit
def resume_classifier_forward(params, input_ids, attention_mask):
    B, S = input_ids.shape
    H = HIDDEN

    # embeddings (data-dependent gather -> XLA glue outside the kernel)
    x = (params["word_emb"][input_ids]
         + params["pos_emb"][jnp.arange(S)][None, :, :]
         + params["type_emb"][0][None, None, :]).reshape(B * S, H)

    # additive attention-mask bias, (B, 1, S) -- broadcast over heads in-kernel
    bias = ((1.0 - attention_mask.astype(jnp.float32)) * -10000.0)[:, None, :]

    logits_pad = pl.pallas_call(
        _encoder_kernel,
        out_shape=jax.ShapeDtypeStruct((B, PAD_CLASSES), jnp.float32),
        in_specs=[_VMEM] * 20,
        out_specs=_VMEM,
    )(
        x, bias,
        params["emb_ln_g"], params["emb_ln_b"],
        params["wqkv"], params["bqkv"],
        params["wo"], params["bo"],
        params["ln1_g"], params["ln1_b"],
        params["w1"], params["b1"],
        params["w2"], params["b2"],
        params["ln2_g"], params["ln2_b"],
        params["pool_w"], params["pool_b"],
        params["cls_w"], params["cls_b"],
    )
    return logits_pad[:, :NUM_CLASSES]


# ----------------------------- main ------------------------------------------
if __name__ == "__main__":
    key = jax.random.PRNGKey(0)
    k_param, k_ids = jax.random.split(key)

    params = init_params(k_param)
    input_ids = jax.random.randint(k_ids, (BATCH, SEQ), 0, VOCAB, dtype=jnp.int32)
    attention_mask = jnp.array(
        [[1, 1, 1, 1, 1, 1, 1, 1],
         [1, 1, 1, 1, 1, 1, 0, 0]], dtype=jnp.int32)

    logits = resume_classifier_forward(params, input_ids, attention_mask)
    jax.block_until_ready(logits)
    assert logits.shape == (BATCH, NUM_CLASSES)
    assert bool(jnp.all(jnp.isfinite(logits)))
    print("KERNEL_OK")
</pallas_src>

<mosaic_0001>
module attributes {stable_mosaic.version = 11 : i64} {
  func.func @_encoder_kernel(%arg0: memref<16x32xf32, #tpu.memory_space<vmem>>, %arg1: memref<2x1x8xf32, #tpu.memory_space<vmem>>, %arg2: memref<1x32xf32, #tpu.memory_space<vmem>>, %arg3: memref<1x32xf32, #tpu.memory_space<vmem>>, %arg4: memref<2x32x96xf32, #tpu.memory_space<vmem>>, %arg5: memref<2x1x96xf32, #tpu.memory_space<vmem>>, %arg6: memref<2x32x32xf32, #tpu.memory_space<vmem>>, %arg7: memref<2x1x32xf32, #tpu.memory_space<vmem>>, %arg8: memref<2x1x32xf32, #tpu.memory_space<vmem>>, %arg9: memref<2x1x32xf32, #tpu.memory_space<vmem>>, %arg10: memref<2x32x64xf32, #tpu.memory_space<vmem>>, %arg11: memref<2x1x64xf32, #tpu.memory_space<vmem>>, %arg12: memref<2x64x32xf32, #tpu.memory_space<vmem>>, %arg13: memref<2x1x32xf32, #tpu.memory_space<vmem>>, %arg14: memref<2x1x32xf32, #tpu.memory_space<vmem>>, %arg15: memref<2x1x32xf32, #tpu.memory_space<vmem>>, %arg16: memref<32x32xf32, #tpu.memory_space<vmem>>, %arg17: memref<1x32xf32, #tpu.memory_space<vmem>>, %arg18: memref<32x128xf32, #tpu.memory_space<vmem>>, %arg19: memref<1x128xf32, #tpu.memory_space<vmem>>, %arg20: memref<2x128xf32, #tpu.memory_space<vmem>>) attributes {dimension_semantics = [], scalar_prefetch = 0 : i64, scratch_operands = 0 : i64, tpu.core_type = #tpu.core_type<tc>} {
    %c0 = arith.constant 0 : index
    %c0_0 = arith.constant 0 : index
    %0 = vector.load %arg0[%c0, %c0_0] : memref<16x32xf32, #tpu.memory_space<vmem>>, vector<16x32xf32>
    %c0_1 = arith.constant 0 : index
    %c0_2 = arith.constant 0 : index
    %1 = vector.load %arg2[%c0_1, %c0_2] : memref<1x32xf32, #tpu.memory_space<vmem>>, vector<1x32xf32>
    %c0_3 = arith.constant 0 : index
    %c0_4 = arith.constant 0 : index
    %2 = vector.load %arg3[%c0_3, %c0_4] : memref<1x32xf32, #tpu.memory_space<vmem>>, vector<1x32xf32>
    %cst = arith.constant dense<0.000000e+00> : vector<16xf32>
    %3 = vector.multi_reduction <add>, %0, %cst [1] : vector<16x32xf32> to vector<16xf32>
    %4 = vector.shape_cast %3 : vector<16xf32> to vector<16x1xf32>
    %cst_5 = arith.constant 3.200000e+01 : f32
    %5 = vector.broadcast %cst_5 : f32 to vector<16x1xf32>
    %6 = arith.divf %4, %5 : vector<16x1xf32>
    %7 = vector.broadcast %6 : vector<16x1xf32> to vector<16x32xf32>
    %8 = arith.subf %0, %7 : vector<16x32xf32>
    %9 = arith.mulf %8, %8 : vector<16x32xf32>
    %cst_6 = arith.constant dense<0.000000e+00> : vector<16xf32>
    %10 = vector.multi_reduction <add>, %9, %cst_6 [1] : vector<16x32xf32> to vector<16xf32>
    %11 = vector.shape_cast %10 : vector<16xf32> to vector<16x1xf32>
    %cst_7 = arith.constant 3.200000e+01 : f32
    %12 = vector.broadcast %cst_7 : f32 to vector<16x1xf32>
    %13 = arith.divf %11, %12 : vector<16x1xf32>
    %cst_8 = arith.constant 9.99999996E-13 : f32
    %14 = vector.broadcast %cst_8 : f32 to vector<16x1xf32>
    %15 = arith.addf %13, %14 : vector<16x1xf32>
    %16 = math.rsqrt %15 : vector<16x1xf32>
    %17 = vector.broadcast %16 : vector<16x1xf32> to vector<16x32xf32>
    %18 = arith.mulf %8, %17 : vector<16x32xf32>
    %19 = vector.broadcast %1 : vector<1x32xf32> to vector<16x32xf32>
    %20 = arith.mulf %18, %19 : vector<16x32xf32>
    %21 = vector.broadcast %2 : vector<1x32xf32> to vector<16x32xf32>
    %22 = arith.addf %20, %21 : vector<16x32xf32>
    %c0_9 = arith.constant 0 : index
    %c0_10 = arith.constant 0 : index
    %c0_11 = arith.constant 0 : index
    %23 = vector.load %arg1[%c0_9, %c0_10, %c0_11] : memref<2x1x8xf32, #tpu.memory_space<vmem>>, vector<2x1x8xf32>
    %c0_12 = arith.constant 0 : index
    %c0_13 = arith.constant 0 : index
    %c0_14 = arith.constant 0 : index
    %24 = vector.load %arg4[%c0_12, %c0_13, %c0_14] : memref<2x32x96xf32, #tpu.memory_space<vmem>>, vector<1x32x96xf32>
    %25 = vector.shape_cast %24 : vector<1x32x96xf32> to vector<32x96xf32>
    %cst_15 = arith.constant dense<0.000000e+00> : vector<16x96xf32>
    %26 = tpu.matmul %22, %25, %cst_15 {dimension_numbers = #tpu.dot_dimension_numbers<[1], [0], [0], [1], [0, 0, 1, 1], [], []>} : vector<16x32xf32>, vector<32x96xf32>, vector<16x96xf32> -> vector<16x96xf32>
    %c0_16 = arith.constant 0 : index
    %c0_17 = arith.constant 0 : index
    %c0_18 = arith.constant 0 : index
    %27 = vector.load %arg5[%c0_16, %c0_17, %c0_18] : memref<2x1x96xf32, #tpu.memory_space<vmem>>, vector<1x1x96xf32>
    %28 = vector.shape_cast %27 : vector<1x1x96xf32> to vector<1x96xf32>
    %29 = vector.broadcast %28 : vector<1x96xf32> to vector<16x96xf32>
    %30 = arith.addf %26, %29 : vector<16x96xf32>
    %c0_19 = arith.constant 0 : index
    %c0_20 = arith.constant 0 : index
    %c0_21 = arith.constant 0 : index
    %31 = vector.load %arg6[%c0_19, %c0_20, %c0_21] : memref<2x32x32xf32, #tpu.memory_space<vmem>>, vector<1x32x32xf32>
    %32 = vector.shape_cast %31 : vector<1x32x32xf32> to vector<32x32xf32>
    %cst_22 = arith.constant 0.000000e+00 : f32
    %33 = vector.broadcast %cst_22 : f32 to vector<16x32xf32>
    %34 = vector.extract_strided_slice %30 {offsets = [0, 0], sizes = [16, 8], strides = [1, 1]} : vector<16x96xf32> to vector<16x8xf32>
    %35 = vector.shape_cast %34 : vector<16x8xf32> to vector<2x8x8xf32>
    %36 = vector.extract_strided_slice %30 {offsets = [0, 32], sizes = [16, 8], strides = [1, 1]} : vector<16x96xf32> to vector<16x8xf32>
    %37 = vector.shape_cast %36 : vector<16x8xf32> to vector<2x8x8xf32>
    %38 = vector.extract_strided_slice %30 {offsets = [0, 64], sizes = [16, 8], strides = [1, 1]} : vector<16x96xf32> to vector<16x8xf32>
    %39 = vector.shape_cast %38 : vector<16x8xf32> to vector<2x8x8xf32>
    "tpu.trace_start"() <{level = 10 : i32, message = "bqd,bkd->bqk"}> : () -> ()
    %cst_23 = arith.constant dense<0.000000e+00> : vector<2x8x8xf32>
    %40 = tpu.matmul %35, %37, %cst_23 {dimension_numbers = #tpu.dot_dimension_numbers<[2], [2], [1], [1], [0, 0, 0, 1, 1, 1], [0], [0]>} : vector<2x8x8xf32>, vector<2x8x8xf32>, vector<2x8x8xf32> -> vector<2x8x8xf32>
    "tpu.trace_stop"() : () -> ()
    %cst_24 = arith.constant 0.353553385 : f32
    %41 = vector.broadcast %cst_24 : f32 to vector<2x8x8xf32>
    %42 = arith.mulf %40, %41 : vector<2x8x8xf32>
    %43 = vector.broadcast %23 : vector<2x1x8xf32> to vector<2x8x8xf32>
    %44 = arith.addf %42, %43 : vector<2x8x8xf32>
    %cst_25 = arith.constant dense<0xFF800000> : vector<2x8xf32>
    %45 = vector.multi_reduction <maximumf>, %44, %cst_25 [2] : vector<2x8x8xf32> to vector<2x8xf32>
    %46 = vector.shape_cast %45 : vector<2x8xf32> to vector<2x8x1xf32>
    %47 = vector.broadcast %46 : vector<2x8x1xf32> to vector<2x8x8xf32>
    %48 = arith.subf %44, %47 : vector<2x8x8xf32>
    %49 = math.exp %48 : vector<2x8x8xf32>
    %cst_26 = arith.constant dense<0.000000e+00> : vector<2x8xf32>
    %50 = vector.multi_reduction <add>, %49, %cst_26 [2] : vector<2x8x8xf32> to vector<2x8xf32>
    %51 = vector.shape_cast %50 : vector<2x8xf32> to vector<2x8x1xf32>
    %52 = tpu.reciprocal %51 {approx = true} : vector<2x8x1xf32> -> vector<2x8x1xf32>
    %53 = vector.broadcast %52 : vector<2x8x1xf32> to vector<2x8x8xf32>
    %54 = arith.mulf %49, %53 : vector<2x8x8xf32>
    "tpu.trace_start"() <{level = 10 : i32, message = "bqk,bkd->bqd"}> : () -> ()
    %cst_27 = arith.constant dense<0.000000e+00> : vector<2x8x8xf32>
    %55 = tpu.matmul %54, %39, %cst_27 {dimension_numbers = #tpu.dot_dimension_numbers<[2], [1], [1], [2], [0, 0, 0, 1, 1, 2], [0], [0]>} : vector<2x8x8xf32>, vector<2x8x8xf32>, vector<2x8x8xf32> -> vector<2x8x8xf32>
    "tpu.trace_stop"() : () -> ()
    %56 = vector.shape_cast %55 : vector<2x8x8xf32> to vector<16x8xf32>
    %57 = vector.extract_strided_slice %32 {offsets = [0, 0], sizes = [8, 32], strides = [1, 1]} : vector<32x32xf32> to vector<8x32xf32>
    %cst_28 = arith.constant dense<0.000000e+00> : vector<16x32xf32>
    %58 = tpu.matmul %56, %57, %cst_28 {dimension_numbers = #tpu.dot_dimension_numbers<[1], [0], [0], [1], [0, 0, 1, 1], [], []>} : vector<16x8xf32>, vector<8x32xf32>, vector<16x32xf32> -> vector<16x32xf32>
    %59 = arith.addf %33, %58 : vector<16x32xf32>
    %60 = vector.extract_strided_slice %30 {offsets = [0, 8], sizes = [16, 8], strides = [1, 1]} : vector<16x96xf32> to vector<16x8xf32>
    %61 = vector.shape_cast %60 : vector<16x8xf32> to vector<2x8x8xf32>
    %62 = vector.extract_strided_slice %30 {offsets = [0, 40], sizes = [16, 8], strides = [1, 1]} : vector<16x96xf32> to vector<16x8xf32>
    %63 = vector.shape_cast %62 : vector<16x8xf32> to vector<2x8x8xf32>
    %64 = vector.extract_strided_slice %30 {offsets = [0, 72], sizes = [16, 8], strides = [1, 1]} : vector<16x96xf32> to vector<16x8xf32>
    %65 = vector.shape_cast %64 : vector<16x8xf32> to vector<2x8x8xf32>
    "tpu.trace_start"() <{level = 10 : i32, message = "bqd,bkd->bqk"}> : () -> ()
    %cst_29 = arith.constant dense<0.000000e+00> : vector<2x8x8xf32>
    %66 = tpu.matmul %61, %63, %cst_29 {dimension_numbers = #tpu.dot_dimension_numbers<[2], [2], [1], [1], [0, 0, 0, 1, 1, 1], [0], [0]>} : vector<2x8x8xf32>, vector<2x8x8xf32>, vector<2x8x8xf32> -> vector<2x8x8xf32>
    "tpu.trace_stop"() : () -> ()
    %cst_30 = arith.constant 0.353553385 : f32
    %67 = vector.broadcast %cst_30 : f32 to vector<2x8x8xf32>
    %68 = arith.mulf %66, %67 : vector<2x8x8xf32>
    %69 = vector.broadcast %23 : vector<2x1x8xf32> to vector<2x8x8xf32>
    %70 = arith.addf %68, %69 : vector<2x8x8xf32>
    %cst_31 = arith.constant dense<0xFF800000> : vector<2x8xf32>
    %71 = vector.multi_reduction <maximumf>, %70, %cst_31 [2] : vector<2x8x8xf32> to vector<2x8xf32>
    %72 = vector.shape_cast %71 : vector<2x8xf32> to vector<2x8x1xf32>
    %73 = vector.broadcast %72 : vector<2x8x1xf32> to vector<2x8x8xf32>
    %74 = arith.subf %70, %73 : vector<2x8x8xf32>
    %75 = math.exp %74 : vector<2x8x8xf32>
    %cst_32 = arith.constant dense<0.000000e+00> : vector<2x8xf32>
    %76 = vector.multi_reduction <add>, %75, %cst_32 [2] : vector<2x8x8xf32> to vector<2x8xf32>
    %77 = vector.shape_cast %76 : vector<2x8xf32> to vector<2x8x1xf32>
    %78 = tpu.reciprocal %77 {approx = true} : vector<2x8x1xf32> -> vector<2x8x1xf32>
    %79 = vector.broadcast %78 : vector<2x8x1xf32> to vector<2x8x8xf32>
    %80 = arith.mulf %75, %79 : vector<2x8x8xf32>
    "tpu.trace_start"() <{level = 10 : i32, message = "bqk,bkd->bqd"}> : () -> ()
    %cst_33 = arith.constant dense<0.000000e+00> : vector<2x8x8xf32>
    %81 = tpu.matmul %80, %65, %cst_33 {dimension_numbers = #tpu.dot_dimension_numbers<[2], [1], [1], [2], [0, 0, 0, 1, 1, 2], [0], [0]>} : vector<2x8x8xf32>, vector<2x8x8xf32>, vector<2x8x8xf32> -> vector<2x8x8xf32>
    "tpu.trace_stop"() : () -> ()
    %82 = vector.shape_cast %81 : vector<2x8x8xf32> to vector<16x8xf32>
    %83 = vector.extract_strided_slice %32 {offsets = [8, 0], sizes = [8, 32], strides = [1, 1]} : vector<32x32xf32> to vector<8x32xf32>
    %cst_34 = arith.constant dense<0.000000e+00> : vector<16x32xf32>
    %84 = tpu.matmul %82, %83, %cst_34 {dimension_numbers = #tpu.dot_dimension_numbers<[1], [0], [0], [1], [0, 0, 1, 1], [], []>} : vector<16x8xf32>, vector<8x32xf32>, vector<16x32xf32> -> vector<16x32xf32>
    %85 = arith.addf %59, %84 : vector<16x32xf32>
    %86 = vector.extract_strided_slice %30 {offsets = [0, 16], sizes = [16, 8], strides = [1, 1]} : vector<16x96xf32> to vector<16x8xf32>
    %87 = vector.shape_cast %86 : vector<16x8xf32> to vector<2x8x8xf32>
    %88 = vector.extract_strided_slice %30 {offsets = [0, 48], sizes = [16, 8], strides = [1, 1]} : vector<16x96xf32> to vector<16x8xf32>
    %89 = vector.shape_cast %88 : vector<16x8xf32> to vector<2x8x8xf32>
    %90 = vector.extract_strided_slice %30 {offsets = [0, 80], sizes = [16, 8], strides = [1, 1]} : vector<16x96xf32> to vector<16x8xf32>
    %91 = vector.shape_cast %90 : vector<16x8xf32> to vector<2x8x8xf32>
    "tpu.trace_start"() <{level = 10 : i32, message = "bqd,bkd->bqk"}> : () -> ()
    %cst_35 = arith.constant dense<0.000000e+00> : vector<2x8x8xf32>
    %92 = tpu.matmul %87, %89, %cst_35 {dimension_numbers = #tpu.dot_dimension_numbers<[2], [2], [1], [1], [0, 0, 0, 1, 1, 1], [0], [0]>} : vector<2x8x8xf32>, vector<2x8x8xf32>, vector<2x8x8xf32> -> vector<2x8x8xf32>
    "tpu.trace_stop"() : () -> ()
    %cst_36 = arith.constant 0.353553385 : f32
    %93 = vector.broadcast %cst_36 : f32 to vector<2x8x8xf32>
    %94 = arith.mulf %92, %93 : vector<2x8x8xf32>
    %95 = vector.broadcast %23 : vector<2x1x8xf32> to vector<2x8x8xf32>
    %96 = arith.addf %94, %95 : vector<2x8x8xf32>
    %cst_37 = arith.constant dense<0xFF800000> : vector<2x8xf32>
    %97 = vector.multi_reduction <maximumf>, %96, %cst_37 [2] : vector<2x8x8xf32> to vector<2x8xf32>
    %98 = vector.shape_cast %97 : vector<2x8xf32> to vector<2x8x1xf32>
    %99 = vector.broadcast %98 : vector<2x8x1xf32> to vector<2x8x8xf32>
    %100 = arith.subf %96, %99 : vector<2x8x8xf32>
    %101 = math.exp %100 : vector<2x8x8xf32>
    %cst_38 = arith.constant dense<0.000000e+00> : vector<2x8xf32>
    %102 = vector.multi_reduction <add>, %101, %cst_38 [2] : vector<2x8x8xf32> to vector<2x8xf32>
    %103 = vector.shape_cast %102 : vector<2x8xf32> to vector<2x8x1xf32>
    %104 = tpu.reciprocal %103 {approx = true} : vector<2x8x1xf32> -> vector<2x8x1xf32>
    %105 = vector.broadcast %104 : vector<2x8x1xf32> to vector<2x8x8xf32>
    %106 = arith.mulf %101, %105 : vector<2x8x8xf32>
    "tpu.trace_start"() <{level = 10 : i32, message = "bqk,bkd->bqd"}> : () -> ()
    %cst_39 = arith.constant dense<0.000000e+00> : vector<2x8x8xf32>
    %107 = tpu.matmul %106, %91, %cst_39 {dimension_numbers = #tpu.dot_dimension_numbers<[2], [1], [1], [2], [0, 0, 0, 1, 1, 2], [0], [0]>} : vector<2x8x8xf32>, vector<2x8x8xf32>, vector<2x8x8xf32> -> vector<2x8x8xf32>
    "tpu.trace_stop"() : () -> ()
    %108 = vector.shape_cast %107 : vector<2x8x8xf32> to vector<16x8xf32>
    %109 = vector.extract_strided_slice %32 {offsets = [16, 0], sizes = [8, 32], strides = [1, 1]} : vector<32x32xf32> to vector<8x32xf32>
    %cst_40 = arith.constant dense<0.000000e+00> : vector<16x32xf32>
    %110 = tpu.matmul %108, %109, %cst_40 {dimension_numbers = #tpu.dot_dimension_numbers<[1], [0], [0], [1], [0, 0, 1, 1], [], []>} : vector<16x8xf32>, vector<8x32xf32>, vector<16x32xf32> -> vector<16x32xf32>
    %111 = arith.addf %85, %110 : vector<16x32xf32>
    %112 = vector.extract_strided_slice %30 {offsets = [0, 24], sizes = [16, 8], strides = [1, 1]} : vector<16x96xf32> to vector<16x8xf32>
    %113 = vector.shape_cast %112 : vector<16x8xf32> to vector<2x8x8xf32>
    %114 = vector.extract_strided_slice %30 {offsets = [0, 56], sizes = [16, 8], strides = [1, 1]} : vector<16x96xf32> to vector<16x8xf32>
    %115 = vector.shape_cast %114 : vector<16x8xf32> to vector<2x8x8xf32>
    %116 = vector.extract_strided_slice %30 {offsets = [0, 88], sizes = [16, 8], strides = [1, 1]} : vector<16x96xf32> to vector<16x8xf32>
    %117 = vector.shape_cast %116 : vector<16x8xf32> to vector<2x8x8xf32>
    "tpu.trace_start"() <{level = 10 : i32, message = "bqd,bkd->bqk"}> : () -> ()
    %cst_41 = arith.constant dense<0.000000e+00> : vector<2x8x8xf32>
    %118 = tpu.matmul %113, %115, %cst_41 {dimension_numbers = #tpu.dot_dimension_numbers<[2], [2], [1], [1], [0, 0, 0, 1, 1, 1], [0], [0]>} : vector<2x8x8xf32>, vector<2x8x8xf32>, vector<2x8x8xf32> -> vector<2x8x8xf32>
    "tpu.trace_stop"() : () -> ()
    %cst_42 = arith.constant 0.353553385 : f32
    %119 = vector.broadcast %cst_42 : f32 to vector<2x8x8xf32>
    %120 = arith.mulf %118, %119 : vector<2x8x8xf32>
    %121 = vector.broadcast %23 : vector<2x1x8xf32> to vector<2x8x8xf32>
    %122 = arith.addf %120, %121 : vector<2x8x8xf32>
    %cst_43 = arith.constant dense<0xFF800000> : vector<2x8xf32>
    %123 = vector.multi_reduction <maximumf>, %122, %cst_43 [2] : vector<2x8x8xf32> to vector<2x8xf32>
    %124 = vector.shape_cast %123 : vector<2x8xf32> to vector<2x8x1xf32>
    %125 = vector.broadcast %124 : vector<2x8x1xf32> to vector<2x8x8xf32>
    %126 = arith.subf %122, %125 : vector<2x8x8xf32>
    %127 = math.exp %126 : vector<2x8x8xf32>
    %cst_44 = arith.constant dense<0.000000e+00> : vector<2x8xf32>
    %128 = vector.multi_reduction <add>, %127, %cst_44 [2] : vector<2x8x8xf32> to vector<2x8xf32>
    %129 = vector.shape_cast %128 : vector<2x8xf32> to vector<2x8x1xf32>
    %130 = tpu.reciprocal %129 {approx = true} : vector<2x8x1xf32> -> vector<2x8x1xf32>
    %131 = vector.broadcast %130 : vector<2x8x1xf32> to vector<2x8x8xf32>
    %132 = arith.mulf %127, %131 : vector<2x8x8xf32>
    "tpu.trace_start"() <{level = 10 : i32, message = "bqk,bkd->bqd"}> : () -> ()
    %cst_45 = arith.constant dense<0.000000e+00> : vector<2x8x8xf32>
    %133 = tpu.matmul %132, %117, %cst_45 {dimension_numbers = #tpu.dot_dimension_numbers<[2], [1], [1], [2], [0, 0, 0, 1, 1, 2], [0], [0]>} : vector<2x8x8xf32>, vector<2x8x8xf32>, vector<2x8x8xf32> -> vector<2x8x8xf32>
    "tpu.trace_stop"() : () -> ()
    %134 = vector.shape_cast %133 : vector<2x8x8xf32> to vector<16x8xf32>
    %135 = vector.extract_strided_slice %32 {offsets = [24, 0], sizes = [8, 32], strides = [1, 1]} : vector<32x32xf32> to vector<8x32xf32>
    %cst_46 = arith.constant dense<0.000000e+00> : vector<16x32xf32>
    %136 = tpu.matmul %134, %135, %cst_46 {dimension_numbers = #tpu.dot_dimension_numbers<[1], [0], [0], [1], [0, 0, 1, 1], [], []>} : vector<16x8xf32>, vector<8x32xf32>, vector<16x32xf32> -> vector<16x32xf32>
    %137 = arith.addf %111, %136 : vector<16x32xf32>
    %c0_47 = arith.constant 0 : index
    %c0_48 = arith.constant 0 : index
    %c0_49 = arith.constant 0 : index
    %138 = vector.load %arg7[%c0_47, %c0_48, %c0_49] : memref<2x1x32xf32, #tpu.memory_space<vmem>>, vector<1x1x32xf32>
    %139 = vector.shape_cast %138 : vector<1x1x32xf32> to vector<1x32xf32>
    %140 = vector.broadcast %139 : vector<1x32xf32> to vector<16x32xf32>
    %141 = arith.addf %137, %140 : vector<16x32xf32>
    %142 = arith.addf %141, %22 : vector<16x32xf32>
    %c0_50 = arith.constant 0 : index
    %c0_51 = arith.constant 0 : index
    %c0_52 = arith.constant 0 : index
    %143 = vector.load %arg8[%c0_50, %c0_51, %c0_52] : memref<2x1x32xf32, #tpu.memory_space<vmem>>, vector<1x1x32xf32>
    %144 = vector.shape_cast %143 : vector<1x1x32xf32> to vector<1x32xf32>
    %c0_53 = arith.constant 0 : index
    %c0_54 = arith.constant 0 : index
    %c0_55 = arith.constant 0 : index
    %145 = vector.load %arg9[%c0_53, %c0_54, %c0_55] : memref<2x1x32xf32, #tpu.memory_space<vmem>>, vector<1x1x32xf32>
    %146 = vector.shape_cast %145 : vector<1x1x32xf32> to vector<1x32xf32>
    %cst_56 = arith.constant dense<0.000000e+00> : vector<16xf32>
    %147 = vector.multi_reduction <add>, %142, %cst_56 [1] : vector<16x32xf32> to vector<16xf32>
    %148 = vector.shape_cast %147 : vector<16xf32> to vector<16x1xf32>
    %cst_57 = arith.constant 3.200000e+01 : f32
    %149 = vector.broadcast %cst_57 : f32 to vector<16x1xf32>
    %150 = arith.divf %148, %149 : vector<16x1xf32>
    %151 = vector.broadcast %150 : vector<16x1xf32> to vector<16x32xf32>
    %152 = arith.subf %142, %151 : vector<16x32xf32>
    %153 = arith.mulf %152, %152 : vector<16x32xf32>
    %cst_58 = arith.constant dense<0.000000e+00> : vector<16xf32>
    %154 = vector.multi_reduction <add>, %153, %cst_58 [1] : vector<16x32xf32> to vector<16xf32>
    %155 = vector.shape_cast %154 : vector<16xf32> to vector<16x1xf32>
    %cst_59 = arith.constant 3.200000e+01 : f32
    %156 = vector.broadcast %cst_59 : f32 to vector<16x1xf32>
    %157 = arith.divf %155, %156 : vector<16x1xf32>
    %cst_60 = arith.constant 9.99999996E-13 : f32
    %158 = vector.broadcast %cst_60 : f32 to vector<16x1xf32>
    %159 = arith.addf %157, %158 : vector<16x1xf32>
    %160 = math.rsqrt %159 : vector<16x1xf32>
    %161 = vector.broadcast %160 : vector<16x1xf32> to vector<16x32xf32>
    %162 = arith.mulf %152, %161 : vector<16x32xf32>
    %163 = vector.broadcast %144 : vector<1x32xf32> to vector<16x32xf32>
    %164 = arith.mulf %162, %163 : vector<16x32xf32>
    %165 = vector.broadcast %146 : vector<1x32xf32> to vector<16x32xf32>
    %166 = arith.addf %164, %165 : vector<16x32xf32>
    %c0_61 = arith.constant 0 : index
    %c0_62 = arith.constant 0 : index
    %c0_63 = arith.constant 0 : index
    %167 = vector.load %arg10[%c0_61, %c0_62, %c0_63] : memref<2x32x64xf32, #tpu.memory_space<vmem>>, vector<1x32x64xf32>
    %168 = vector.shape_cast %167 : vector<1x32x64xf32> to vector<32x64xf32>
    %cst_64 = arith.constant dense<0.000000e+00> : vector<16x64xf32>
    %169 = tpu.matmul %166, %168, %cst_64 {dimension_numbers = #tpu.dot_dimension_numbers<[1], [0], [0], [1], [0, 0, 1, 1], [], []>} : vector<16x32xf32>, vector<32x64xf32>, vector<16x64xf32> -> vector<16x64xf32>
    %c0_65 = arith.constant 0 : index
    %c0_66 = arith.constant 0 : index
    %c0_67 = arith.constant 0 : index
    %170 = vector.load %arg11[%c0_65, %c0_66, %c0_67] : memref<2x1x64xf32, #tpu.memory_space<vmem>>, vector<1x1x64xf32>
    %171 = vector.shape_cast %170 : vector<1x1x64xf32> to vector<1x64xf32>
    %172 = vector.broadcast %171 : vector<1x64xf32> to vector<16x64xf32>
    %173 = arith.addf %169, %172 : vector<16x64xf32>
    %cst_68 = arith.constant 5.000000e-01 : f32
    %174 = vector.broadcast %cst_68 : f32 to vector<16x64xf32>
    %175 = arith.mulf %174, %173 : vector<16x64xf32>
    %cst_69 = arith.constant 4.471500e-02 : f32
    %176 = vector.broadcast %cst_69 : f32 to vector<16x64xf32>
    %177 = arith.mulf %176, %173 : vector<16x64xf32>
    %178 = arith.mulf %177, %173 : vector<16x64xf32>
    %179 = arith.mulf %178, %173 : vector<16x64xf32>
    %180 = arith.addf %173, %179 : vector<16x64xf32>
    %cst_70 = arith.constant 0.797884583 : f32
    %181 = vector.broadcast %cst_70 : f32 to vector<16x64xf32>
    %182 = arith.mulf %181, %180 : vector<16x64xf32>
    %183 = math.tanh %182 : vector<16x64xf32>
    %cst_71 = arith.constant 1.000000e+00 : f32
    %184 = vector.broadcast %cst_71 : f32 to vector<16x64xf32>
    %185 = arith.addf %184, %183 : vector<16x64xf32>
    %186 = arith.mulf %175, %185 : vector<16x64xf32>
    %c0_72 = arith.constant 0 : index
    %c0_73 = arith.constant 0 : index
    %c0_74 = arith.constant 0 : index
    %187 = vector.load %arg12[%c0_72, %c0_73, %c0_74] : memref<2x64x32xf32, #tpu.memory_space<vmem>>, vector<1x64x32xf32>
    %188 = vector.shape_cast %187 : vector<1x64x32xf32> to vector<64x32xf32>
    %cst_75 = arith.constant dense<0.000000e+00> : vector<16x32xf32>
    %189 = tpu.matmul %186, %188, %cst_75 {dimension_numbers = #tpu.dot_dimension_numbers<[1], [0], [0], [1], [0, 0, 1, 1], [], []>} : vector<16x64xf32>, vector<64x32xf32>, vector<16x32xf32> -> vector<16x32xf32>
    %c0_76 = arith.constant 0 : index
    %c0_77 = arith.constant 0 : index
    %c0_78 = arith.constant 0 : index
    %190 = vector.load %arg13[%c0_76, %c0_77, %c0_78] : memref<2x1x32xf32, #tpu.memory_space<vmem>>, vector<1x1x32xf32>
    %191 = vector.shape_cast %190 : vector<1x1x32xf32> to vector<1x32xf32>
    %192 = vector.broadcast %191 : vector<1x32xf32> to vector<16x32xf32>
    %193 = arith.addf %189, %192 : vector<16x32xf32>
    %194 = arith.addf %193, %166 : vector<16x32xf32>
    %c0_79 = arith.constant 0 : index
    %c0_80 = arith.constant 0 : index
    %c0_81 = arith.constant 0 : index
    %195 = vector.load %arg14[%c0_79, %c0_80, %c0_81] : memref<2x1x32xf32, #tpu.memory_space<vmem>>, vector<1x1x32xf32>
    %196 = vector.shape_cast %195 : vector<1x1x32xf32> to vector<1x32xf32>
    %c0_82 = arith.constant 0 : index
    %c0_83 = arith.constant 0 : index
    %c0_84 = arith.constant 0 : index
    %197 = vector.load %arg15[%c0_82, %c0_83, %c0_84] : memref<2x1x32xf32, #tpu.memory_space<vmem>>, vector<1x1x32xf32>
    %198 = vector.shape_cast %197 : vector<1x1x32xf32> to vector<1x32xf32>
    %cst_85 = arith.constant dense<0.000000e+00> : vector<16xf32>
    %199 = vector.multi_reduction <add>, %194, %cst_85 [1] : vector<16x32xf32> to vector<16xf32>
    %200 = vector.shape_cast %199 : vector<16xf32> to vector<16x1xf32>
    %cst_86 = arith.constant 3.200000e+01 : f32
    %201 = vector.broadcast %cst_86 : f32 to vector<16x1xf32>
    %202 = arith.divf %200, %201 : vector<16x1xf32>
    %203 = vector.broadcast %202 : vector<16x1xf32> to vector<16x32xf32>
    %204 = arith.subf %194, %203 : vector<16x32xf32>
    %205 = arith.mulf %204, %204 : vector<16x32xf32>
    %cst_87 = arith.constant dense<0.000000e+00> : vector<16xf32>
    %206 = vector.multi_reduction <add>, %205, %cst_87 [1] : vector<16x32xf32> to vector<16xf32>
    %207 = vector.shape_cast %206 : vector<16xf32> to vector<16x1xf32>
    %cst_88 = arith.constant 3.200000e+01 : f32
    %208 = vector.broadcast %cst_88 : f32 to vector<16x1xf32>
    %209 = arith.divf %207, %208 : vector<16x1xf32>
    %cst_89 = arith.constant 9.99999996E-13 : f32
    %210 = vector.broadcast %cst_89 : f32 to vector<16x1xf32>
    %211 = arith.addf %209, %210 : vector<16x1xf32>
    %212 = math.rsqrt %211 : vector<16x1xf32>
    %213 = vector.broadcast %212 : vector<16x1xf32> to vector<16x32xf32>
    %214 = arith.mulf %204, %213 : vector<16x32xf32>
    %215 = vector.broadcast %196 : vector<1x32xf32> to vector<16x32xf32>
    %216 = arith.mulf %214, %215 : vector<16x32xf32>
    %217 = vector.broadcast %198 : vector<1x32xf32> to vector<16x32xf32>
    %218 = arith.addf %216, %217 : vector<16x32xf32>
    %c1 = arith.constant 1 : index
    %c0_90 = arith.constant 0 : index
    %c0_91 = arith.constant 0 : index
    %219 = vector.load %arg4[%c1, %c0_90, %c0_91] : memref<2x32x96xf32, #tpu.memory_space<vmem>>, vector<1x32x96xf32>
    %220 = vector.shape_cast %219 : vector<1x32x96xf32> to vector<32x96xf32>
    %cst_92 = arith.constant dense<0.000000e+00> : vector<16x96xf32>
    %221 = tpu.matmul %218, %220, %cst_92 {dimension_numbers = #tpu.dot_dimension_numbers<[1], [0], [0], [1], [0, 0, 1, 1], [], []>} : vector<16x32xf32>, vector<32x96xf32>, vector<16x96xf32> -> vector<16x96xf32>
    %c1_93 = arith.constant 1 : index
    %c0_94 = arith.constant 0 : index
    %c0_95 = arith.constant 0 : index
    %222 = vector.load %arg5[%c1_93, %c0_94, %c0_95] : memref<2x1x96xf32, #tpu.memory_space<vmem>>, vector<1x1x96xf32>
    %223 = vector.shape_cast %222 : vector<1x1x96xf32> to vector<1x96xf32>
    %224 = vector.broadcast %223 : vector<1x96xf32> to vector<16x96xf32>
    %225 = arith.addf %221, %224 : vector<16x96xf32>
    %c1_96 = arith.constant 1 : index
    %c0_97 = arith.constant 0 : index
    %c0_98 = arith.constant 0 : index
    %226 = vector.load %arg6[%c1_96, %c0_97, %c0_98] : memref<2x32x32xf32, #tpu.memory_space<vmem>>, vector<1x32x32xf32>
    %227 = vector.shape_cast %226 : vector<1x32x32xf32> to vector<32x32xf32>
    %cst_99 = arith.constant 0.000000e+00 : f32
    %228 = vector.broadcast %cst_99 : f32 to vector<16x32xf32>
    %229 = vector.extract_strided_slice %225 {offsets = [0, 0], sizes = [16, 8], strides = [1, 1]} : vector<16x96xf32> to vector<16x8xf32>
    %230 = vector.shape_cast %229 : vector<16x8xf32> to vector<2x8x8xf32>
    %231 = vector.extract_strided_slice %225 {offsets = [0, 32], sizes = [16, 8], strides = [1, 1]} : vector<16x96xf32> to vector<16x8xf32>
    %232 = vector.shape_cast %231 : vector<16x8xf32> to vector<2x8x8xf32>
    %233 = vector.extract_strided_slice %225 {offsets = [0, 64], sizes = [16, 8], strides = [1, 1]} : vector<16x96xf32> to vector<16x8xf32>
    %234 = vector.shape_cast %233 : vector<16x8xf32> to vector<2x8x8xf32>
    "tpu.trace_start"() <{level = 10 : i32, message = "bqd,bkd->bqk"}> : () -> ()
    %cst_100 = arith.constant dense<0.000000e+00> : vector<2x8x8xf32>
    %235 = tpu.matmul %230, %232, %cst_100 {dimension_numbers = #tpu.dot_dimension_numbers<[2], [2], [1], [1], [0, 0, 0, 1, 1, 1], [0], [0]>} : vector<2x8x8xf32>, vector<2x8x8xf32>, vector<2x8x8xf32> -> vector<2x8x8xf32>
    "tpu.trace_stop"() : () -> ()
    %cst_101 = arith.constant 0.353553385 : f32
    %236 = vector.broadcast %cst_101 : f32 to vector<2x8x8xf32>
    %237 = arith.mulf %235, %236 : vector<2x8x8xf32>
    %238 = vector.broadcast %23 : vector<2x1x8xf32> to vector<2x8x8xf32>
    %239 = arith.addf %237, %238 : vector<2x8x8xf32>
    %cst_102 = arith.constant dense<0xFF800000> : vector<2x8xf32>
    %240 = vector.multi_reduction <maximumf>, %239, %cst_102 [2] : vector<2x8x8xf32> to vector<2x8xf32>
    %241 = vector.shape_cast %240 : vector<2x8xf32> to vector<2x8x1xf32>
    %242 = vector.broadcast %241 : vector<2x8x1xf32> to vector<2x8x8xf32>
    %243 = arith.subf %239, %242 : vector<2x8x8xf32>
    %244 = math.exp %243 : vector<2x8x8xf32>
    %cst_103 = arith.constant dense<0.000000e+00> : vector<2x8xf32>
    %245 = vector.multi_reduction <add>, %244, %cst_103 [2] : vector<2x8x8xf32> to vector<2x8xf32>
    %246 = vector.shape_cast %245 : vector<2x8xf32> to vector<2x8x1xf32>
    %247 = tpu.reciprocal %246 {approx = true} : vector<2x8x1xf32> -> vector<2x8x1xf32>
    %248 = vector.broadcast %247 : vector<2x8x1xf32> to vector<2x8x8xf32>
    %249 = arith.mulf %244, %248 : vector<2x8x8xf32>
    "tpu.trace_start"() <{level = 10 : i32, message = "bqk,bkd->bqd"}> : () -> ()
    %cst_104 = arith.constant dense<0.000000e+00> : vector<2x8x8xf32>
    %250 = tpu.matmul %249, %234, %cst_104 {dimension_numbers = #tpu.dot_dimension_numbers<[2], [1], [1], [2], [0, 0, 0, 1, 1, 2], [0], [0]>} : vector<2x8x8xf32>, vector<2x8x8xf32>, vector<2x8x8xf32> -> vector<2x8x8xf32>
    "tpu.trace_stop"() : () -> ()
    %251 = vector.shape_cast %250 : vector<2x8x8xf32> to vector<16x8xf32>
    %252 = vector.extract_strided_slice %227 {offsets = [0, 0], sizes = [8, 32], strides = [1, 1]} : vector<32x32xf32> to vector<8x32xf32>
    %cst_105 = arith.constant dense<0.000000e+00> : vector<16x32xf32>
    %253 = tpu.matmul %251, %252, %cst_105 {dimension_numbers = #tpu.dot_dimension_numbers<[1], [0], [0], [1], [0, 0, 1, 1], [], []>} : vector<16x8xf32>, vector<8x32xf32>, vector<16x32xf32> -> vector<16x32xf32>
    %254 = arith.addf %228, %253 : vector<16x32xf32>
    %255 = vector.extract_strided_slice %225 {offsets = [0, 8], sizes = [16, 8], strides = [1, 1]} : vector<16x96xf32> to vector<16x8xf32>
    %256 = vector.shape_cast %255 : vector<16x8xf32> to vector<2x8x8xf32>
    %257 = vector.extract_strided_slice %225 {offsets = [0, 40], sizes = [16, 8], strides = [1, 1]} : vector<16x96xf32> to vector<16x8xf32>
    %258 = vector.shape_cast %257 : vector<16x8xf32> to vector<2x8x8xf32>
    %259 = vector.extract_strided_slice %225 {offsets = [0, 72], sizes = [16, 8], strides = [1, 1]} : vector<16x96xf32> to vector<16x8xf32>
    %260 = vector.shape_cast %259 : vector<16x8xf32> to vector<2x8x8xf32>
    "tpu.trace_start"() <{level = 10 : i32, message = "bqd,bkd->bqk"}> : () -> ()
    %cst_106 = arith.constant dense<0.000000e+00> : vector<2x8x8xf32>
    %261 = tpu.matmul %256, %258, %cst_106 {dimension_numbers = #tpu.dot_dimension_numbers<[2], [2], [1], [1], [0, 0, 0, 1, 1, 1], [0], [0]>} : vector<2x8x8xf32>, vector<2x8x8xf32>, vector<2x8x8xf32> -> vector<2x8x8xf32>
    "tpu.trace_stop"() : () -> ()
    %cst_107 = arith.constant 0.353553385 : f32
    %262 = vector.broadcast %cst_107 : f32 to vector<2x8x8xf32>
    %263 = arith.mulf %261, %262 : vector<2x8x8xf32>
    %264 = vector.broadcast %23 : vector<2x1x8xf32> to vector<2x8x8xf32>
    %265 = arith.addf %263, %264 : vector<2x8x8xf32>
    %cst_108 = arith.constant dense<0xFF800000> : vector<2x8xf32>
    %266 = vector.multi_reduction <maximumf>, %265, %cst_108 [2] : vector<2x8x8xf32> to vector<2x8xf32>
    %267 = vector.shape_cast %266 : vector<2x8xf32> to vector<2x8x1xf32>
    %268 = vector.broadcast %267 : vector<2x8x1xf32> to vector<2x8x8xf32>
    %269 = arith.subf %265, %268 : vector<2x8x8xf32>
    %270 = math.exp %269 : vector<2x8x8xf32>
    %cst_109 = arith.constant dense<0.000000e+00> : vector<2x8xf32>
    %271 = vector.multi_reduction <add>, %270, %cst_109 [2] : vector<2x8x8xf32> to vector<2x8xf32>
    %272 = vector.shape_cast %271 : vector<2x8xf32> to vector<2x8x1xf32>
    %273 = tpu.reciprocal %272 {approx = true} : vector<2x8x1xf32> -> vector<2x8x1xf32>
    %274 = vector.broadcast %273 : vector<2x8x1xf32> to vector<2x8x8xf32>
    %275 = arith.mulf %270, %274 : vector<2x8x8xf32>
    "tpu.trace_start"() <{level = 10 : i32, message = "bqk,bkd->bqd"}> : () -> ()
    %cst_110 = arith.constant dense<0.000000e+00> : vector<2x8x8xf32>
    %276 = tpu.matmul %275, %260, %cst_110 {dimension_numbers = #tpu.dot_dimension_numbers<[2], [1], [1], [2], [0, 0, 0, 1, 1, 2], [0], [0]>} : vector<2x8x8xf32>, vector<2x8x8xf32>, vector<2x8x8xf32> -> vector<2x8x8xf32>
    "tpu.trace_stop"() : () -> ()
    %277 = vector.shape_cast %276 : vector<2x8x8xf32> to vector<16x8xf32>
    %278 = vector.extract_strided_slice %227 {offsets = [8, 0], sizes = [8, 32], strides = [1, 1]} : vector<32x32xf32> to vector<8x32xf32>
    %cst_111 = arith.constant dense<0.000000e+00> : vector<16x32xf32>
    %279 = tpu.matmul %277, %278, %cst_111 {dimension_numbers = #tpu.dot_dimension_numbers<[1], [0], [0], [1], [0, 0, 1, 1], [], []>} : vector<16x8xf32>, vector<8x32xf32>, vector<16x32xf32> -> vector<16x32xf32>
    %280 = arith.addf %254, %279 : vector<16x32xf32>
    %281 = vector.extract_strided_slice %225 {offsets = [0, 16], sizes = [16, 8], strides = [1, 1]} : vector<16x96xf32> to vector<16x8xf32>
    %282 = vector.shape_cast %281 : vector<16x8xf32> to vector<2x8x8xf32>
    %283 = vector.extract_strided_slice %225 {offsets = [0, 48], sizes = [16, 8], strides = [1, 1]} : vector<16x96xf32> to vector<16x8xf32>
    %284 = vector.shape_cast %283 : vector<16x8xf32> to vector<2x8x8xf32>
    %285 = vector.extract_strided_slice %225 {offsets = [0, 80], sizes = [16, 8], strides = [1, 1]} : vector<16x96xf32> to vector<16x8xf32>
    %286 = vector.shape_cast %285 : vector<16x8xf32> to vector<2x8x8xf32>
    "tpu.trace_start"() <{level = 10 : i32, message = "bqd,bkd->bqk"}> : () -> ()
    %cst_112 = arith.constant dense<0.000000e+00> : vector<2x8x8xf32>
    %287 = tpu.matmul %282, %284, %cst_112 {dimension_numbers = #tpu.dot_dimension_numbers<[2], [2], [1], [1], [0, 0, 0, 1, 1, 1], [0], [0]>} : vector<2x8x8xf32>, vector<2x8x8xf32>, vector<2x8x8xf32> -> vector<2x8x8xf32>
    "tpu.trace_stop"() : () -> ()
    %cst_113 = arith.constant 0.353553385 : f32
    %288 = vector.broadcast %cst_113 : f32 to vector<2x8x8xf32>
    %289 = arith.mulf %287, %288 : vector<2x8x8xf32>
    %290 = vector.broadcast %23 : vector<2x1x8xf32> to vector<2x8x8xf32>
    %291 = arith.addf %289, %290 : vector<2x8x8xf32>
    %cst_114 = arith.constant dense<0xFF800000> : vector<2x8xf32>
    %292 = vector.multi_reduction <maximumf>, %291, %cst_114 [2] : vector<2x8x8xf32> to vector<2x8xf32>
    %293 = vector.shape_cast %292 : vector<2x8xf32> to vector<2x8x1xf32>
    %294 = vector.broadcast %293 : vector<2x8x1xf32> to vector<2x8x8xf32>
    %295 = arith.subf %291, %294 : vector<2x8x8xf32>
    %296 = math.exp %295 : vector<2x8x8xf32>
    %cst_115 = arith.constant dense<0.000000e+00> : vector<2x8xf32>
    %297 = vector.multi_reduction <add>, %296, %cst_115 [2] : vector<2x8x8xf32> to vector<2x8xf32>
    %298 = vector.shape_cast %297 : vector<2x8xf32> to vector<2x8x1xf32>
    %299 = tpu.reciprocal %298 {approx = true} : vector<2x8x1xf32> -> vector<2x8x1xf32>
    %300 = vector.broadcast %299 : vector<2x8x1xf32> to vector<2x8x8xf32>
    %301 = arith.mulf %296, %300 : vector<2x8x8xf32>
    "tpu.trace_start"() <{level = 10 : i32, message = "bqk,bkd->bqd"}> : () -> ()
    %cst_116 = arith.constant dense<0.000000e+00> : vector<2x8x8xf32>
    %302 = tpu.matmul %301, %286, %cst_116 {dimension_numbers = #tpu.dot_dimension_numbers<[2], [1], [1], [2], [0, 0, 0, 1, 1, 2], [0], [0]>} : vector<2x8x8xf32>, vector<2x8x8xf32>, vector<2x8x8xf32> -> vector<2x8x8xf32>
    "tpu.trace_stop"() : () -> ()
    %303 = vector.shape_cast %302 : vector<2x8x8xf32> to vector<16x8xf32>
    %304 = vector.extract_strided_slice %227 {offsets = [16, 0], sizes = [8, 32], strides = [1, 1]} : vector<32x32xf32> to vector<8x32xf32>
    %cst_117 = arith.constant dense<0.000000e+00> : vector<16x32xf32>
    %305 = tpu.matmul %303, %304, %cst_117 {dimension_numbers = #tpu.dot_dimension_numbers<[1], [0], [0], [1], [0, 0, 1, 1], [], []>} : vector<16x8xf32>, vector<8x32xf32>, vector<16x32xf32> -> vector<16x32xf32>
    %306 = arith.addf %280, %305 : vector<16x32xf32>
    %307 = vector.extract_strided_slice %225 {offsets = [0, 24], sizes = [16, 8], strides = [1, 1]} : vector<16x96xf32> to vector<16x8xf32>
    %308 = vector.shape_cast %307 : vector<16x8xf32> to vector<2x8x8xf32>
    %309 = vector.extract_strided_slice %225 {offsets = [0, 56], sizes = [16, 8], strides = [1, 1]} : vector<16x96xf32> to vector<16x8xf32>
    %310 = vector.shape_cast %309 : vector<16x8xf32> to vector<2x8x8xf32>
    %311 = vector.extract_strided_slice %225 {offsets = [0, 88], sizes = [16, 8], strides = [1, 1]} : vector<16x96xf32> to vector<16x8xf32>
    %312 = vector.shape_cast %311 : vector<16x8xf32> to vector<2x8x8xf32>
    "tpu.trace_start"() <{level = 10 : i32, message = "bqd,bkd->bqk"}> : () -> ()
    %cst_118 = arith.constant dense<0.000000e+00> : vector<2x8x8xf32>
    %313 = tpu.matmul %308, %310, %cst_118 {dimension_numbers = #tpu.dot_dimension_numbers<[2], [2], [1], [1], [0, 0, 0, 1, 1, 1], [0], [0]>} : vector<2x8x8xf32>, vector<2x8x8xf32>, vector<2x8x8xf32> -> vector<2x8x8xf32>
    "tpu.trace_stop"() : () -> ()
    %cst_119 = arith.constant 0.353553385 : f32
    %314 = vector.broadcast %cst_119 : f32 to vector<2x8x8xf32>
    %315 = arith.mulf %313, %314 : vector<2x8x8xf32>
    %316 = vector.broadcast %23 : vector<2x1x8xf32> to vector<2x8x8xf32>
    %317 = arith.addf %315, %316 : vector<2x8x8xf32>
    %cst_120 = arith.constant dense<0xFF800000> : vector<2x8xf32>
    %318 = vector.multi_reduction <maximumf>, %317, %cst_120 [2] : vector<2x8x8xf32> to vector<2x8xf32>
    %319 = vector.shape_cast %318 : vector<2x8xf32> to vector<2x8x1xf32>
    %320 = vector.broadcast %319 : vector<2x8x1xf32> to vector<2x8x8xf32>
    %321 = arith.subf %317, %320 : vector<2x8x8xf32>
    %322 = math.exp %321 : vector<2x8x8xf32>
    %cst_121 = arith.constant dense<0.000000e+00> : vector<2x8xf32>
    %323 = vector.multi_reduction <add>, %322, %cst_121 [2] : vector<2x8x8xf32> to vector<2x8xf32>
    %324 = vector.shape_cast %323 : vector<2x8xf32> to vector<2x8x1xf32>
    %325 = tpu.reciprocal %324 {approx = true} : vector<2x8x1xf32> -> vector<2x8x1xf32>
    %326 = vector.broadcast %325 : vector<2x8x1xf32> to vector<2x8x8xf32>
    %327 = arith.mulf %322, %326 : vector<2x8x8xf32>
    "tpu.trace_start"() <{level = 10 : i32, message = "bqk,bkd->bqd"}> : () -> ()
    %cst_122 = arith.constant dense<0.000000e+00> : vector<2x8x8xf32>
    %328 = tpu.matmul %327, %312, %cst_122 {dimension_numbers = #tpu.dot_dimension_numbers<[2], [1], [1], [2], [0, 0, 0, 1, 1, 2], [0], [0]>} : vector<2x8x8xf32>, vector<2x8x8xf32>, vector<2x8x8xf32> -> vector<2x8x8xf32>
    "tpu.trace_stop"() : () -> ()
    %329 = vector.shape_cast %328 : vector<2x8x8xf32> to vector<16x8xf32>
    %330 = vector.extract_strided_slice %227 {offsets = [24, 0], sizes = [8, 32], strides = [1, 1]} : vector<32x32xf32> to vector<8x32xf32>
    %cst_123 = arith.constant dense<0.000000e+00> : vector<16x32xf32>
    %331 = tpu.matmul %329, %330, %cst_123 {dimension_numbers = #tpu.dot_dimension_numbers<[1], [0], [0], [1], [0, 0, 1, 1], [], []>} : vector<16x8xf32>, vector<8x32xf32>, vector<16x32xf32> -> vector<16x32xf32>
    %332 = arith.addf %306, %331 : vector<16x32xf32>
    %c1_124 = arith.constant 1 : index
    %c0_125 = arith.constant 0 : index
    %c0_126 = arith.constant 0 : index
    %333 = vector.load %arg7[%c1_124, %c0_125, %c0_126] : memref<2x1x32xf32, #tpu.memory_space<vmem>>, vector<1x1x32xf32>
    %334 = vector.shape_cast %333 : vector<1x1x32xf32> to vector<1x32xf32>
    %335 = vector.broadcast %334 : vector<1x32xf32> to vector<16x32xf32>
    %336 = arith.addf %332, %335 : vector<16x32xf32>
    %337 = arith.addf %336, %218 : vector<16x32xf32>
    %c1_127 = arith.constant 1 : index
    %c0_128 = arith.constant 0 : index
    %c0_129 = arith.constant 0 : index
    %338 = vector.load %arg8[%c1_127, %c0_128, %c0_129] : memref<2x1x32xf32, #tpu.memory_space<vmem>>, vector<1x1x32xf32>
    %339 = vector.shape_cast %338 : vector<1x1x32xf32> to vector<1x32xf32>
    %c1_130 = arith.constant 1 : index
    %c0_131 = arith.constant 0 : index
    %c0_132 = arith.constant 0 : index
    %340 = vector.load %arg9[%c1_130, %c0_131, %c0_132] : memref<2x1x32xf32, #tpu.memory_space<vmem>>, vector<1x1x32xf32>
    %341 = vector.shape_cast %340 : vector<1x1x32xf32> to vector<1x32xf32>
    %cst_133 = arith.constant dense<0.000000e+00> : vector<16xf32>
    %342 = vector.multi_reduction <add>, %337, %cst_133 [1] : vector<16x32xf32> to vector<16xf32>
    %343 = vector.shape_cast %342 : vector<16xf32> to vector<16x1xf32>
    %cst_134 = arith.constant 3.200000e+01 : f32
    %344 = vector.broadcast %cst_134 : f32 to vector<16x1xf32>
    %345 = arith.divf %343, %344 : vector<16x1xf32>
    %346 = vector.broadcast %345 : vector<16x1xf32> to vector<16x32xf32>
    %347 = arith.subf %337, %346 : vector<16x32xf32>
    %348 = arith.mulf %347, %347 : vector<16x32xf32>
    %cst_135 = arith.constant dense<0.000000e+00> : vector<16xf32>
    %349 = vector.multi_reduction <add>, %348, %cst_135 [1] : vector<16x32xf32> to vector<16xf32>
    %350 = vector.shape_cast %349 : vector<16xf32> to vector<16x1xf32>
    %cst_136 = arith.constant 3.200000e+01 : f32
    %351 = vector.broadcast %cst_136 : f32 to vector<16x1xf32>
    %352 = arith.divf %350, %351 : vector<16x1xf32>
    %cst_137 = arith.constant 9.99999996E-13 : f32
    %353 = vector.broadcast %cst_137 : f32 to vector<16x1xf32>
    %354 = arith.addf %352, %353 : vector<16x1xf32>
    %355 = math.rsqrt %354 : vector<16x1xf32>
    %356 = vector.broadcast %355 : vector<16x1xf32> to vector<16x32xf32>
    %357 = arith.mulf %347, %356 : vector<16x32xf32>
    %358 = vector.broadcast %339 : vector<1x32xf32> to vector<16x32xf32>
    %359 = arith.mulf %357, %358 : vector<16x32xf32>
    %360 = vector.broadcast %341 : vector<1x32xf32> to vector<16x32xf32>
    %361 = arith.addf %359, %360 : vector<16x32xf32>
    %c1_138 = arith.constant 1 : index
    %c0_139 = arith.constant 0 : index
    %c0_140 = arith.constant 0 : index
    %362 = vector.load %arg10[%c1_138, %c0_139, %c0_140] : memref<2x32x64xf32, #tpu.memory_space<vmem>>, vector<1x32x64xf32>
    %363 = vector.shape_cast %362 : vector<1x32x64xf32> to vector<32x64xf32>
    %cst_141 = arith.constant dense<0.000000e+00> : vector<16x64xf32>
    %364 = tpu.matmul %361, %363, %cst_141 {dimension_numbers = #tpu.dot_dimension_numbers<[1], [0], [0], [1], [0, 0, 1, 1], [], []>} : vector<16x32xf32>, vector<32x64xf32>, vector<16x64xf32> -> vector<16x64xf32>
    %c1_142 = arith.constant 1 : index
    %c0_143 = arith.constant 0 : index
    %c0_144 = arith.constant 0 : index
    %365 = vector.load %arg11[%c1_142, %c0_143, %c0_144] : memref<2x1x64xf32, #tpu.memory_space<vmem>>, vector<1x1x64xf32>
    %366 = vector.shape_cast %365 : vector<1x1x64xf32> to vector<1x64xf32>
    %367 = vector.broadcast %366 : vector<1x64xf32> to vector<16x64xf32>
    %368 = arith.addf %364, %367 : vector<16x64xf32>
    %cst_145 = arith.constant 5.000000e-01 : f32
    %369 = vector.broadcast %cst_145 : f32 to vector<16x64xf32>
    %370 = arith.mulf %369, %368 : vector<16x64xf32>
    %cst_146 = arith.constant 4.471500e-02 : f32
    %371 = vector.broadcast %cst_146 : f32 to vector<16x64xf32>
    %372 = arith.mulf %371, %368 : vector<16x64xf32>
    %373 = arith.mulf %372, %368 : vector<16x64xf32>
    %374 = arith.mulf %373, %368 : vector<16x64xf32>
    %375 = arith.addf %368, %374 : vector<16x64xf32>
    %cst_147 = arith.constant 0.797884583 : f32
    %376 = vector.broadcast %cst_147 : f32 to vector<16x64xf32>
    %377 = arith.mulf %376, %375 : vector<16x64xf32>
    %378 = math.tanh %377 : vector<16x64xf32>
    %cst_148 = arith.constant 1.000000e+00 : f32
    %379 = vector.broadcast %cst_148 : f32 to vector<16x64xf32>
    %380 = arith.addf %379, %378 : vector<16x64xf32>
    %381 = arith.mulf %370, %380 : vector<16x64xf32>
    %c1_149 = arith.constant 1 : index
    %c0_150 = arith.constant 0 : index
    %c0_151 = arith.constant 0 : index
    %382 = vector.load %arg12[%c1_149, %c0_150, %c0_151] : memref<2x64x32xf32, #tpu.memory_space<vmem>>, vector<1x64x32xf32>
    %383 = vector.shape_cast %382 : vector<1x64x32xf32> to vector<64x32xf32>
    %cst_152 = arith.constant dense<0.000000e+00> : vector<16x32xf32>
    %384 = tpu.matmul %381, %383, %cst_152 {dimension_numbers = #tpu.dot_dimension_numbers<[1], [0], [0], [1], [0, 0, 1, 1], [], []>} : vector<16x64xf32>, vector<64x32xf32>, vector<16x32xf32> -> vector<16x32xf32>
    %c1_153 = arith.constant 1 : index
    %c0_154 = arith.constant 0 : index
    %c0_155 = arith.constant 0 : index
    %385 = vector.load %arg13[%c1_153, %c0_154, %c0_155] : memref<2x1x32xf32, #tpu.memory_space<vmem>>, vector<1x1x32xf32>
    %386 = vector.shape_cast %385 : vector<1x1x32xf32> to vector<1x32xf32>
    %387 = vector.broadcast %386 : vector<1x32xf32> to vector<16x32xf32>
    %388 = arith.addf %384, %387 : vector<16x32xf32>
    %389 = arith.addf %388, %361 : vector<16x32xf32>
    %c1_156 = arith.constant 1 : index
    %c0_157 = arith.constant 0 : index
    %c0_158 = arith.constant 0 : index
    %390 = vector.load %arg14[%c1_156, %c0_157, %c0_158] : memref<2x1x32xf32, #tpu.memory_space<vmem>>, vector<1x1x32xf32>
    %391 = vector.shape_cast %390 : vector<1x1x32xf32> to vector<1x32xf32>
    %c1_159 = arith.constant 1 : index
    %c0_160 = arith.constant 0 : index
    %c0_161 = arith.constant 0 : index
    %392 = vector.load %arg15[%c1_159, %c0_160, %c0_161] : memref<2x1x32xf32, #tpu.memory_space<vmem>>, vector<1x1x32xf32>
    %393 = vector.shape_cast %392 : vector<1x1x32xf32> to vector<1x32xf32>
    %cst_162 = arith.constant dense<0.000000e+00> : vector<16xf32>
    %394 = vector.multi_reduction <add>, %389, %cst_162 [1] : vector<16x32xf32> to vector<16xf32>
    %395 = vector.shape_cast %394 : vector<16xf32> to vector<16x1xf32>
    %cst_163 = arith.constant 3.200000e+01 : f32
    %396 = vector.broadcast %cst_163 : f32 to vector<16x1xf32>
    %397 = arith.divf %395, %396 : vector<16x1xf32>
    %398 = vector.broadcast %397 : vector<16x1xf32> to vector<16x32xf32>
    %399 = arith.subf %389, %398 : vector<16x32xf32>
    %400 = arith.mulf %399, %399 : vector<16x32xf32>
    %cst_164 = arith.constant dense<0.000000e+00> : vector<16xf32>
    %401 = vector.multi_reduction <add>, %400, %cst_164 [1] : vector<16x32xf32> to vector<16xf32>
    %402 = vector.shape_cast %401 : vector<16xf32> to vector<16x1xf32>
    %cst_165 = arith.constant 3.200000e+01 : f32
    %403 = vector.broadcast %cst_165 : f32 to vector<16x1xf32>
    %404 = arith.divf %402, %403 : vector<16x1xf32>
    %cst_166 = arith.constant 9.99999996E-13 : f32
    %405 = vector.broadcast %cst_166 : f32 to vector<16x1xf32>
    %406 = arith.addf %404, %405 : vector<16x1xf32>
    %407 = math.rsqrt %406 : vector<16x1xf32>
    %408 = vector.broadcast %407 : vector<16x1xf32> to vector<16x32xf32>
    %409 = arith.mulf %399, %408 : vector<16x32xf32>
    %410 = vector.broadcast %391 : vector<1x32xf32> to vector<16x32xf32>
    %411 = arith.mulf %409, %410 : vector<16x32xf32>
    %412 = vector.broadcast %393 : vector<1x32xf32> to vector<16x32xf32>
    %413 = arith.addf %411, %412 : vector<16x32xf32>
    %414 = tpu.iota {dimensions = array<i32: 0>} : vector<2x16xi32>
    %415 = tpu.iota {dimensions = array<i32: 1>} : vector<2x16xi32>
    %c8_i32 = arith.constant 8 : i32
    %416 = vector.broadcast %c8_i32 : i32 to vector<2x16xi32>
    %417 = arith.muli %414, %416 : vector<2x16xi32>
    %418 = arith.cmpi eq, %415, %417 : vector<2x16xi32>
    %419 = arith.extui %418 : vector<2x16xi1> to vector<2x16xi32>
    %420 = arith.sitofp %419 : vector<2x16xi32> to vector<2x16xf32>
    %cst_167 = arith.constant dense<0.000000e+00> : vector<2x32xf32>
    %421 = tpu.matmul %420, %413, %cst_167 {dimension_numbers = #tpu.dot_dimension_numbers<[1], [0], [0], [1], [0, 0, 1, 1], [], []>} : vector<2x16xf32>, vector<16x32xf32>, vector<2x32xf32> -> vector<2x32xf32>
    %c0_168 = arith.constant 0 : index
    %c0_169 = arith.constant 0 : index
    %422 = vector.load %arg16[%c0_168, %c0_169] : memref<32x32xf32, #tpu.memory_space<vmem>>, vector<32x32xf32>
    %cst_170 = arith.constant dense<0.000000e+00> : vector<2x32xf32>
    %423 = tpu.matmul %421, %422, %cst_170 {dimension_numbers = #tpu.dot_dimension_numbers<[1], [0], [0], [1], [0, 0, 1, 1], [], []>} : vector<2x32xf32>, vector<32x32xf32>, vector<2x32xf32> -> vector<2x32xf32>
    %c0_171 = arith.constant 0 : index
    %c0_172 = arith.constant 0 : index
    %424 = vector.load %arg17[%c0_171, %c0_172] : memref<1x32xf32, #tpu.memory_space<vmem>>, vector<1x32xf32>
    %425 = vector.broadcast %424 : vector<1x32xf32> to vector<2x32xf32>
    %426 = arith.addf %423, %425 : vector<2x32xf32>
    %427 = math.tanh %426 : vector<2x32xf32>
    %c0_173 = arith.constant 0 : index
    %c0_174 = arith.constant 0 : index
    %428 = vector.load %arg18[%c0_173, %c0_174] : memref<32x128xf32, #tpu.memory_space<vmem>>, vector<32x128xf32>
    %cst_175 = arith.constant dense<0.000000e+00> : vector<2x128xf32>
    %429 = tpu.matmul %427, %428, %cst_175 {dimension_numbers = #tpu.dot_dimension_numbers<[1], [0], [0], [1], [0, 0, 1, 1], [], []>} : vector<2x32xf32>, vector<32x128xf32>, vector<2x128xf32> -> vector<2x128xf32>
    %c0_176 = arith.constant 0 : index
    %c0_177 = arith.constant 0 : index
    %430 = vector.load %arg19[%c0_176, %c0_177] : memref<1x128xf32, #tpu.memory_space<vmem>>, vector<1x128xf32>
    %431 = vector.broadcast %430 : vector<1x128xf32> to vector<2x128xf32>
    %432 = arith.addf %429, %431 : vector<2x128xf32>
    %c0_178 = arith.constant 0 : index
    %c0_179 = arith.constant 0 : index
    %433 = vector.load %arg20[%c0_178, %c0_179] : memref<2x128xf32, #tpu.memory_space<vmem>>, vector<2x128xf32>
    tpu.vector_store %arg20[%c0_178, %c0_179], %432 {strides = array<i32>} : memref<2x128xf32, #tpu.memory_space<vmem>>, vector<2x128xf32>,
    return
  }
}

</mosaic_0001>

<llo_original>
// kernel: resume_classifier_forward.1
$region0: #{resume_classifier_forward.1}
  #allocation0 [shape = 'u32[]', space=smem, size = 0x4, offset = 0x4, fixed_abs, tag = 'smem constant byte address 0x4 - core index']
  #allocation1 [shape = 'u32[144,128]{1,0:T(1,128)}', space=vmem, size = 0x12000, scoped, tag = 'internal scratch']
  %s0 = inlined_call_operand.vmem [shape: f32[16,32], index: 0, kind: input, shape index: {}]
  %s1 = inlined_call_operand.vmem [shape: f32[2,1,8], index: 1, kind: input, shape index: {}]
  %s2 = inlined_call_operand.vmem [shape: f32[1,32], index: 2, kind: input, shape index: {}]
  %s3 = inlined_call_operand.vmem [shape: f32[1,32], index: 3, kind: input, shape index: {}]
  %s4 = inlined_call_operand.vmem [shape: f32[2,32,96], index: 4, kind: input, shape index: {}]
  %s5 = inlined_call_operand.vmem [shape: f32[2,1,96], index: 5, kind: input, shape index: {}]
  %s6 = inlined_call_operand.vmem [shape: f32[2,32,32], index: 6, kind: input, shape index: {}]
  %s7 = inlined_call_operand.vmem [shape: f32[2,1,32], index: 7, kind: input, shape index: {}]
  %s8 = inlined_call_operand.vmem [shape: f32[2,1,32], index: 8, kind: input, shape index: {}]
  %s9 = inlined_call_operand.vmem [shape: f32[2,1,32], index: 9, kind: input, shape index: {}]
  %s10 = inlined_call_operand.vmem [shape: f32[2,32,64], index: 10, kind: input, shape index: {}]
  %s11 = inlined_call_operand.vmem [shape: f32[2,1,64], index: 11, kind: input, shape index: {}]
  %s12 = inlined_call_operand.vmem [shape: f32[2,64,32], index: 12, kind: input, shape index: {}]
  %s13 = inlined_call_operand.vmem [shape: f32[2,1,32], index: 13, kind: input, shape index: {}]
  %s14 = inlined_call_operand.vmem [shape: f32[2,1,32], index: 14, kind: input, shape index: {}]
  %s15 = inlined_call_operand.vmem [shape: f32[2,1,32], index: 15, kind: input, shape index: {}]
  %s16 = inlined_call_operand.vmem [shape: f32[32,32], index: 16, kind: input, shape index: {}]
  %s17 = inlined_call_operand.vmem [shape: f32[1,32], index: 17, kind: input, shape index: {}]
  %s18 = inlined_call_operand.vmem [shape: f32[32,128], index: 18, kind: input, shape index: {}]
  %s19 = inlined_call_operand.vmem [shape: f32[1,128], index: 19, kind: input, shape index: {}]
  %s20 = inlined_call_operand.hbm [shape: f32[2,128], index: 20, kind: output, shape index: {}]
  %s21 = sld [smem:[#allocation0]]
  $region90: #{resume_classifier_forward.1} parent=0
    _
  %s23 = ssub.s32 1, %s21
  %s24 = scalar_select 0, %s23, %s21
  $region1: #{resume_classifier_forward.1} parent=0
    #allocation2 [shape = 'u8[1024]{0}', space=vmem, size = 0x400, scoped, tag = 'output window, operand 0, single buffered']
    #allocation3 [shape = 's32[1]{0}', space=sflag, size = 0x4, scoped, tag = 'scoped memory for resume_classifier_forward.1']
    %25 = vsyncpa [#allocation3], 0
    // Predicated region
    $region2: #{resume_classifier_forward.1} parent=1 // pred_check
      _
    $region3: #{resume_classifier_forward.1} parent=1 // pred_check_branch
      %27 = sbr.rel (0) target = $region5
    $region4: #{resume_classifier_forward.1} parent=1 // pred_region
      _
    $region5: #{resume_classifier_forward.1} parent=1 // pred_fallthru
      _
    // Predicated region
    $region6: #{resume_classifier_forward.1} parent=1 // pred_check
      _
    $region7: #{resume_classifier_forward.1} parent=1 // pred_check_branch
      %29 = sbr.rel (0) target = $region9
    $region8: #{resume_classifier_forward.1} parent=1 // pred_region
      _
    $region9: #{resume_classifier_forward.1} parent=1 // pred_fallthru
      _
    // Predicated region
    $region10: #{resume_classifier_forward.1} parent=1 // pred_check
      _
    $region11: #{resume_classifier_forward.1} parent=1 // pred_check_branch
      %31 = sbr.rel (0) target = $region13
    $region12: #{resume_classifier_forward.1} parent=1 // pred_region
      _
    $region13: #{resume_classifier_forward.1} parent=1 // pred_fallthru
      _
    // Predicated region
    $region14: #{resume_classifier_forward.1} parent=1 // pred_check
      _
    $region15: #{resume_classifier_forward.1} parent=1 // pred_check_branch
      %33 = sbr.rel (0) target = $region17
    $region16: #{resume_classifier_forward.1} parent=1 // pred_region
      _
    $region17: #{resume_classifier_forward.1} parent=1 // pred_fallthru
      _
    // Predicated region
    $region18: #{resume_classifier_forward.1} parent=1 // pred_check
      _
    $region19: #{resume_classifier_forward.1} parent=1 // pred_check_branch
      %35 = sbr.rel (0) target = $region21
    $region20: #{resume_classifier_forward.1} parent=1 // pred_region
      _
    $region21: #{resume_classifier_forward.1} parent=1 // pred_fallthru
      _
    // Predicated region
    $region22: #{resume_classifier_forward.1} parent=1 // pred_check
      _
    $region23: #{resume_classifier_forward.1} parent=1 // pred_check_branch
      %37 = sbr.rel (0) target = $region25
    $region24: #{resume_classifier_forward.1} parent=1 // pred_region
      _
    $region25: #{resume_classifier_forward.1} parent=1 // pred_fallthru
      _
    // Predicated region
    $region26: #{resume_classifier_forward.1} parent=1 // pred_check
      _
    $region27: #{resume_classifier_forward.1} parent=1 // pred_check_branch
      %39 = sbr.rel (0) target = $region29
    $region28: #{resume_classifier_forward.1} parent=1 // pred_region
      _
    $region29: #{resume_classifier_forward.1} parent=1 // pred_fallthru
      _
    // Predicated region
    $region30: #{resume_classifier_forward.1} parent=1 // pred_check
      _
    $region31: #{resume_classifier_forward.1} parent=1 // pred_check_branch
      %41 = sbr.rel (0) target = $region33
    $region32: #{resume_classifier_forward.1} parent=1 // pred_region
      _
    $region33: #{resume_classifier_forward.1} parent=1 // pred_fallthru
      _
    // Predicated region
    $region34: #{resume_classifier_forward.1} parent=1 // pred_check
      _
    $region35: #{resume_classifier_forward.1} parent=1 // pred_check_branch
      %43 = sbr.rel (0) target = $region37
    $region36: #{resume_classifier_forward.1} parent=1 // pred_region
      _
    $region37: #{resume_classifier_forward.1} parent=1 // pred_fallthru
      _
    // Predicated region
    $region38: #{resume_classifier_forward.1} parent=1 // pred_check
      _
    $region39: #{resume_classifier_forward.1} parent=1 // pred_check_branch
      %45 = sbr.rel (0) target = $region41
    $region40: #{resume_classifier_forward.1} parent=1 // pred_region
      _
    $region41: #{resume_classifier_forward.1} parent=1 // pred_fallthru
      _
    // Predicated region
    $region42: #{resume_classifier_forward.1} parent=1 // pred_check
      _
    $region43: #{resume_classifier_forward.1} parent=1 // pred_check_branch
      %47 = sbr.rel (0) target = $region45
    $region44: #{resume_classifier_forward.1} parent=1 // pred_region
      _
    $region45: #{resume_classifier_forward.1} parent=1 // pred_fallthru
      _
    // Predicated region
    $region46: #{resume_classifier_forward.1} parent=1 // pred_check
      _
    $region47: #{resume_classifier_forward.1} parent=1 // pred_check_branch
      %49 = sbr.rel (0) target = $region49
    $region48: #{resume_classifier_forward.1} parent=1 // pred_region
      _
    $region49: #{resume_classifier_forward.1} parent=1 // pred_fallthru
      _
    // Predicated region
    $region50: #{resume_classifier_forward.1} parent=1 // pred_check
      _
    $region51: #{resume_classifier_forward.1} parent=1 // pred_check_branch
      %51 = sbr.rel (0) target = $region53
    $region52: #{resume_classifier_forward.1} parent=1 // pred_region
      _
    $region53: #{resume_classifier_forward.1} parent=1 // pred_fallthru
      _
    // Predicated region
    $region54: #{resume_classifier_forward.1} parent=1 // pred_check
      _
    $region55: #{resume_classifier_forward.1} parent=1 // pred_check_branch
      %53 = sbr.rel (0) target = $region57
    $region56: #{resume_classifier_forward.1} parent=1 // pred_region
      _
    $region57: #{resume_classifier_forward.1} parent=1 // pred_fallthru
      _
    // Predicated region
    $region58: #{resume_classifier_forward.1} parent=1 // pred_check
      _
    $region59: #{resume_classifier_forward.1} parent=1 // pred_check_branch
      %55 = sbr.rel (0) target = $region61
    $region60: #{resume_classifier_forward.1} parent=1 // pred_region
      _
    $region61: #{resume_classifier_forward.1} parent=1 // pred_fallthru
      _
    // Predicated region
    $region62: #{resume_classifier_forward.1} parent=1 // pred_check
      _
    $region63: #{resume_classifier_forward.1} parent=1 // pred_check_branch
      %57 = sbr.rel (0) target = $region65
    $region64: #{resume_classifier_forward.1} parent=1 // pred_region
      _
    $region65: #{resume_classifier_forward.1} parent=1 // pred_fallthru
      _
    // Predicated region
    $region66: #{resume_classifier_forward.1} parent=1 // pred_check
      _
    $region67: #{resume_classifier_forward.1} parent=1 // pred_check_branch
      %59 = sbr.rel (0) target = $region69
    $region68: #{resume_classifier_forward.1} parent=1 // pred_region
      _
    $region69: #{resume_classifier_forward.1} parent=1 // pred_fallthru
      _
    // Predicated region
    $region70: #{resume_classifier_forward.1} parent=1 // pred_check
      _
    $region71: #{resume_classifier_forward.1} parent=1 // pred_check_branch
      %61 = sbr.rel (0) target = $region73
    $region72: #{resume_classifier_forward.1} parent=1 // pred_region
      _
    $region73: #{resume_classifier_forward.1} parent=1 // pred_fallthru
      _
    // Predicated region
    $region74: #{resume_classifier_forward.1} parent=1 // pred_check
      _
    $region75: #{resume_classifier_forward.1} parent=1 // pred_check_branch
      %63 = sbr.rel (0) target = $region77
    $region76: #{resume_classifier_forward.1} parent=1 // pred_region
      _
    $region77: #{resume_classifier_forward.1} parent=1 // pred_fallthru
      _
    // Predicated region
    $region78: #{resume_classifier_forward.1} parent=1 // pred_check
      _
    $region79: #{resume_classifier_forward.1} parent=1 // pred_check_branch
      %65 = sbr.rel (0) target = $region81
    $region80: #{resume_classifier_forward.1} parent=1 // pred_region
      _
    $region81: #{resume_classifier_forward.1} parent=1 // pred_fallthru
      _
    %v66 = vld [vmem:[%s0] sm:$0xff]
    %v67 = vld [vmem:[%s0 + $0x8] sm:$0xff]
    %v68 = vld [vmem:[%s2] sm:$0x1]
    %v69 = vld [vmem:[%s3] sm:$0x1]
    %vm70 = vcmask 261120
    %v71 = vsel %vm70, %v66, 0.0
    %72 = vadd.xlane.f32.xlu0 %v71
    %v73 = vpop.xlane.xlu0 %72
    %v74 = vsel %vm70, %v67, 0.0
    %75 = vadd.xlane.f32.xlu0 %v74
    %v76 = vpop.xlane.xlu0 %75
    %v77 = vrcp.pop 32.0
    %v78 = vmul.f32 %v73, %v77
    %v79 = vmul.f32 %v76, %v77
    %v80 = vsub.f32 %v66, %v78
    %v81 = vsub.f32 %v67, %v79
    %v82 = vmul.f32 %v80, %v80
    %v83 = vmul.f32 %v81, %v81
    %v84 = vsel %vm70, %v82, 0.0
    %85 = vadd.xlane.f32.xlu0 %v84
    %v86 = vpop.xlane.xlu0 %85
    %v87 = vsel %vm70, %v83, 0.0
    %88 = vadd.xlane.f32.xlu0 %v87
    %v89 = vpop.xlane.xlu0 %88
    %v90 = vmul.f32 %v86, %v77
    %v91 = vmul.f32 %v89, %v77
    %v92 = vadd.f32 %v90, 1e-12
    %v93 = vadd.f32 %v91, 1e-12
    %v94 = vrsqrt.pop %v92
    %v95 = vrsqrt.pop %v93
    %v96 = vmul.f32 %v80, %v94
    %v97 = vmul.f32 %v81, %v95
    %v99 = vlaneseq
    %v100 = vshrl.u32 %v99, 7
    %v101 = vsub.s32 0, %v100
    %v102 = vrot.slane %v68, %v101
    %v104 = vmul.f32 %v96, %v102
    %v105 = vmul.f32 %v97, %v102
    %v107 = vlaneseq
    %v108 = vshrl.u32 %v107, 7
    %v109 = vsub.s32 0, %v108
    %v110 = vrot.slane %v69, %v109
    %v112 = vadd.f32 %v104, %v110
    %v113 = vadd.f32 %v105, %v110
    %v114 = vld [vmem:[%s1] sm:$0x1]
    %v115 = vld [vmem:[%s1 + $0x1] sm:$0x1]
    %v116 = vld [vmem:[%s4] sm:$0xff]
    %v117 = vld [vmem:[%s4 + $0x8] sm:$0xff]
    %v118 = vld [vmem:[%s4 + $0x10] sm:$0xff]
    %v119 = vld [vmem:[%s4 + $0x18] sm:$0xff]
    %v120 = vld [vmem:[%s5] sm:$0x1]
    %v122 = vlaneseq
    %v123 = vshrl.u32 %v122, 7
    %v124 = vsub.s32 0, %v123
    %v125 = vrot.slane %v120, %v124
    %v128 = vsel %vm70, %v112, 0
    %v131 = vsel %vm70, %v113, 0
    %133 = vmatprep.subr.mxu0 0.0
    %134 = vmatpush1.msra.mxu0 %v116
    %135 = vmatprep.subr.mxu0 0.0
    %136 = vmatpush1.msra.mxu0 %v117
    %137 = vmatprep.subr.mxu0 0.0
    %138 = vmatpush1.msra.mxu0 %v118
    %139 = vmatprep.subr.mxu0 0.0
    %140 = vmatpush1.msra.mxu0 %v119
    %141 = vmatprep.subr.mxu0 0.0
    %142 = vmatpush1.msra.mxu0 0.0
    %143 = vmatprep.subr.mxu0 0.0
    %144 = vmatpush1.msra.mxu0 0.0
    %145 = vmatprep.subr.mxu0 0.0
    %146 = vmatpush1.msra.mxu0 0.0
    %147 = vmatprep.subr.mxu0 0.0
    %148 = vmatpush1.msra.mxu0 0.0
    %149 = vmatprep.subr.mxu0 0.0
    %150 = vmatpush1.msra.mxu0 0.0
    %151 = vmatprep.subr.mxu0 0.0
    %152 = vmatpush1.msra.mxu0 0.0
    %153 = vmatprep.subr.mxu0 0.0
    %154 = vmatpush1.msra.mxu0 0.0
    %155 = vmatprep.subr.mxu0 0.0
    %156 = vmatpush1.msra.mxu0 0.0
    %157 = vmatprep.subr.mxu0 0.0
    %158 = vmatpush1.msra.mxu0 0.0
    %159 = vmatprep.subr.mxu0 0.0
    %160 = vmatpush1.msra.mxu0 0.0
    %161 = vmatprep.subr.mxu0 0.0
    %162 = vmatpush1.msra.mxu0 0.0
    %163 = vmatprep.subr.mxu0 0.0
    %164 = vmatpush1.msra.mxu0 0.0
    %165 = vmatprep.subr.mxu0 0.0
    %166 = vmatpush1.msra.mxu0 0.0
    %167 = vmatprep.subr.mxu0 0.0
    %168 = vmatpush1.msra.mxu0 0.0
    %169 = vmatprep.subr.mxu0 0.0
    %170 = vmatpush1.msra.mxu0 0.0
    %171 = vmatprep.subr.mxu0 0.0
    %172 = vmatpush1.msra.mxu0 0.0
    %173 = vmatprep.subr.mxu0 0.0
    %174 = vmatpush1.msra.mxu0 0.0
    %175 = vmatprep.subr.mxu0 0.0
    %176 = vmatpush1.msra.mxu0 0.0
    %177 = vmatprep.subr.mxu0 0.0
    %178 = vmatpush1.msra.mxu0 0.0
    %179 = vmatprep.subr.mxu0 0.0
    %180 = vmatpush1.msra.mxu0 0.0
    %181 = vmatprep.subr.mxu0 0.0
    %182 = vmatpush1.msra.mxu0 0.0
    %183 = vmatprep.subr.mxu0 0.0
    %184 = vmatpush1.msra.mxu0 0.0
    %185 = vmatprep.subr.mxu0 0.0
    %186 = vmatpush1.msra.mxu0 0.0
    %187 = vmatprep.subr.mxu0 0.0
    %188 = vmatpush1.msra.mxu0 0.0
    %189 = vmatprep.subr.mxu0 0.0
    %190 = vmatpush1.msra.mxu0 0.0
    %191 = vmatprep.subr.mxu0 0.0
    %192 = vmatpush1.msra.mxu0 0.0
    %193 = vmatprep.subr.mxu0 0.0
    %194 = vmatpush1.msra.mxu0 0.0
    %195 = vmatprep.subr.mxu0 0.0
    %196 = vmatpush1.msra.mxu0 0.0
    %197 = vmatprep.mubr.f32.mxu0 0.0
    %198 = vmatmul.mubr.f32.gmra.mrb[0].mxu0 %v128
    %v199 = vpop.f32.mrb[0].mxu0
    %v200 = vadd.f32 %v125, %v199
    %v201 = vpop.f32.mrb[0].mxu0
    %202 = vmatprep.mubr.f32.mxu0 0.0
    %203 = vmatmul.mubr.f32.gmra.mrb[0].mxu0 %v131
    %v204 = vpop.f32.mrb[0].mxu0
    %v205 = vadd.f32 %v125, %v204
    %v206 = vpop.f32.mrb[0].mxu0
    %207 = vdwg.mxu0
    %v208 = vld [vmem:[%s6] sm:$0xff]
    %v209 = vld [vmem:[%s6 + $0x8] sm:$0xff]
    %v210 = vld [vmem:[%s6 + $0x10] sm:$0xff]
    %v211 = vld [vmem:[%s6 + $0x18] sm:$0xff]
    %213 = vrot.lane.b32.xlu0 %v200, 96
    %v214 = vpop.permute.xlu0 %213
    %vm215 = vcmask 64512
    %v216 = vsel %vm215, %v200, 0
    %v218 = vsel %vm215, %v214, 0
    %220 = vmatprep.subr.mxu0 0.0
    %221 = vmatpush1.xpose.msra.mxu0 %v218
    %222 = vmatprep.subr.mxu0 0.0
    %223 = vmatpush1.xpose.msra.mxu0 0.0
    %224 = vmatprep.subr.mxu0 0.0
    %225 = vmatpush1.xpose.msra.mxu0 0.0
    %226 = vmatprep.subr.mxu0 0.0
    %227 = vmatpush1.xpose.msra.mxu0 0.0
    %228 = vmatprep.subr.mxu0 0.0
    %229 = vmatpush1.xpose.msra.mxu0 0.0
    %230 = vmatprep.subr.mxu0 0.0
    %231 = vmatpush1.xpose.msra.mxu0 0.0
    %232 = vmatprep.subr.mxu0 0.0
    %233 = vmatpush1.xpose.msra.mxu0 0.0
    %234 = vmatprep.subr.mxu0 0.0
    %235 = vmatpush1.xpose.msra.mxu0 0.0
    %236 = vmatprep.subr.mxu0 0.0
    %237 = vmatpush1.xpose.msra.mxu0 0.0
    %238 = vmatprep.subr.mxu0 0.0
    %239 = vmatpush1.xpose.msra.mxu0 0.0
    %240 = vmatprep.subr.mxu0 0.0
    %241 = vmatpush1.xpose.msra.mxu0 0.0
    %242 = vmatprep.subr.mxu0 0.0
    %243 = vmatpush1.xpose.msra.mxu0 0.0
    %244 = vmatprep.subr.mxu0 0.0
    %245 = vmatpush1.xpose.msra.mxu0 0.0
    %246 = vmatprep.subr.mxu0 0.0
    %247 = vmatpush1.xpose.msra.mxu0 0.0
    %248 = vmatprep.subr.mxu0 0.0
    %249 = vmatpush1.xpose.msra.mxu0 0.0
    %250 = vmatprep.subr.mxu0 0.0
    %251 = vmatpush1.xpose.msra.mxu0 0.0
    %252 = vmatprep.subr.mxu0 0.0
    %253 = vmatpush1.xpose.msra.mxu0 0.0
    %254 = vmatprep.subr.mxu0 0.0
    %255 = vmatpush1.xpose.msra.mxu0 0.0
    %256 = vmatprep.subr.mxu0 0.0
    %257 = vmatpush1.xpose.msra.mxu0 0.0
    %258 = vmatprep.subr.mxu0 0.0
    %259 = vmatpush1.xpose.msra.mxu0 0.0
    %260 = vmatprep.subr.mxu0 0.0
    %261 = vmatpush1.xpose.msra.mxu0 0.0
    %262 = vmatprep.subr.mxu0 0.0
    %263 = vmatpush1.xpose.msra.mxu0 0.0
    %264 = vmatprep.subr.mxu0 0.0
    %265 = vmatpush1.xpose.msra.mxu0 0.0
    %266 = vmatprep.subr.mxu0 0.0
    %267 = vmatpush1.xpose.msra.mxu0 0.0
    %268 = vmatprep.subr.mxu0 0.0
    %269 = vmatpush1.xpose.msra.mxu0 0.0
    %270 = vmatprep.subr.mxu0 0.0
    %271 = vmatpush1.xpose.msra.mxu0 0.0
    %272 = vmatprep.subr.mxu0 0.0
    %273 = vmatpush1.xpose.msra.mxu0 0.0
    %274 = vmatprep.subr.mxu0 0.0
    %275 = vmatpush1.xpose.msra.mxu0 0.0
    %276 = vmatprep.subr.mxu0 0.0
    %277 = vmatpush1.xpose.msra.mxu0 0.0
    %278 = vmatprep.subr.mxu0 0.0
    %279 = vmatpush1.xpose.msra.mxu0 0.0
    %280 = vmatprep.subr.mxu0 0.0
    %281 = vmatpush1.xpose.msra.mxu0 0.0
    %282 = vmatprep.subr.mxu0 0.0
    %283 = vmatpush1.xpose.msra.mxu0 0.0
    %284 = vmatprep.mubr.f32.mxu0 0.0
    %285 = vmatmul.mubr.f32.gmra.mrb[0].mxu0 %v216
    %v286 = vpop.f32.mrb[0].mxu0
    %v287 = vadd.f32 0.0, %v286
    %v288 = vpop.f32.mrb[0].mxu0
    %289 = vdwg.mxu0
    %291 = vrot.lane.b32.xlu0 %v205, 96
    %v292 = vpop.permute.xlu0 %291
    %v293 = vsel %vm215, %v205, 0
    %v295 = vsel %vm215, %v292, 0
    %297 = vmatprep.subr.mxu0 0.0
    %298 = vmatpush1.xpose.msra.mxu0 %v295
    %299 = vmatprep.subr.mxu0 0.0
    %300 = vmatpush1.xpose.msra.mxu0 0.0
    %301 = vmatprep.subr.mxu0 0.0
    %302 = vmatpush1.xpose.msra.mxu0 0.0
    %303 = vmatprep.subr.mxu0 0.0
    %304 = vmatpush1.xpose.msra.mxu0 0.0
    %305 = vmatprep.subr.mxu0 0.0
    %306 = vmatpush1.xpose.msra.mxu0 0.0
    %307 = vmatprep.subr.mxu0 0.0
    %308 = vmatpush1.xpose.msra.mxu0 0.0
    %309 = vmatprep.subr.mxu0 0.0
    %310 = vmatpush1.xpose.msra.mxu0 0.0
    %311 = vmatprep.subr.mxu0 0.0
    %312 = vmatpush1.xpose.msra.mxu0 0.0
    %313 = vmatprep.subr.mxu0 0.0
    %314 = vmatpush1.xpose.msra.mxu0 0.0
    %315 = vmatprep.subr.mxu0 0.0
    %316 = vmatpush1.xpose.msra.mxu0 0.0
    %317 = vmatprep.subr.mxu0 0.0
    %318 = vmatpush1.xpose.msra.mxu0 0.0
    %319 = vmatprep.subr.mxu0 0.0
    %320 = vmatpush1.xpose.msra.mxu0 0.0
    %321 = vmatprep.subr.mxu0 0.0
    %322 = vmatpush1.xpose.msra.mxu0 0.0
    %323 = vmatprep.subr.mxu0 0.0
    %324 = vmatpush1.xpose.msra.mxu0 0.0
    %325 = vmatprep.subr.mxu0 0.0
    %326 = vmatpush1.xpose.msra.mxu0 0.0
    %327 = vmatprep.subr.mxu0 0.0
    %328 = vmatpush1.xpose.msra.mxu0 0.0
    %329 = vmatprep.subr.mxu0 0.0
    %330 = vmatpush1.xpose.msra.mxu0 0.0
    %331 = vmatprep.subr.mxu0 0.0
    %332 = vmatpush1.xpose.msra.mxu0 0.0
    %333 = vmatprep.subr.mxu0 0.0
    %334 = vmatpush1.xpose.msra.mxu0 0.0
    %335 = vmatprep.subr.mxu0 0.0
    %336 = vmatpush1.xpose.msra.mxu0 0.0
    %337 = vmatprep.subr.mxu0 0.0
    %338 = vmatpush1.xpose.msra.mxu0 0.0
    %339 = vmatprep.subr.mxu0 0.0
    %340 = vmatpush1.xpose.msra.mxu0 0.0
    %341 = vmatprep.subr.mxu0 0.0
    %342 = vmatpush1.xpose.msra.mxu0 0.0
    %343 = vmatprep.subr.mxu0 0.0
    %344 = vmatpush1.xpose.msra.mxu0 0.0
    %345 = vmatprep.subr.mxu0 0.0
    %346 = vmatpush1.xpose.msra.mxu0 0.0
    %347 = vmatprep.subr.mxu0 0.0
    %348 = vmatpush1.xpose.msra.mxu0 0.0
    %349 = vmatprep.subr.mxu0 0.0
    %350 = vmatpush1.xpose.msra.mxu0 0.0
    %351 = vmatprep.subr.mxu0 0.0
    %352 = vmatpush1.xpose.msra.mxu0 0.0
    %353 = vmatprep.subr.mxu0 0.0
    %354 = vmatpush1.xpose.msra.mxu0 0.0
    %355 = vmatprep.subr.mxu0 0.0
    %356 = vmatpush1.xpose.msra.mxu0 0.0
    %357 = vmatprep.subr.mxu0 0.0
    %358 = vmatpush1.xpose.msra.mxu0 0.0
    %359 = vmatprep.subr.mxu0 0.0
    %360 = vmatpush1.xpose.msra.mxu0 0.0
    %361 = vmatprep.mubr.f32.mxu0 0.0
    %362 = vmatmul.mubr.f32.gmra.mrb[0].mxu0 %v293
    %v363 = vpop.f32.mrb[0].mxu0
    %v364 = vadd.f32 0.0, %v363
    %v365 = vpop.f32.mrb[0].mxu0
    %366 = vdwg.mxu0
    %v367 = vmul.f32 %v287, 0.35355338
    %v368 = vmul.f32 %v364, 0.35355338
    %v371 = vlaneseq
    %v372 = vshrl.u32 %v371, 7
    %v373 = vsub.s32 0, %v372
    %v374 = vrot.slane %v114, %v373
    %v375 = vlaneseq
    %v376 = vshrl.u32 %v375, 7
    %v377 = vsub.s32 0, %v376
    %v378 = vrot.slane %v115, %v377
    %v381 = vadd.f32 %v367, %v374
    %v382 = vadd.f32 %v368, %v378
    %v383 = vsel %vm215, %v381, -inf
    %384 = vmax.xlane.f32.xlu0 %v383
    %v385 = vpop.xlane.xlu0 %384
    %v386 = vsel %vm215, %v382, -inf
    %387 = vmax.xlane.f32.xlu0 %v386
    %v388 = vpop.xlane.xlu0 %387
    %v389 = vsub.f32 %v381, %v385
    %v390 = vsub.f32 %v382, %v388
    %v391 = vmul.f32 %v389, 1.442695
    %v392 = vpow.pop %v391
    %v393 = vmul.f32 %v390, 1.442695
    %v394 = vpow.pop %v393
    %v395 = vsel %vm215, %v392, 0.0
    %396 = vadd.xlane.f32.xlu0 %v395
    %v397 = vpop.xlane.xlu0 %396
    %v398 = vsel %vm215, %v394, 0.0
    %399 = vadd.xlane.f32.xlu0 %v398
    %v400 = vpop.xlane.xlu0 %399
    %v401 = vrcp.pop %v397
    %v402 = vrcp.pop %v400
    %v403 = vmul.f32 %v392, %v401
    %v404 = vmul.f32 %v394, %v402
    %405 = vrot.lane.b32.xlu0 %v200, 64
    %v406 = vpop.permute.xlu0 %405
    %v409 = vsel %vm215, %v403, 0
    %411 = vmatprep.subr.mxu0 0.0
    %412 = vmatpush1.msra.mxu0 %v406
    %413 = vmatprep.subr.mxu0 0.0
    %414 = vmatpush1.msra.mxu0 0.0
    %415 = vmatprep.subr.mxu0 0.0
    %416 = vmatpush1.msra.mxu0 0.0
    %417 = vmatprep.subr.mxu0 0.0
    %418 = vmatpush1.msra.mxu0 0.0
    %419 = vmatprep.subr.mxu0 0.0
    %420 = vmatpush1.msra.mxu0 0.0
    %421 = vmatprep.subr.mxu0 0.0
    %422 = vmatpush1.msra.mxu0 0.0
    %423 = vmatprep.subr.mxu0 0.0
    %424 = vmatpush1.msra.mxu0 0.0
    %425 = vmatprep.subr.mxu0 0.0
    %426 = vmatpush1.msra.mxu0 0.0
    %427 = vmatprep.subr.mxu0 0.0
    %428 = vmatpush1.msra.mxu0 0.0
    %429 = vmatprep.subr.mxu0 0.0
    %430 = vmatpush1.msra.mxu0 0.0
    %431 = vmatprep.subr.mxu0 0.0
    %432 = vmatpush1.msra.mxu0 0.0
    %433 = vmatprep.subr.mxu0 0.0
    %434 = vmatpush1.msra.mxu0 0.0
    %435 = vmatprep.subr.mxu0 0.0
    %436 = vmatpush1.msra.mxu0 0.0
    %437 = vmatprep.subr.mxu0 0.0
    %438 = vmatpush1.msra.mxu0 0.0
    %439 = vmatprep.subr.mxu0 0.0
    %440 = vmatpush1.msra.mxu0 0.0
    %441 = vmatprep.subr.mxu0 0.0
    %442 = vmatpush1.msra.mxu0 0.0
    %443 = vmatprep.subr.mxu0 0.0
    %444 = vmatpush1.msra.mxu0 0.0
    %445 = vmatprep.subr.mxu0 0.0
    %446 = vmatpush1.msra.mxu0 0.0
    %447 = vmatprep.subr.mxu0 0.0
    %448 = vmatpush1.msra.mxu0 0.0
    %449 = vmatprep.subr.mxu0 0.0
    %450 = vmatpush1.msra.mxu0 0.0
    %451 = vmatprep.subr.mxu0 0.0
    %452 = vmatpush1.msra.mxu0 0.0
    %453 = vmatprep.subr.mxu0 0.0
    %454 = vmatpush1.msra.mxu0 0.0
    %455 = vmatprep.subr.mxu0 0.0
    %456 = vmatpush1.msra.mxu0 0.0
    %457 = vmatprep.subr.mxu0 0.0
    %458 = vmatpush1.msra.mxu0 0.0
    %459 = vmatprep.subr.mxu0 0.0
    %460 = vmatpush1.msra.mxu0 0.0
    %461 = vmatprep.subr.mxu0 0.0
    %462 = vmatpush1.msra.mxu0 0.0
    %463 = vmatprep.subr.mxu0 0.0
    %464 = vmatpush1.msra.mxu0 0.0
    %465 = vmatprep.subr.mxu0 0.0
    %466 = vmatpush1.msra.mxu0 0.0
    %467 = vmatprep.subr.mxu0 0.0
    %468 = vmatpush1.msra.mxu0 0.0
    %469 = vmatprep.subr.mxu0 0.0
    %470 = vmatpush1.msra.mxu0 0.0
    %471 = vmatprep.subr.mxu0 0.0
    %472 = vmatpush1.msra.mxu0 0.0
    %473 = vmatprep.subr.mxu0 0.0
    %474 = vmatpush1.msra.mxu0 0.0
    %475 = vmatprep.mubr.f32.mxu0 0.0
    %476 = vmatmul.mubr.f32.gmra.mrb[0].mxu0 %v409
    %v477 = vpop.f32.mrb[0].mxu0
    %v478 = vadd.f32 0.0, %v477
    %v479 = vpop.f32.mrb[0].mxu0
    %480 = vdwg.mxu0
    %481 = vrot.lane.b32.xlu0 %v205, 64
    %v482 = vpop.permute.xlu0 %481
    %v485 = vsel %vm215, %v404, 0
    %487 = vmatprep.subr.mxu0 0.0
    %488 = vmatpush1.msra.mxu0 %v482
    %489 = vmatprep.subr.mxu0 0.0
    %490 = vmatpush1.msra.mxu0 0.0
    %491 = vmatprep.subr.mxu0 0.0
    %492 = vmatpush1.msra.mxu0 0.0
    %493 = vmatprep.subr.mxu0 0.0
    %494 = vmatpush1.msra.mxu0 0.0
    %495 = vmatprep.subr.mxu0 0.0
    %496 = vmatpush1.msra.mxu0 0.0
    %497 = vmatprep.subr.mxu0 0.0
    %498 = vmatpush1.msra.mxu0 0.0
    %499 = vmatprep.subr.mxu0 0.0
    %500 = vmatpush1.msra.mxu0 0.0
    %501 = vmatprep.subr.mxu0 0.0
    %502 = vmatpush1.msra.mxu0 0.0
    %503 = vmatprep.subr.mxu0 0.0
    %504 = vmatpush1.msra.mxu0 0.0
    %505 = vmatprep.subr.mxu0 0.0
    %506 = vmatpush1.msra.mxu0 0.0
    %507 = vmatprep.subr.mxu0 0.0
    %508 = vmatpush1.msra.mxu0 0.0
    %509 = vmatprep.subr.mxu0 0.0
    %510 = vmatpush1.msra.mxu0 0.0
    %511 = vmatprep.subr.mxu0 0.0
    %512 = vmatpush1.msra.mxu0 0.0
    %513 = vmatprep.subr.mxu0 0.0
    %514 = vmatpush1.msra.mxu0 0.0
    %515 = vmatprep.subr.mxu0 0.0
    %516 = vmatpush1.msra.mxu0 0.0
    %517 = vmatprep.subr.mxu0 0.0
    %518 = vmatpush1.msra.mxu0 0.0
    %519 = vmatprep.subr.mxu0 0.0
    %520 = vmatpush1.msra.mxu0 0.0
    %521 = vmatprep.subr.mxu0 0.0
    %522 = vmatpush1.msra.mxu0 0.0
    %523 = vmatprep.subr.mxu0 0.0
    %524 = vmatpush1.msra.mxu0 0.0
    %525 = vmatprep.subr.mxu0 0.0
    %526 = vmatpush1.msra.mxu0 0.0
    %527 = vmatprep.subr.mxu0 0.0
    %528 = vmatpush1.msra.mxu0 0.0
    %529 = vmatprep.subr.mxu0 0.0
    %530 = vmatpush1.msra.mxu0 0.0
    %531 = vmatprep.subr.mxu0 0.0
    %532 = vmatpush1.msra.mxu0 0.0
    %533 = vmatprep.subr.mxu0 0.0
    %534 = vmatpush1.msra.mxu0 0.0
    %535 = vmatprep.subr.mxu0 0.0
    %536 = vmatpush1.msra.mxu0 0.0
    %537 = vmatprep.subr.mxu0 0.0
    %538 = vmatpush1.msra.mxu0 0.0
    %539 = vmatprep.subr.mxu0 0.0
    %540 = vmatpush1.msra.mxu0 0.0
    %541 = vmatprep.subr.mxu0 0.0
    %542 = vmatpush1.msra.mxu0 0.0
    %543 = vmatprep.subr.mxu0 0.0
    %544 = vmatpush1.msra.mxu0 0.0
    %545 = vmatprep.subr.mxu0 0.0
    %546 = vmatpush1.msra.mxu0 0.0
    %547 = vmatprep.subr.mxu0 0.0
    %548 = vmatpush1.msra.mxu0 0.0
    %549 = vmatprep.subr.mxu0 0.0
    %550 = vmatpush1.msra.mxu0 0.0
    %551 = vmatprep.mubr.f32.mxu0 0.0
    %552 = vmatmul.mubr.f32.gmra.mrb[0].mxu0 %v485
    %v553 = vpop.f32.mrb[0].mxu0
    %v554 = vadd.f32 0.0, %v553
    %v555 = vpop.f32.mrb[0].mxu0
    %556 = vdwg.mxu0
    %557 = vrot.lane.b32.xlu0 %v200, 120
    %v558 = vpop.permute.xlu0 %557
    %559 = vrot.lane.b32.xlu0 %v200, 88
    %v560 = vpop.permute.xlu0 %559
    %v561 = vsel %vm215, %v558, 0
    %v563 = vsel %vm215, %v560, 0
    %565 = vmatprep.subr.mxu0 0.0
    %566 = vmatpush1.xpose.msra.mxu0 %v563
    %567 = vmatprep.subr.mxu0 0.0
    %568 = vmatpush1.xpose.msra.mxu0 0.0
    %569 = vmatprep.subr.mxu0 0.0
    %570 = vmatpush1.xpose.msra.mxu0 0.0
    %571 = vmatprep.subr.mxu0 0.0
    %572 = vmatpush1.xpose.msra.mxu0 0.0
    %573 = vmatprep.subr.mxu0 0.0
    %574 = vmatpush1.xpose.msra.mxu0 0.0
    %575 = vmatprep.subr.mxu0 0.0
    %576 = vmatpush1.xpose.msra.mxu0 0.0
    %577 = vmatprep.subr.mxu0 0.0
    %578 = vmatpush1.xpose.msra.mxu0 0.0
    %579 = vmatprep.subr.mxu0 0.0
    %580 = vmatpush1.xpose.msra.mxu0 0.0
    %581 = vmatprep.subr.mxu0 0.0
    %582 = vmatpush1.xpose.msra.mxu0 0.0
    %583 = vmatprep.subr.mxu0 0.0
    %584 = vmatpush1.xpose.msra.mxu0 0.0
    %585 = vmatprep.subr.mxu0 0.0
    %586 = vmatpush1.xpose.msra.mxu0 0.0
    %587 = vmatprep.subr.mxu0 0.0
    %588 = vmatpush1.xpose.msra.mxu0 0.0
    %589 = vmatprep.subr.mxu0 0.0
    %590 = vmatpush1.xpose.msra.mxu0 0.0
    %591 = vmatprep.subr.mxu0 0.0
    %592 = vmatpush1.xpose.msra.mxu0 0.0
    %593 = vmatprep.subr.mxu0 0.0
    %594 = vmatpush1.xpose.msra.mxu0 0.0
    %595 = vmatprep.subr.mxu0 0.0
    %596 = vmatpush1.xpose.msra.mxu0 0.0
    %597 = vmatprep.subr.mxu0 0.0
    %598 = vmatpush1.xpose.msra.mxu0 0.0
    %599 = vmatprep.subr.mxu0 0.0
    %600 = vmatpush1.xpose.msra.mxu0 0.0
    %601 = vmatprep.subr.mxu0 0.0
    %602 = vmatpush1.xpose.msra.mxu0 0.0
    %603 = vmatprep.subr.mxu0 0.0
    %604 = vmatpush1.xpose.msra.mxu0 0.0
    %605 = vmatprep.subr.mxu0 0.0
    %606 = vmatpush1.xpose.msra.mxu0 0.0
    %607 = vmatprep.subr.mxu0 0.0
    %608 = vmatpush1.xpose.msra.mxu0 0.0
    %609 = vmatprep.subr.mxu0 0.0
    %610 = vmatpush1.xpose.msra.mxu0 0.0
    %611 = vmatprep.subr.mxu0 0.0
    %612 = vmatpush1.xpose.msra.mxu0 0.0
    %613 = vmatprep.subr.mxu0 0.0
    %614 = vmatpush1.xpose.msra.mxu0 0.0
    %615 = vmatprep.subr.mxu0 0.0
    %616 = vmatpush1.xpose.msra.mxu0 0.0
    %617 = vmatprep.subr.mxu0 0.0
    %618 = vmatpush1.xpose.msra.mxu0 0.0
    %619 = vmatprep.subr.mxu0 0.0
    %620 = vmatpush1.xpose.msra.mxu0 0.0
    %621 = vmatprep.subr.mxu0 0.0
    %622 = vmatpush1.xpose.msra.mxu0 0.0
    %623 = vmatprep.subr.mxu0 0.0
    %624 = vmatpush1.xpose.msra.mxu0 0.0
    %625 = vmatprep.subr.mxu0 0.0
    %626 = vmatpush1.xpose.msra.mxu0 0.0
    %627 = vmatprep.subr.mxu0 0.0
    %628 = vmatpush1.xpose.msra.mxu0 0.0
    %629 = vmatprep.mubr.f32.mxu0 0.0
    %630 = vmatmul.mubr.f32.gmra.mrb[0].mxu0 %v561
    %v631 = vpop.f32.mrb[0].mxu0
    %v632 = vadd.f32 0.0, %v631
    %v633 = vpop.f32.mrb[0].mxu0
    %634 = vdwg.mxu0
    %635 = vrot.lane.b32.xlu0 %v205, 120
    %v636 = vpop.permute.xlu0 %635
    %637 = vrot.lane.b32.xlu0 %v205, 88
    %v638 = vpop.permute.xlu0 %637
    %v639 = vsel %vm215, %v636, 0
    %v641 = vsel %vm215, %v638, 0
    %643 = vmatprep.subr.mxu0 0.0
    %644 = vmatpush1.xpose.msra.mxu0 %v641
    %645 = vmatprep.subr.mxu0 0.0
    %646 = vmatpush1.xpose.msra.mxu0 0.0
    %647 = vmatprep.subr.mxu0 0.0
    %648 = vmatpush1.xpose.msra.mxu0 0.0
    %649 = vmatprep.subr.mxu0 0.0
    %650 = vmatpush1.xpose.msra.mxu0 0.0
    %651 = vmatprep.subr.mxu0 0.0
    %652 = vmatpush1.xpose.msra.mxu0 0.0
    %653 = vmatprep.subr.mxu0 0.0
    %654 = vmatpush1.xpose.msra.mxu0 0.0
    %655 = vmatprep.subr.mxu0 0.0
    %656 = vmatpush1.xpose.msra.mxu0 0.0
    %657 = vmatprep.subr.mxu0 0.0
    %658 = vmatpush1.xpose.msra.mxu0 0.0
    %659 = vmatprep.subr.mxu0 0.0
    %660 = vmatpush1.xpose.msra.mxu0 0.0
    %661 = vmatprep.subr.mxu0 0.0
    %662 = vmatpush1.xpose.msra.mxu0 0.0
    %663 = vmatprep.subr.mxu0 0.0
    %664 = vmatpush1.xpose.msra.mxu0 0.0
    %665 = vmatprep.subr.mxu0 0.0
    %666 = vmatpush1.xpose.msra.mxu0 0.0
    %667 = vmatprep.subr.mxu0 0.0
    %668 = vmatpush1.xpose.msra.mxu0 0.0
    %669 = vmatprep.subr.mxu0 0.0
    %670 = vmatpush1.xpose.msra.mxu0 0.0
    %671 = vmatprep.subr.mxu0 0.0
    %672 = vmatpush1.xpose.msra.mxu0 0.0
    %673 = vmatprep.subr.mxu0 0.0
    %674 = vmatpush1.xpose.msra.mxu0 0.0
    %675 = vmatprep.subr.mxu0 0.0
    %676 = vmatpush1.xpose.msra.mxu0 0.0
    %677 = vmatprep.subr.mxu0 0.0
    %678 = vmatpush1.xpose.msra.mxu0 0.0
    %679 = vmatprep.subr.mxu0 0.0
    %680 = vmatpush1.xpose.msra.mxu0 0.0
    %681 = vmatprep.subr.mxu0 0.0
    %682 = vmatpush1.xpose.msra.mxu0 0.0
    %683 = vmatprep.subr.mxu0 0.0
    %684 = vmatpush1.xpose.msra.mxu0 0.0
    %685 = vmatprep.subr.mxu0 0.0
    %686 = vmatpush1.xpose.msra.mxu0 0.0
    %687 = vmatprep.subr.mxu0 0.0
    %688 = vmatpush1.xpose.msra.mxu0 0.0
    %689 = vmatprep.subr.mxu0 0.0
    %690 = vmatpush1.xpose.msra.mxu0 0.0
    %691 = vmatprep.subr.mxu0 0.0
    %692 = vmatpush1.xpose.msra.mxu0 0.0
    %693 = vmatprep.subr.mxu0 0.0
    %694 = vmatpush1.xpose.msra.mxu0 0.0
    %695 = vmatprep.subr.mxu0 0.0
    %696 = vmatpush1.xpose.msra.mxu0 0.0
    %697 = vmatprep.subr.mxu0 0.0
    %698 = vmatpush1.xpose.msra.mxu0 0.0
    %699 = vmatprep.subr.mxu0 0.0
    %700 = vmatpush1.xpose.msra.mxu0 0.0
    %701 = vmatprep.subr.mxu0 0.0
    %702 = vmatpush1.xpose.msra.mxu0 0.0
    %703 = vmatprep.subr.mxu0 0.0
    %704 = vmatpush1.xpose.msra.mxu0 0.0
    %705 = vmatprep.subr.mxu0 0.0
    %706 = vmatpush1.xpose.msra.mxu0 0.0
    %707 = vmatprep.mubr.f32.mxu0 0.0
    %708 = vmatmul.mubr.f32.gmra.mrb[0].mxu0 %v639
    %v709 = vpop.f32.mrb[0].mxu0
    %v710 = vadd.f32 0.0, %v709
    %v711 = vpop.f32.mrb[0].mxu0
    %712 = vdwg.mxu0
    %v713 = vmul.f32 %v632, 0.35355338
    %v714 = vmul.f32 %v710, 0.35355338
    %v715 = vadd.f32 %v713, %v374
    %v716 = vadd.f32 %v714, %v378
    %v717 = vsel %vm215, %v715, -inf
    %718 = vmax.xlane.f32.xlu0 %v717
    %v719 = vpop.xlane.xlu0 %718
    %v720 = vsel %vm215, %v716, -inf
    %721 = vmax.xlane.f32.xlu0 %v720
    %v722 = vpop.xlane.xlu0 %721
    %v723 = vsub.f32 %v715, %v719
    %v724 = vsub.f32 %v716, %v722
    %v725 = vmul.f32 %v723, 1.442695
    %v726 = vpow.pop %v725
    %v727 = vmul.f32 %v724, 1.442695
    %v728 = vpow.pop %v727
    %v729 = vsel %vm215, %v726, 0.0
    %730 = vadd.xlane.f32.xlu0 %v729
    %v731 = vpop.xlane.xlu0 %730
    %v732 = vsel %vm215, %v728, 0.0
    %733 = vadd.xlane.f32.xlu0 %v732
    %v734 = vpop.xlane.xlu0 %733
    %v735 = vrcp.pop %v731
    %v736 = vrcp.pop %v734
    %v737 = vmul.f32 %v726, %v735
    %v738 = vmul.f32 %v728, %v736
    %739 = vrot.lane.b32.xlu0 %v200, 56
    %v740 = vpop.permute.xlu0 %739
    %v743 = vsel %vm215, %v737, 0
    %745 = vmatprep.subr.mxu0 0.0
    %746 = vmatpush1.msra.mxu0 %v740
    %747 = vmatprep.subr.mxu0 0.0
    %748 = vmatpush1.msra.mxu0 0.0
    %749 = vmatprep.subr.mxu0 0.0
    %750 = vmatpush1.msra.mxu0 0.0
    %751 = vmatprep.subr.mxu0 0.0
    %752 = vmatpush1.msra.mxu0 0.0
    %753 = vmatprep.subr.mxu0 0.0
    %754 = vmatpush1.msra.mxu0 0.0
    %755 = vmatprep.subr.mxu0 0.0
    %756 = vmatpush1.msra.mxu0 0.0
    %757 = vmatprep.subr.mxu0 0.0
    %758 = vmatpush1.msra.mxu0 0.0
    %759 = vmatprep.subr.mxu0 0.0
    %760 = vmatpush1.msra.mxu0 0.0
    %761 = vmatprep.subr.mxu0 0.0
    %762 = vmatpush1.msra.mxu0 0.0
    %763 = vmatprep.subr.mxu0 0.0
    %764 = vmatpush1.msra.mxu0 0.0
    %765 = vmatprep.subr.mxu0 0.0
    %766 = vmatpush1.msra.mxu0 0.0
    %767 = vmatprep.subr.mxu0 0.0
    %768 = vmatpush1.msra.mxu0 0.0
    %769 = vmatprep.subr.mxu0 0.0
    %770 = vmatpush1.msra.mxu0 0.0
    %771 = vmatprep.subr.mxu0 0.0
    %772 = vmatpush1.msra.mxu0 0.0
    %773 = vmatprep.subr.mxu0 0.0
    %774 = vmatpush1.msra.mxu0 0.0
    %775 = vmatprep.subr.mxu0 0.0
    %776 = vmatpush1.msra.mxu0 0.0
    %777 = vmatprep.subr.mxu0 0.0
    %778 = vmatpush1.msra.mxu0 0.0
    %779 = vmatprep.subr.mxu0 0.0
    %780 = vmatpush1.msra.mxu0 0.0
    %781 = vmatprep.subr.mxu0 0.0
    %782 = vmatpush1.msra.mxu0 0.0
    %783 = vmatprep.subr.mxu0 0.0
    %784 = vmatpush1.msra.mxu0 0.0
    %785 = vmatprep.subr.mxu0 0.0
    %786 = vmatpush1.msra.mxu0 0.0
    %787 = vmatprep.subr.mxu0 0.0
    %788 = vmatpush1.msra.mxu0 0.0
    %789 = vmatprep.subr.mxu0 0.0
    %790 = vmatpush1.msra.mxu0 0.0
    %791 = vmatprep.subr.mxu0 0.0
    %792 = vmatpush1.msra.mxu0 0.0
    %793 = vmatprep.subr.mxu0 0.0
    %794 = vmatpush1.msra.mxu0 0.0
    %795 = vmatprep.subr.mxu0 0.0
    %796 = vmatpush1.msra.mxu0 0.0
    %797 = vmatprep.subr.mxu0 0.0
    %798 = vmatpush1.msra.mxu0 0.0
    %799 = vmatprep.subr.mxu0 0.0
    %800 = vmatpush1.msra.mxu0 0.0
    %801 = vmatprep.subr.mxu0 0.0
    %802 = vmatpush1.msra.mxu0 0.0
    %803 = vmatprep.subr.mxu0 0.0
    %804 = vmatpush1.msra.mxu0 0.0
    %805 = vmatprep.subr.mxu0 0.0
    %806 = vmatpush1.msra.mxu0 0.0
    %807 = vmatprep.subr.mxu0 0.0
    %808 = vmatpush1.msra.mxu0 0.0
    %809 = vmatprep.mubr.f32.mxu0 0.0
    %810 = vmatmul.mubr.f32.gmra.mrb[0].mxu0 %v743
    %v811 = vpop.f32.mrb[0].mxu0
    %v812 = vadd.f32 0.0, %v811
    %v813 = vpop.f32.mrb[0].mxu0
    %814 = vdwg.mxu0
    %815 = vrot.lane.b32.xlu0 %v205, 56
    %v816 = vpop.permute.xlu0 %815
    %v819 = vsel %vm215, %v738, 0
    %821 = vmatprep.subr.mxu0 0.0
    %822 = vmatpush1.msra.mxu0 %v816
    %823 = vmatprep.subr.mxu0 0.0
    %824 = vmatpush1.msra.mxu0 0.0
    %825 = vmatprep.subr.mxu0 0.0
    %826 = vmatpush1.msra.mxu0 0.0
    %827 = vmatprep.subr.mxu0 0.0
    %828 = vmatpush1.msra.mxu0 0.0
    %829 = vmatprep.subr.mxu0 0.0
    %830 = vmatpush1.msra.mxu0 0.0
    %831 = vmatprep.subr.mxu0 0.0
    %832 = vmatpush1.msra.mxu0 0.0
    %833 = vmatprep.subr.mxu0 0.0
    %834 = vmatpush1.msra.mxu0 0.0
    %835 = vmatprep.subr.mxu0 0.0
    %836 = vmatpush1.msra.mxu0 0.0
    %837 = vmatprep.subr.mxu0 0.0
    %838 = vmatpush1.msra.mxu0 0.0
    %839 = vmatprep.subr.mxu0 0.0
    %840 = vmatpush1.msra.mxu0 0.0
    %841 = vmatprep.subr.mxu0 0.0
    %842 = vmatpush1.msra.mxu0 0.0
    %843 = vmatprep.subr.mxu0 0.0
    %844 = vmatpush1.msra.mxu0 0.0
    %845 = vmatprep.subr.mxu0 0.0
    %846 = vmatpush1.msra.mxu0 0.0
    %847 = vmatprep.subr.mxu0 0.0
    %848 = vmatpush1.msra.mxu0 0.0
    %849 = vmatprep.subr.mxu0 0.0
    %850 = vmatpush1.msra.mxu0 0.0
    %851 = vmatprep.subr.mxu0 0.0
    %852 = vmatpush1.msra.mxu0 0.0
    %853 = vmatprep.subr.mxu0 0.0
    %854 = vmatpush1.msra.mxu0 0.0
    %855 = vmatprep.subr.mxu0 0.0
    %856 = vmatpush1.msra.mxu0 0.0
    %857 = vmatprep.subr.mxu0 0.0
    %858 = vmatpush1.msra.mxu0 0.0
    %859 = vmatprep.subr.mxu0 0.0
    %860 = vmatpush1.msra.mxu0 0.0
    %861 = vmatprep.subr.mxu0 0.0
    %862 = vmatpush1.msra.mxu0 0.0
    %863 = vmatprep.subr.mxu0 0.0
    %864 = vmatpush1.msra.mxu0 0.0
    %865 = vmatprep.subr.mxu0 0.0
    %866 = vmatpush1.msra.mxu0 0.0
    %867 = vmatprep.subr.mxu0 0.0
    %868 = vmatpush1.msra.mxu0 0.0
    %869 = vmatprep.subr.mxu0 0.0
    %870 = vmatpush1.msra.mxu0 0.0
    %871 = vmatprep.subr.mxu0 0.0
    %872 = vmatpush1.msra.mxu0 0.0
    %873 = vmatprep.subr.mxu0 0.0
    %874 = vmatpush1.msra.mxu0 0.0
    %875 = vmatprep.subr.mxu0 0.0
    %876 = vmatpush1.msra.mxu0 0.0
    %877 = vmatprep.subr.mxu0 0.0
    %878 = vmatpush1.msra.mxu0 0.0
    %879 = vmatprep.subr.mxu0 0.0
    %880 = vmatpush1.msra.mxu0 0.0
    %881 = vmatprep.subr.mxu0 0.0
    %882 = vmatpush1.msra.mxu0 0.0
    %883 = vmatprep.subr.mxu0 0.0
    %884 = vmatpush1.msra.mxu0 0.0
    %885 = vmatprep.mubr.f32.mxu0 0.0
    %886 = vmatmul.mubr.f32.gmra.mrb[0].mxu0 %v819
    %v887 = vpop.f32.mrb[0].mxu0
    %v888 = vadd.f32 0.0, %v887
    %v889 = vpop.f32.mrb[0].mxu0
    %890 = vdwg.mxu0
    %v892 = vsel %vm215, %v812, 0
    %v895 = vsel %vm215, %v888, 0
    %897 = vmatprep.subr.mxu0 0.0
    %898 = vmatpush1.msra.mxu0 %v209
    %899 = vmatprep.subr.mxu0 0.0
    %900 = vmatpush1.msra.mxu0 0.0
    %901 = vmatprep.subr.mxu0 0.0
    %902 = vmatpush1.msra.mxu0 0.0
    %903 = vmatprep.subr.mxu0 0.0
    %904 = vmatpush1.msra.mxu0 0.0
    %905 = vmatprep.subr.mxu0 0.0
    %906 = vmatpush1.msra.mxu0 0.0
    %907 = vmatprep.subr.mxu0 0.0
    %908 = vmatpush1.msra.mxu0 0.0
    %909 = vmatprep.subr.mxu0 0.0
    %910 = vmatpush1.msra.mxu0 0.0
    %911 = vmatprep.subr.mxu0 0.0
    %912 = vmatpush1.msra.mxu0 0.0
    %913 = vmatprep.subr.mxu0 0.0
    %914 = vmatpush1.msra.mxu0 0.0
    %915 = vmatprep.subr.mxu0 0.0
    %916 = vmatpush1.msra.mxu0 0.0
    %917 = vmatprep.subr.mxu0 0.0
    %918 = vmatpush1.msra.mxu0 0.0
    %919 = vmatprep.subr.mxu0 0.0
    %920 = vmatpush1.msra.mxu0 0.0
    %921 = vmatprep.subr.mxu0 0.0
    %922 = vmatpush1.msra.mxu0 0.0
    %923 = vmatprep.subr.mxu0 0.0
    %924 = vmatpush1.msra.mxu0 0.0
    %925 = vmatprep.subr.mxu0 0.0
    %926 = vmatpush1.msra.mxu0 0.0
    %927 = vmatprep.subr.mxu0 0.0
    %928 = vmatpush1.msra.mxu0 0.0
    %929 = vmatprep.subr.mxu0 0.0
    %930 = vmatpush1.msra.mxu0 0.0
    %931 = vmatprep.subr.mxu0 0.0
    %932 = vmatpush1.msra.mxu0 0.0
    %933 = vmatprep.subr.mxu0 0.0
    %934 = vmatpush1.msra.mxu0 0.0
    %935 = vmatprep.subr.mxu0 0.0
    %936 = vmatpush1.msra.mxu0 0.0
    %937 = vmatprep.subr.mxu0 0.0
    %938 = vmatpush1.msra.mxu0 0.0
    %939 = vmatprep.subr.mxu0 0.0
    %940 = vmatpush1.msra.mxu0 0.0
    %941 = vmatprep.subr.mxu0 0.0
    %942 = vmatpush1.msra.mxu0 0.0
    %943 = vmatprep.subr.mxu0 0.0
    %944 = vmatpush1.msra.mxu0 0.0
    %945 = vmatprep.subr.mxu0 0.0
    %946 = vmatpush1.msra.mxu0 0.0
    %947 = vmatprep.subr.mxu0 0.0
    %948 = vmatpush1.msra.mxu0 0.0
    %949 = vmatprep.subr.mxu0 0.0
    %950 = vmatpush1.msra.mxu0 0.0
    %951 = vmatprep.subr.mxu0 0.0
    %952 = vmatpush1.msra.mxu0 0.0
    %953 = vmatprep.subr.mxu0 0.0
    %954 = vmatpush1.msra.mxu0 0.0
    %955 = vmatprep.subr.mxu0 0.0
    %956 = vmatpush1.msra.mxu0 0.0
    %957 = vmatprep.subr.mxu0 0.0
    %958 = vmatpush1.msra.mxu0 0.0
    %959 = vmatprep.subr.mxu0 0.0
    %960 = vmatpush1.msra.mxu0 0.0
    %961 = vmatprep.mubr.f32.mxu0 0.0
    %962 = vmatmul.mubr.f32.gmra.mrb[0].mxu0 %v892
    %v963 = vpop.f32.mrb[0].mxu0
    %v964 = vadd.f32 0.0, %v963
    %v965 = vpop.f32.mrb[0].mxu0
    %966 = vmatprep.mubr.f32.mxu0 0.0
    %967 = vmatmul.mubr.f32.gmra.mrb[0].mxu0 %v895
    %v968 = vpop.f32.mrb[0].mxu0
    %v969 = vadd.f32 0.0, %v968
    %v970 = vpop.f32.mrb[0].mxu0
    %971 = vdwg.mxu0
    %v973 = vsel %vm215, %v478, 0
    %v976 = vsel %vm215, %v554, 0
    %978 = vmatprep.subr.mxu0 0.0
    %979 = vmatpush1.msra.mxu0 %v208
    %980 = vmatprep.subr.mxu0 0.0
    %981 = vmatpush1.msra.mxu0 0.0
    %982 = vmatprep.subr.mxu0 0.0
    %983 = vmatpush1.msra.mxu0 0.0
    %984 = vmatprep.subr.mxu0 0.0
    %985 = vmatpush1.msra.mxu0 0.0
    %986 = vmatprep.subr.mxu0 0.0
    %987 = vmatpush1.msra.mxu0 0.0
    %988 = vmatprep.subr.mxu0 0.0
    %989 = vmatpush1.msra.mxu0 0.0
    %990 = vmatprep.subr.mxu0 0.0
    %991 = vmatpush1.msra.mxu0 0.0
    %992 = vmatprep.subr.mxu0 0.0
    %993 = vmatpush1.msra.mxu0 0.0
    %994 = vmatprep.subr.mxu0 0.0
    %995 = vmatpush1.msra.mxu0 0.0
    %996 = vmatprep.subr.mxu0 0.0
    %997 = vmatpush1.msra.mxu0 0.0
    %998 = vmatprep.subr.mxu0 0.0
    %999 = vmatpush1.msra.mxu0 0.0
    %1000 = vmatprep.subr.mxu0 0.0
    %1001 = vmatpush1.msra.mxu0 0.0
    %1002 = vmatprep.subr.mxu0 0.0
    %1003 = vmatpush1.msra.mxu0 0.0
    %1004 = vmatprep.subr.mxu0 0.0
    %1005 = vmatpush1.msra.mxu0 0.0
    %1006 = vmatprep.subr.mxu0 0.0
    %1007 = vmatpush1.msra.mxu0 0.0
    %1008 = vmatprep.subr.mxu0 0.0
    %1009 = vmatpush1.msra.mxu0 0.0
    %1010 = vmatprep.subr.mxu0 0.0
    %1011 = vmatpush1.msra.mxu0 0.0
    %1012 = vmatprep.subr.mxu0 0.0
    %1013 = vmatpush1.msra.mxu0 0.0
    %1014 = vmatprep.subr.mxu0 0.0
    %1015 = vmatpush1.msra.mxu0 0.0
    %1016 = vmatprep.subr.mxu0 0.0
    %1017 = vmatpush1.msra.mxu0 0.0
    %1018 = vmatprep.subr.mxu0 0.0
    %1019 = vmatpush1.msra.mxu0 0.0
    %1020 = vmatprep.subr.mxu0 0.0
    %1021 = vmatpush1.msra.mxu0 0.0
    %1022 = vmatprep.subr.mxu0 0.0
    %1023 = vmatpush1.msra.mxu0 0.0
    %1024 = vmatprep.subr.mxu0 0.0
    %1025 = vmatpush1.msra.mxu0 0.0
    %1026 = vmatprep.subr.mxu0 0.0
    %1027 = vmatpush1.msra.mxu0 0.0
    %1028 = vmatprep.subr.mxu0 0.0
    %1029 = vmatpush1.msra.mxu0 0.0
    %1030 = vmatprep.subr.mxu0 0.0
    %1031 = vmatpush1.msra.mxu0 0.0
    %1032 = vmatprep.subr.mxu0 0.0
    %1033 = vmatpush1.msra.mxu0 0.0
    %1034 = vmatprep.subr.mxu0 0.0
    %1035 = vmatpush1.msra.mxu0 0.0
    %1036 = vmatprep.subr.mxu0 0.0
    %1037 = vmatpush1.msra.mxu0 0.0
    %1038 = vmatprep.subr.mxu0 0.0
    %1039 = vmatpush1.msra.mxu0 0.0
    %1040 = vmatprep.subr.mxu0 0.0
    %1041 = vmatpush1.msra.mxu0 0.0
    %1042 = vmatprep.mubr.f32.mxu0 0.0
    %1043 = vmatmul.mubr.f32.gmra.mrb[0].mxu0 %v973
    %v1044 = vpop.f32.mrb[0].mxu0
    %v1045 = vadd.f32 %v964, %v1044
    %v1046 = vpop.f32.mrb[0].mxu0
    %1047 = vmatprep.mubr.f32.mxu0 0.0
    %1048 = vmatmul.mubr.f32.gmra.mrb[0].mxu0 %v976
    %v1049 = vpop.f32.mrb[0].mxu0
    %v1050 = vadd.f32 %v969, %v1049
    %v1051 = vpop.f32.mrb[0].mxu0
    %1052 = vdwg.mxu0
    %1053 = vrot.lane.b32.xlu0 %v200, 112
    %v1054 = vpop.permute.xlu0 %1053
    %1055 = vrot.lane.b32.xlu0 %v200, 80
    %v1056 = vpop.permute.xlu0 %1055
    %v1057 = vsel %vm215, %v1054, 0
    %v1059 = vsel %vm215, %v1056, 0
    %1061 = vmatprep.subr.mxu0 0.0
    %1062 = vmatpush1.xpose.msra.mxu0 %v1059
    %1063 = vmatprep.subr.mxu0 0.0
    %1064 = vmatpush1.xpose.msra.mxu0 0.0
    %1065 = vmatprep.subr.mxu0 0.0
    %1066 = vmatpush1.xpose.msra.mxu0 0.0
    %1067 = vmatprep.subr.mxu0 0.0
    %1068 = vmatpush1.xpose.msra.mxu0 0.0
    %1069 = vmatprep.subr.mxu0 0.0
    %1070 = vmatpush1.xpose.msra.mxu0 0.0
    %1071 = vmatprep.subr.mxu0 0.0
    %1072 = vmatpush1.xpose.msra.mxu0 0.0
    %1073 = vmatprep.subr.mxu0 0.0
    %1074 = vmatpush1.xpose.msra.mxu0 0.0
    %1075 = vmatprep.subr.mxu0 0.0
    %1076 = vmatpush1.xpose.msra.mxu0 0.0
    %1077 = vmatprep.subr.mxu0 0.0
    %1078 = vmatpush1.xpose.msra.mxu0 0.0
    %1079 = vmatprep.subr.mxu0 0.0
    %1080 = vmatpush1.xpose.msra.mxu0 0.0
    %1081 = vmatprep.subr.mxu0 0.0
    %1082 = vmatpush1.xpose.msra.mxu0 0.0
    %1083 = vmatprep.subr.mxu0 0.0
    %1084 = vmatpush1.xpose.msra.mxu0 0.0
    %1085 = vmatprep.subr.mxu0 0.0
    %1086 = vmatpush1.xpose.msra.mxu0 0.0
    %1087 = vmatprep.subr.mxu0 0.0
    %1088 = vmatpush1.xpose.msra.mxu0 0.0
    %1089 = vmatprep.subr.mxu0 0.0
    %1090 = vmatpush1.xpose.msra.mxu0 0.0
    %1091 = vmatprep.subr.mxu0 0.0
    %1092 = vmatpush1.xpose.msra.mxu0 0.0
    %1093 = vmatprep.subr.mxu0 0.0
    %1094 = vmatpush1.xpose.msra.mxu0 0.0
    %1095 = vmatprep.subr.mxu0 0.0
    %1096 = vmatpush1.xpose.msra.mxu0 0.0
    %1097 = vmatprep.subr.mxu0 0.0
    %1098 = vmatpush1.xpose.msra.mxu0 0.0
    %1099 = vmatprep.subr.mxu0 0.0
    %1100 = vmatpush1.xpose.msra.mxu0 0.0
    %1101 = vmatprep.subr.mxu0 0.0
    %1102 = vmatpush1.xpose.msra.mxu0 0.0
    %1103 = vmatprep.subr.mxu0 0.0
    %1104 = vmatpush1.xpose.msra.mxu0 0.0
    %1105 = vmatprep.subr.mxu0 0.0
    %1106 = vmatpush1.xpose.msra.mxu0 0.0
    %1107 = vmatprep.subr.mxu0 0.0
    %1108 = vmatpush1.xpose.msra.mxu0 0.0
    %1109 = vmatprep.subr.mxu0 0.0
    %1110 = vmatpush1.xpose.msra.mxu0 0.0
    %1111 = vmatprep.subr.mxu0 0.0
    %1112 = vmatpush1.xpose.msra.mxu0 0.0
    %1113 = vmatprep.subr.mxu0 0.0
    %1114 = vmatpush1.xpose.msra.mxu0 0.0
    %1115 = vmatprep.subr.mxu0 0.0
    %1116 = vmatpush1.xpose.msra.mxu0 0.0
    %1117 = vmatprep.subr.mxu0 0.0
    %1118 = vmatpush1.xpose.msra.mxu0 0.0
    %1119 = vmatprep.subr.mxu0 0.0
    %1120 = vmatpush1.xpose.msra.mxu0 0.0
    %1121 = vmatprep.subr.mxu0 0.0
    %1122 = vmatpush1.xpose.msra.mxu0 0.0
    %1123 = vmatprep.subr.mxu0 0.0
    %1124 = vmatpush1.xpose.msra.mxu0 0.0
    %1125 = vmatprep.mubr.f32.mxu0 0.0
    %1126 = vmatmul.mubr.f32.gmra.mrb[0].mxu0 %v1057
    %v1127 = vpop.f32.mrb[0].mxu0
    %v1128 = vadd.f32 0.0, %v1127
    %v1129 = vpop.f32.mrb[0].mxu0
    %1130 = vdwg.mxu0
    %1131 = vrot.lane.b32.xlu0 %v205, 112
    %v1132 = vpop.permute.xlu0 %1131
    %1133 = vrot.lane.b32.xlu0 %v205, 80
    %v1134 = vpop.permute.xlu0 %1133
    %v1135 = vsel %vm215, %v1132, 0
    %v1137 = vsel %vm215, %v1134, 0
    %1139 = vmatprep.subr.mxu0 0.0
    %1140 = vmatpush1.xpose.msra.mxu0 %v1137
    %1141 = vmatprep.subr.mxu0 0.0
    %1142 = vmatpush1.xpose.msra.mxu0 0.0
    %1143 = vmatprep.subr.mxu0 0.0
    %1144 = vmatpush1.xpose.msra.mxu0 0.0
    %1145 = vmatprep.subr.mxu0 0.0
    %1146 = vmatpush1.xpose.msra.mxu0 0.0
    %1147 = vmatprep.subr.mxu0 0.0
    %1148 = vmatpush1.xpose.msra.mxu0 0.0
    %1149 = vmatprep.subr.mxu0 0.0
    %1150 = vmatpush1.xpose.msra.mxu0 0.0
    %1151 = vmatprep.subr.mxu0 0.0
    %1152 = vmatpush1.xpose.msra.mxu0 0.0
    %1153 = vmatprep.subr.mxu0 0.0
    %1154 = vmatpush1.xpose.msra.mxu0 0.0
    %1155 = vmatprep.subr.mxu0 0.0
    %1156 = vmatpush1.xpose.msra.mxu0 0.0
    %1157 = vmatprep.subr.mxu0 0.0
    %1158 = vmatpush1.xpose.msra.mxu0 0.0
    %1159 = vmatprep.subr.mxu0 0.0
    %1160 = vmatpush1.xpose.msra.mxu0 0.0
    %1161 = vmatprep.subr.mxu0 0.0
    %1162 = vmatpush1.xpose.msra.mxu0 0.0
    %1163 = vmatprep.subr.mxu0 0.0
    %1164 = vmatpush1.xpose.msra.mxu0 0.0
    %1165 = vmatprep.subr.mxu0 0.0
    %1166 = vmatpush1.xpose.msra.mxu0 0.0
    %1167 = vmatprep.subr.mxu0 0.0
    %1168 = vmatpush1.xpose.msra.mxu0 0.0
    %1169 = vmatprep.subr.mxu0 0.0
    %1170 = vmatpush1.xpose.msra.mxu0 0.0
    %1171 = vmatprep.subr.mxu0 0.0
    %1172 = vmatpush1.xpose.msra.mxu0 0.0
    %1173 = vmatprep.subr.mxu0 0.0
    %1174 = vmatpush1.xpose.msra.mxu0 0.0
    %1175 = vmatprep.subr.mxu0 0.0
    %1176 = vmatpush1.xpose.msra.mxu0 0.0
    %1177 = vmatprep.subr.mxu0 0.0
    %1178 = vmatpush1.xpose.msra.mxu0 0.0
    %1179 = vmatprep.subr.mxu0 0.0
    %1180 = vmatpush1.xpose.msra.mxu0 0.0
    %1181 = vmatprep.subr.mxu0 0.0
    %1182 = vmatpush1.xpose.msra.mxu0 0.0
    %1183 = vmatprep.subr.mxu0 0.0
    %1184 = vmatpush1.xpose.msra.mxu0 0.0
    %1185 = vmatprep.subr.mxu0 0.0
    %1186 = vmatpush1.xpose.msra.mxu0 0.0
    %1187 = vmatprep.subr.mxu0 0.0
    %1188 = vmatpush1.xpose.msra.mxu0 0.0
    %1189 = vmatprep.subr.mxu0 0.0
    %1190 = vmatpush1.xpose.msra.mxu0 0.0
    %1191 = vmatprep.subr.mxu0 0.0
    %1192 = vmatpush1.xpose.msra.mxu0 0.0
    %1193 = vmatprep.subr.mxu0 0.0
    %1194 = vmatpush1.xpose.msra.mxu0 0.0
    %1195 = vmatprep.subr.mxu0 0.0
    %1196 = vmatpush1.xpose.msra.mxu0 0.0
    %1197 = vmatprep.subr.mxu0 0.0
    %1198 = vmatpush1.xpose.msra.mxu0 0.0
    %1199 = vmatprep.subr.mxu0 0.0
    %1200 = vmatpush1.xpose.msra.mxu0 0.0
    %1201 = vmatprep.subr.mxu0 0.0
    %1202 = vmatpush1.xpose.msra.mxu0 0.0
    %1203 = vmatprep.mubr.f32.mxu0 0.0
    %1204 = vmatmul.mubr.f32.gmra.mrb[0].mxu0 %v1135
    %v1205 = vpop.f32.mrb[0].mxu0
    %v1206 = vadd.f32 0.0, %v1205
    %v1207 = vpop.f32.mrb[0].mxu0
    %1208 = vdwg.mxu0
    %v1209 = vmul.f32 %v1128, 0.35355338
    %v1210 = vmul.f32 %v1206, 0.35355338
    %v1211 = vadd.f32 %v1209, %v374
    %v1212 = vadd.f32 %v1210, %v378
    %v1213 = vsel %vm215, %v1211, -inf
    %1214 = vmax.xlane.f32.xlu0 %v1213
    %v1215 = vpop.xlane.xlu0 %1214
    %v1216 = vsel %vm215, %v1212, -inf
    %1217 = vmax.xlane.f32.xlu0 %v1216
    %v1218 = vpop.xlane.xlu0 %1217
    %v1219 = vsub.f32 %v1211, %v1215
    %v1220 = vsub.f32 %v1212, %v1218
    %v1221 = vmul.f32 %v1219, 1.442695
    %v1222 = vpow.pop %v1221
    %v1223 = vmul.f32 %v1220, 1.442695
    %v1224 = vpow.pop %v1223
    %v1225 = vsel %vm215, %v1222, 0.0
    %1226 = vadd.xlane.f32.xlu0 %v1225
    %v1227 = vpop.xlane.xlu0 %1226
    %v1228 = vsel %vm215, %v1224, 0.0
    %1229 = vadd.xlane.f32.xlu0 %v1228
    %v1230 = vpop.xlane.xlu0 %1229
    %v1231 = vrcp.pop %v1227
    %v1232 = vrcp.pop %v1230
    %v1233 = vmul.f32 %v1222, %v1231
    %v1234 = vmul.f32 %v1224, %v1232
    %1235 = vrot.lane.b32.xlu0 %v200, 48
    %v1236 = vpop.permute.xlu0 %1235
    %v1239 = vsel %vm215, %v1233, 0
    %1241 = vmatprep.subr.mxu0 0.0
    %1242 = vmatpush1.msra.mxu0 %v1236
    %1243 = vmatprep.subr.mxu0 0.0
    %1244 = vmatpush1.msra.mxu0 0.0
    %1245 = vmatprep.subr.mxu0 0.0
    %1246 = vmatpush1.msra.mxu0 0.0
    %1247 = vmatprep.subr.mxu0 0.0
    %1248 = vmatpush1.msra.mxu0 0.0
    %1249 = vmatprep.subr.mxu0 0.0
    %1250 = vmatpush1.msra.mxu0 0.0
    %1251 = vmatprep.subr.mxu0 0.0
    %1252 = vmatpush1.msra.mxu0 0.0
    %1253 = vmatprep.subr.mxu0 0.0
    %1254 = vmatpush1.msra.mxu0 0.0
    %1255 = vmatprep.subr.mxu0 0.0
    %1256 = vmatpush1.msra.mxu0 0.0
    %1257 = vmatprep.subr.mxu0 0.0
    %1258 = vmatpush1.msra.mxu0 0.0
    %1259 = vmatprep.subr.mxu0 0.0
    %1260 = vmatpush1.msra.mxu0 0.0
    %1261 = vmatprep.subr.mxu0 0.0
    %1262 = vmatpush1.msra.mxu0 0.0
    %1263 = vmatprep.subr.mxu0 0.0
    %1264 = vmatpush1.msra.mxu0 0.0
    %1265 = vmatprep.subr.mxu0 0.0
    %1266 = vmatpush1.msra.mxu0 0.0
    %1267 = vmatprep.subr.mxu0 0.0
    %1268 = vmatpush1.msra.mxu0 0.0
    %1269 = vmatprep.subr.mxu0 0.0
    %1270 = vmatpush1.msra.mxu0 0.0
    %1271 = vmatprep.subr.mxu0 0.0
    %1272 = vmatpush1.msra.mxu0 0.0
    %1273 = vmatprep.subr.mxu0 0.0
    %1274 = vmatpush1.msra.mxu0 0.0
    %1275 = vmatprep.subr.mxu0 0.0
    %1276 = vmatpush1.msra.mxu0 0.0
    %1277 = vmatprep.subr.mxu0 0.0
    %1278 = vmatpush1.msra.mxu0 0.0
    %1279 = vmatprep.subr.mxu0 0.0
    %1280 = vmatpush1.msra.mxu0 0.0
    %1281 = vmatprep.subr.mxu0 0.0
    %1282 = vmatpush1.msra.mxu0 0.0
    %1283 = vmatprep.subr.mxu0 0.0
    %1284 = vmatpush1.msra.mxu0 0.0
    %1285 = vmatprep.subr.mxu0 0.0
    %1286 = vmatpush1.msra.mxu0 0.0
    %1287 = vmatprep.subr.mxu0 0.0
    %1288 = vmatpush1.msra.mxu0 0.0
    %1289 = vmatprep.subr.mxu0 0.0
    %1290 = vmatpush1.msra.mxu0 0.0
    %1291 = vmatprep.subr.mxu0 0.0
    %1292 = vmatpush1.msra.mxu0 0.0
    %1293 = vmatprep.subr.mxu0 0.0
    %1294 = vmatpush1.msra.mxu0 0.0
    %1295 = vmatprep.subr.mxu0 0.0
    %1296 = vmatpush1.msra.mxu0 0.0
    %1297 = vmatprep.subr.mxu0 0.0
    %1298 = vmatpush1.msra.mxu0 0.0
    %1299 = vmatprep.subr.mxu0 0.0
    %1300 = vmatpush1.msra.mxu0 0.0
    %1301 = vmatprep.subr.mxu0 0.0
    %1302 = vmatpush1.msra.mxu0 0.0
    %1303 = vmatprep.subr.mxu0 0.0
    %1304 = vmatpush1.msra.mxu0 0.0
    %1305 = vmatprep.mubr.f32.mxu0 0.0
    %1306 = vmatmul.mubr.f32.gmra.mrb[0].mxu0 %v1239
    %v1307 = vpop.f32.mrb[0].mxu0
    %v1308 = vadd.f32 0.0, %v1307
    %v1309 = vpop.f32.mrb[0].mxu0
    %1310 = vdwg.mxu0
    %1311 = vrot.lane.b32.xlu0 %v205, 48
    %v1312 = vpop.permute.xlu0 %1311
    %v1315 = vsel %vm215, %v1234, 0
    %1317 = vmatprep.subr.mxu0 0.0
    %1318 = vmatpush1.msra.mxu0 %v1312
    %1319 = vmatprep.subr.mxu0 0.0
    %1320 = vmatpush1.msra.mxu0 0.0
    %1321 = vmatprep.subr.mxu0 0.0
    %1322 = vmatpush1.msra.mxu0 0.0
    %1323 = vmatprep.subr.mxu0 0.0
    %1324 = vmatpush1.msra.mxu0 0.0
    %1325 = vmatprep.subr.mxu0 0.0
    %1326 = vmatpush1.msra.mxu0 0.0
    %1327 = vmatprep.subr.mxu0 0.0
    %1328 = vmatpush1.msra.mxu0 0.0
    %1329 = vmatprep.subr.mxu0 0.0
    %1330 = vmatpush1.msra.mxu0 0.0
    %1331 = vmatprep.subr.mxu0 0.0
    %1332 = vmatpush1.msra.mxu0 0.0
    %1333 = vmatprep.subr.mxu0 0.0
    %1334 = vmatpush1.msra.mxu0 0.0
    %1335 = vmatprep.subr.mxu0 0.0
    %1336 = vmatpush1.msra.mxu0 0.0
    %1337 = vmatprep.subr.mxu0 0.0
    %1338 = vmatpush1.msra.mxu0 0.0
    %1339 = vmatprep.subr.mxu0 0.0
    %1340 = vmatpush1.msra.mxu0 0.0
    %1341 = vmatprep.subr.mxu0 0.0
    %1342 = vmatpush1.msra.mxu0 0.0
    %1343 = vmatprep.subr.mxu0 0.0
    %1344 = vmatpush1.msra.mxu0 0.0
    %1345 = vmatprep.subr.mxu0 0.0
    %1346 = vmatpush1.msra.mxu0 0.0
    %1347 = vmatprep.subr.mxu0 0.0
    %1348 = vmatpush1.msra.mxu0 0.0
    %1349 = vmatprep.subr.mxu0 0.0
    %1350 = vmatpush1.msra.mxu0 0.0
    %1351 = vmatprep.subr.mxu0 0.0
    %1352 = vmatpush1.msra.mxu0 0.0
    %1353 = vmatprep.subr.mxu0 0.0
    %1354 = vmatpush1.msra.mxu0 0.0
    %1355 = vmatprep.subr.mxu0 0.0
    %1356 = vmatpush1.msra.mxu0 0.0
    %1357 = vmatprep.subr.mxu0 0.0
    %1358 = vmatpush1.msra.mxu0 0.0
    %1359 = vmatprep.subr.mxu0 0.0
    %1360 = vmatpush1.msra.mxu0 0.0
    %1361 = vmatprep.subr.mxu0 0.0
    %1362 = vmatpush1.msra.mxu0 0.0
    %1363 = vmatprep.subr.mxu0 0.0
    %1364 = vmatpush1.msra.mxu0 0.0
    %1365 = vmatprep.subr.mxu0 0.0
    %1366 = vmatpush1.msra.mxu0 0.0
    %1367 = vmatprep.subr.mxu0 0.0
    %1368 = vmatpush1.msra.mxu0 0.0
    %1369 = vmatprep.subr.mxu0 0.0
    %1370 = vmatpush1.msra.mxu0 0.0
    %1371 = vmatprep.subr.mxu0 0.0
    %1372 = vmatpush1.msra.mxu0 0.0
    %1373 = vmatprep.subr.mxu0 0.0
    %1374 = vmatpush1.msra.mxu0 0.0
    %1375 = vmatprep.subr.mxu0 0.0
    %1376 = vmatpush1.msra.mxu0 0.0
    %1377 = vmatprep.subr.mxu0 0.0
    %1378 = vmatpush1.msra.mxu0 0.0
    %1379 = vmatprep.subr.mxu0 0.0
    %1380 = vmatpush1.msra.mxu0 0.0
    %1381 = vmatprep.mubr.f32.mxu0 0.0
    %1382 = vmatmul.mubr.f32.gmra.mrb[0].mxu0 %v1315
    %v1383 = vpop.f32.mrb[0].mxu0
    %v1384 = vadd.f32 0.0, %v1383
    %v1385 = vpop.f32.mrb[0].mxu0
    %1386 = vdwg.mxu0
    %v1388 = vsel %vm215, %v1308, 0
    %v1391 = vsel %vm215, %v1384, 0
    %1393 = vmatprep.subr.mxu0 0.0
    %1394 = vmatpush1.msra.mxu0 %v210
    %1395 = vmatprep.subr.mxu0 0.0
    %1396 = vmatpush1.msra.mxu0 0.0
    %1397 = vmatprep.subr.mxu0 0.0
    %1398 = vmatpush1.msra.mxu0 0.0
    %1399 = vmatprep.subr.mxu0 0.0
    %1400 = vmatpush1.msra.mxu0 0.0
    %1401 = vmatprep.subr.mxu0 0.0
    %1402 = vmatpush1.msra.mxu0 0.0
    %1403 = vmatprep.subr.mxu0 0.0
    %1404 = vmatpush1.msra.mxu0 0.0
    %1405 = vmatprep.subr.mxu0 0.0
    %1406 = vmatpush1.msra.mxu0 0.0
    %1407 = vmatprep.subr.mxu0 0.0
    %1408 = vmatpush1.msra.mxu0 0.0
    %1409 = vmatprep.subr.mxu0 0.0
    %1410 = vmatpush1.msra.mxu0 0.0
    %1411 = vmatprep.subr.mxu0 0.0
    %1412 = vmatpush1.msra.mxu0 0.0
    %1413 = vmatprep.subr.mxu0 0.0
    %1414 = vmatpush1.msra.mxu0 0.0
    %1415 = vmatprep.subr.mxu0 0.0
    %1416 = vmatpush1.msra.mxu0 0.0
    %1417 = vmatprep.subr.mxu0 0.0
    %1418 = vmatpush1.msra.mxu0 0.0
    %1419 = vmatprep.subr.mxu0 0.0
    %1420 = vmatpush1.msra.mxu0 0.0
    %1421 = vmatprep.subr.mxu0 0.0
    %1422 = vmatpush1.msra.mxu0 0.0
    %1423 = vmatprep.subr.mxu0 0.0
    %1424 = vmatpush1.msra.mxu0 0.0
    %1425 = vmatprep.subr.mxu0 0.0
    %1426 = vmatpush1.msra.mxu0 0.0
    %1427 = vmatprep.subr.mxu0 0.0
    %1428 = vmatpush1.msra.mxu0 0.0
    %1429 = vmatprep.subr.mxu0 0.0
    %1430 = vmatpush1.msra.mxu0 0.0
    %1431 = vmatprep.subr.mxu0 0.0
    %1432 = vmatpush1.msra.mxu0 0.0
    %1433 = vmatprep.subr.mxu0 0.0
    %1434 = vmatpush1.msra.mxu0 0.0
    %1435 = vmatprep.subr.mxu0 0.0
    %1436 = vmatpush1.msra.mxu0 0.0
    %1437 = vmatprep.subr.mxu0 0.0
    %1438 = vmatpush1.msra.mxu0 0.0
    %1439 = vmatprep.subr.mxu0 0.0
    %1440 = vmatpush1.msra.mxu0 0.0
    %1441 = vmatprep.subr.mxu0 0.0
    %1442 = vmatpush1.msra.mxu0 0.0
    %1443 = vmatprep.subr.mxu0 0.0
    %1444 = vmatpush1.msra.mxu0 0.0
    %1445 = vmatprep.subr.mxu0 0.0
    %1446 = vmatpush1.msra.mxu0 0.0
    %1447 = vmatprep.subr.mxu0 0.0
    %1448 = vmatpush1.msra.mxu0 0.0
    %1449 = vmatprep.subr.mxu0 0.0
    %1450 = vmatpush1.msra.mxu0 0.0
    %1451 = vmatprep.subr.mxu0 0.0
    %1452 = vmatpush1.msra.mxu0 0.0
    %1453 = vmatprep.subr.mxu0 0.0
    %1454 = vmatpush1.msra.mxu0 0.0
    %1455 = vmatprep.subr.mxu0 0.0
    %1456 = vmatpush1.msra.mxu0 0.0
    %1457 = vmatprep.mubr.f32.mxu0 0.0
    %1458 = vmatmul.mubr.f32.gmra.mrb[0].mxu0 %v1388
    %v1459 = vpop.f32.mrb[0].mxu0
    %v1460 = vadd.f32 0.0, %v1459
    %v1461 = vpop.f32.mrb[0].mxu0
    %1462 = vmatprep.mubr.f32.mxu0 0.0
    %1463 = vmatmul.mubr.f32.gmra.mrb[0].mxu0 %v1391
    %v1464 = vpop.f32.mrb[0].mxu0
    %v1465 = vadd.f32 0.0, %v1464
    %v1466 = vpop.f32.mrb[0].mxu0
    %1467 = vdwg.mxu0
    %v1468 = vadd.f32 %v1045, %v1460
    %v1469 = vadd.f32 %v1050, %v1465
    %1470 = vrot.lane.b32.xlu0 %v200, 104
    %v1471 = vpop.permute.xlu0 %1470
    %1472 = vrot.lane.b32.xlu0 %v200, 72
    %v1473 = vpop.permute.xlu0 %1472
    %v1474 = vsel %vm215, %v1471, 0
    %v1476 = vsel %vm215, %v1473, 0
    %1478 = vmatprep.subr.mxu0 0.0
    %1479 = vmatpush1.xpose.msra.mxu0 %v1476
    %1480 = vmatprep.subr.mxu0 0.0
    %1481 = vmatpush1.xpose.msra.mxu0 0.0
    %1482 = vmatprep.subr.mxu0 0.0
    %1483 = vmatpush1.xpose.msra.mxu0 0.0
    %1484 = vmatprep.subr.mxu0 0.0
    %1485 = vmatpush1.xpose.msra.mxu0 0.0
    %1486 = vmatprep.subr.mxu0 0.0
    %1487 = vmatpush1.xpose.msra.mxu0 0.0
    %1488 = vmatprep.subr.mxu0 0.0
    %1489 = vmatpush1.xpose.msra.mxu0 0.0
    %1490 = vmatprep.subr.mxu0 0.0
    %1491 = vmatpush1.xpose.msra.mxu0 0.0
    %1492 = vmatprep.subr.mxu0 0.0
    %1493 = vmatpush1.xpose.msra.mxu0 0.0
    %1494 = vmatprep.subr.mxu0 0.0
    %1495 = vmatpush1.xpose.msra.mxu0 0.0
    %1496 = vmatprep.subr.mxu0 0.0
    %1497 = vmatpush1.xpose.msra.mxu0 0.0
    %1498 = vmatprep.subr.mxu0 0.0
    %1499 = vmatpush1.xpose.msra.mxu0 0.0
    %1500 = vmatprep.subr.mxu0 0.0
    %1501 = vmatpush1.xpose.msra.mxu0 0.0
    %1502 = vmatprep.subr.mxu0 0.0
    %1503 = vmatpush1.xpose.msra.mxu0 0.0
    %1504 = vmatprep.subr.mxu0 0.0
    %1505 = vmatpush1.xpose.msra.mxu0 0.0
    %1506 = vmatprep.subr.mxu0 0.0
    %1507 = vmatpush1.xpose.msra.mxu0 0.0
    %1508 = vmatprep.subr.mxu0 0.0
    %1509 = vmatpush1.xpose.msra.mxu0 0.0
    %1510 = vmatprep.subr.mxu0 0.0
    %1511 = vmatpush1.xpose.msra.mxu0 0.0
    %1512 = vmatprep.subr.mxu0 0.0
    %1513 = vmatpush1.xpose.msra.mxu0 0.0
    %1514 = vmatprep.subr.mxu0 0.0
    %1515 = vmatpush1.xpose.msra.mxu0 0.0
    %1516 = vmatprep.subr.mxu0 0.0
    %1517 = vmatpush1.xpose.msra.mxu0 0.0
    %1518 = vmatprep.subr.mxu0 0.0
    %1519 = vmatpush1.xpose.msra.mxu0 0.0
    %1520 = vmatprep.subr.mxu0 0.0
    %1521 = vmatpush1.xpose.msra.mxu0 0.0
    %1522 = vmatprep.subr.mxu0 0.0
    %1523 = vmatpush1.xpose.msra.mxu0 0.0
    %1524 = vmatprep.subr.mxu0 0.0
    %1525 = vmatpush1.xpose.msra.mxu0 0.0
    %1526 = vmatprep.subr.mxu0 0.0
    %1527 = vmatpush1.xpose.msra.mxu0 0.0
    %1528 = vmatprep.subr.mxu0 0.0
    %1529 = vmatpush1.xpose.msra.mxu0 0.0
    %1530 = vmatprep.subr.mxu0 0.0
    %1531 = vmatpush1.xpose.msra.mxu0 0.0
    %1532 = vmatprep.subr.mxu0 0.0
    %1533 = vmatpush1.xpose.msra.mxu0 0.0
    %1534 = vmatprep.subr.mxu0 0.0
    %1535 = vmatpush1.xpose.msra.mxu0 0.0
    %1536 = vmatprep.subr.mxu0 0.0
    %1537 = vmatpush1.xpose.msra.mxu0 0.0
    %1538 = vmatprep.subr.mxu0 0.0
    %1539 = vmatpush1.xpose.msra.mxu0 0.0
    %1540 = vmatprep.subr.mxu0 0.0
    %1541 = vmatpush1.xpose.msra.mxu0 0.0
    %1542 = vmatprep.mubr.f32.mxu0 0.0
    %1543 = vmatmul.mubr.f32.gmra.mrb[0].mxu0 %v1474
    %v1544 = vpop.f32.mrb[0].mxu0
    %v1545 = vadd.f32 0.0, %v1544
    %v1546 = vpop.f32.mrb[0].mxu0
    %1547 = vdwg.mxu0
    %1548 = vrot.lane.b32.xlu0 %v205, 104
    %v1549 = vpop.permute.xlu0 %1548
    %1550 = vrot.lane.b32.xlu0 %v205, 72
    %v1551 = vpop.permute.xlu0 %1550
    %v1552 = vsel %vm215, %v1549, 0
    %v1554 = vsel %vm215, %v1551, 0
    %1556 = vmatprep.subr.mxu0 0.0
    %1557 = vmatpush1.xpose.msra.mxu0 %v1554
    %1558 = vmatprep.subr.mxu0 0.0
    %1559 = vmatpush1.xpose.msra.mxu0 0.0
    %1560 = vmatprep.subr.mxu0 0.0
    %1561 = vmatpush1.xpose.msra.mxu0 0.0
    %1562 = vmatprep.subr.mxu0 0.0
    %1563 = vmatpush1.xpose.msra.mxu0 0.0
    %1564 = vmatprep.subr.mxu0 0.0
    %1565 = vmatpush1.xpose.msra.mxu0 0.0
    %1566 = vmatprep.subr.mxu0 0.0
    %1567 = vmatpush1.xpose.msra.mxu0 0.0
    %1568 = vmatprep.subr.mxu0 0.0
    %1569 = vmatpush1.xpose.msra.mxu0 0.0
    %1570 = vmatprep.subr.mxu0 0.0
    %1571 = vmatpush1.xpose.msra.mxu0 0.0
    %1572 = vmatprep.subr.mxu0 0.0
    %1573 = vmatpush1.xpose.msra.mxu0 0.0
    %1574 = vmatprep.subr.mxu0 0.0
    %1575 = vmatpush1.xpose.msra.mxu0 0.0
    %1576 = vmatprep.subr.mxu0 0.0
    %1577 = vmatpush1.xpose.msra.mxu0 0.0
    %1578 = vmatprep.subr.mxu0 0.0
    %1579 = vmatpush1.xpose.msra.mxu0 0.0
    %1580 = vmatprep.subr.mxu0 0.0
    %1581 = vmatpush1.xpose.msra.mxu0 0.0
    %1582 = vmatprep.subr.mxu0 0.0
    %1583 = vmatpush1.xpose.msra.mxu0 0.0
    %1584 = vmatprep.subr.mxu0 0.0
    %1585 = vmatpush1.xpose.msra.mxu0 0.0
    %1586 = vmatprep.subr.mxu0 0.0
    %1587 = vmatpush1.xpose.msra.mxu0 0.0
    %1588 = vmatprep.subr.mxu0 0.0
    %1589 = vmatpush1.xpose.msra.mxu0 0.0
    %1590 = vmatprep.subr.mxu0 0.0
    %1591 = vmatpush1.xpose.msra.mxu0 0.0
    %1592 = vmatprep.subr.mxu0 0.0
    %1593 = vmatpush1.xpose.msra.mxu0 0.0
    %1594 = vmatprep.subr.mxu0 0.0
    %1595 = vmatpush1.xpose.msra.mxu0 0.0
    %1596 = vmatprep.subr.mxu0 0.0
    %1597 = vmatpush1.xpose.msra.mxu0 0.0
    %1598 = vmatprep.subr.mxu0 0.0
    %1599 = vmatpush1.xpose.msra.mxu0 0.0
    %1600 = vmatprep.subr.mxu0 0.0
    %1601 = vmatpush1.xpose.msra.mxu0 0.0
    %1602 = vmatprep.subr.mxu0 0.0
    %1603 = vmatpush1.xpose.msra.mxu0 0.0
    %1604 = vmatprep.subr.mxu0 0.0
    %1605 = vmatpush1.xpose.msra.mxu0 0.0
    %1606 = vmatprep.subr.mxu0 0.0
    %1607 = vmatpush1.xpose.msra.mxu0 0.0
    %1608 = vmatprep.subr.mxu0 0.0
    %1609 = vmatpush1.xpose.msra.mxu0 0.0
    %1610 = vmatprep.subr.mxu0 0.0
    %1611 = vmatpush1.xpose.msra.mxu0 0.0
    %1612 = vmatprep.subr.mxu0 0.0
    %1613 = vmatpush1.xpose.msra.mxu0 0.0
    %1614 = vmatprep.subr.mxu0 0.0
    %1615 = vmatpush1.xpose.msra.mxu0 0.0
    %1616 = vmatprep.subr.mxu0 0.0
    %1617 = vmatpush1.xpose.msra.mxu0 0.0
    %1618 = vmatprep.subr.mxu0 0.0
    %1619 = vmatpush1.xpose.msra.mxu0 0.0
    %1620 = vmatprep.mubr.f32.mxu0 0.0
    %1621 = vmatmul.mubr.f32.gmra.mrb[0].mxu0 %v1552
    %v1622 = vpop.f32.mrb[0].mxu0
    %v1623 = vadd.f32 0.0, %v1622
    %v1624 = vpop.f32.mrb[0].mxu0
    %1625 = vdwg.mxu0
    %v1626 = vmul.f32 %v1545, 0.35355338
    %v1627 = vmul.f32 %v1623, 0.35355338
    %v1628 = vadd.f32 %v1626, %v374
    %v1629 = vadd.f32 %v1627, %v378
    %v1630 = vsel %vm215, %v1628, -inf
    %1631 = vmax.xlane.f32.xlu0 %v1630
    %v1632 = vpop.xlane.xlu0 %1631
    %v1633 = vsel %vm215, %v1629, -inf
    %1634 = vmax.xlane.f32.xlu0 %v1633
    %v1635 = vpop.xlane.xlu0 %1634
    %v1636 = vsub.f32 %v1628, %v1632
    %v1637 = vsub.f32 %v1629, %v1635
    %v1638 = vmul.f32 %v1636, 1.442695
    %v1639 = vpow.pop %v1638
    %v1640 = vmul.f32 %v1637, 1.442695
    %v1641 = vpow.pop %v1640
    %v1642 = vsel %vm215, %v1639, 0.0
    %1643 = vadd.xlane.f32.xlu0 %v1642
    %v1644 = vpop.xlane.xlu0 %1643
    %v1645 = vsel %vm215, %v1641, 0.0
    %1646 = vadd.xlane.f32.xlu0 %v1645
    %v1647 = vpop.xlane.xlu0 %1646
    %v1648 = vrcp.pop %v1644
    %v1649 = vrcp.pop %v1647
    %v1650 = vmul.f32 %v1639, %v1648
    %v1651 = vmul.f32 %v1641, %v1649
    %1652 = vrot.lane.b32.xlu0 %v200, 40
    %v1653 = vpop.permute.xlu0 %1652
    %v1656 = vsel %vm215, %v1650, 0
    %1658 = vmatprep.subr.mxu0 0.0
    %1659 = vmatpush1.msra.mxu0 %v1653
    %1660 = vmatprep.subr.mxu0 0.0
    %1661 = vmatpush1.msra.mxu0 0.0
    %1662 = vmatprep.subr.mxu0 0.0
    %1663 = vmatpush1.msra.mxu0 0.0
    %1664 = vmatprep.subr.mxu0 0.0
    %1665 = vmatpush1.msra.mxu0 0.0
    %1666 = vmatprep.subr.mxu0 0.0
    %1667 = vmatpush1.msra.mxu0 0.0
    %1668 = vmatprep.subr.mxu0 0.0
    %1669 = vmatpush1.msra.mxu0 0.0
    %1670 = vmatprep.subr.mxu0 0.0
    %1671 = vmatpush1.msra.mxu0 0.0
    %1672 = vmatprep.subr.mxu0 0.0
    %1673 = vmatpush1.msra.mxu0 0.0
    %1674 = vmatprep.subr.mxu0 0.0
    %1675 = vmatpush1.msra.mxu0 0.0
    %1676 = vmatprep.subr.mxu0 0.0
    %1677 = vmatpush1.msra.mxu0 0.0
    %1678 = vmatprep.subr.mxu0 0.0
    %1679 = vmatpush1.msra.mxu0 0.0
    %1680 = vmatprep.subr.mxu0 0.0
    %1681 = vmatpush1.msra.mxu0 0.0
    %1682 = vmatprep.subr.mxu0 0.0
    %1683 = vmatpush1.msra.mxu0 0.0
    %1684 = vmatprep.subr.mxu0 0.0
    %1685 = vmatpush1.msra.mxu0 0.0
    %1686 = vmatprep.subr.mxu0 0.0
    %1687 = vmatpush1.msra.mxu0 0.0
    %1688 = vmatprep.subr.mxu0 0.0
    %1689 = vmatpush1.msra.mxu0 0.0
    %1690 = vmatprep.subr.mxu0 0.0
    %1691 = vmatpush1.msra.mxu0 0.0
    %1692 = vmatprep.subr.mxu0 0.0
    %1693 = vmatpush1.msra.mxu0 0.0
    %1694 = vmatprep.subr.mxu0 0.0
    %1695 = vmatpush1.msra.mxu0 0.0
    %1696 = vmatprep.subr.mxu0 0.0
    %1697 = vmatpush1.msra.mxu0 0.0
    %1698 = vmatprep.subr.mxu0 0.0
    %1699 = vmatpush1.msra.mxu0 0.0
    %1700 = vmatprep.subr.mxu0 0.0
    %1701 = vmatpush1.msra.mxu0 0.0
    %1702 = vmatprep.subr.mxu0 0.0
    %1703 = vmatpush1.msra.mxu0 0.0
    %1704 = vmatprep.subr.mxu0 0.0
    %1705 = vmatpush1.msra.mxu0 0.0
    %1706 = vmatprep.subr.mxu0 0.0
    %1707 = vmatpush1.msra.mxu0 0.0
    %1708 = vmatprep.subr.mxu0 0.0
    %1709 = vmatpush1.msra.mxu0 0.0
    %1710 = vmatprep.subr.mxu0 0.0
    %1711 = vmatpush1.msra.mxu0 0.0
    %1712 = vmatprep.subr.mxu0 0.0
    %1713 = vmatpush1.msra.mxu0 0.0
    %1714 = vmatprep.subr.mxu0 0.0
    %1715 = vmatpush1.msra.mxu0 0.0
    %1716 = vmatprep.subr.mxu0 0.0
    %1717 = vmatpush1.msra.mxu0 0.0
    %1718 = vmatprep.subr.mxu0 0.0
    %1719 = vmatpush1.msra.mxu0 0.0
    %1720 = vmatprep.subr.mxu0 0.0
    %1721 = vmatpush1.msra.mxu0 0.0
    %1722 = vmatprep.mubr.f32.mxu0 0.0
    %1723 = vmatmul.mubr.f32.gmra.mrb[0].mxu0 %v1656
    %v1724 = vpop.f32.mrb[0].mxu0
    %v1725 = vadd.f32 0.0, %v1724
    %v1726 = vpop.f32.mrb[0].mxu0
    %1727 = vdwg.mxu0
    %1728 = vrot.lane.b32.xlu0 %v205, 40
    %v1729 = vpop.permute.xlu0 %1728
    %v1732 = vsel %vm215, %v1651, 0
    %1734 = vmatprep.subr.mxu0 0.0
    %1735 = vmatpush1.msra.mxu0 %v1729
    %1736 = vmatprep.subr.mxu0 0.0
    %1737 = vmatpush1.msra.mxu0 0.0
    %1738 = vmatprep.subr.mxu0 0.0
    %1739 = vmatpush1.msra.mxu0 0.0
    %1740 = vmatprep.subr.mxu0 0.0
    %1741 = vmatpush1.msra.mxu0 0.0
    %1742 = vmatprep.subr.mxu0 0.0
    %1743 = vmatpush1.msra.mxu0 0.0
    %1744 = vmatprep.subr.mxu0 0.0
    %1745 = vmatpush1.msra.mxu0 0.0
    %1746 = vmatprep.subr.mxu0 0.0
    %1747 = vmatpush1.msra.mxu0 0.0
    %1748 = vmatprep.subr.mxu0 0.0
    %1749 = vmatpush1.msra.mxu0 0.0
    %1750 = vmatprep.subr.mxu0 0.0
    %1751 = vmatpush1.msra.mxu0 0.0
    %1752 = vmatprep.subr.mxu0 0.0
    %1753 = vmatpush1.msra.mxu0 0.0
    %1754 = vmatprep.subr.mxu0 0.0
    %1755 = vmatpush1.msra.mxu0 0.0
    %1756 = vmatprep.subr.mxu0 0.0
    %1757 = vmatpush1.msra.mxu0 0.0
    %1758 = vmatprep.subr.mxu0 0.0
    %1759 = vmatpush1.msra.mxu0 0.0
    %1760 = vmatprep.subr.mxu0 0.0
    %1761 = vmatpush1.msra.mxu0 0.0
    %1762 = vmatprep.subr.mxu0 0.0
    %1763 = vmatpush1.msra.mxu0 0.0
    %1764 = vmatprep.subr.mxu0 0.0
    %1765 = vmatpush1.msra.mxu0 0.0
    %1766 = vmatprep.subr.mxu0 0.0
    %1767 = vmatpush1.msra.mxu0 0.0
    %1768 = vmatprep.subr.mxu0 0.0
    %1769 = vmatpush1.msra.mxu0 0.0
    %1770 = vmatprep.subr.mxu0 0.0
    %1771 = vmatpush1.msra.mxu0 0.0
    %1772 = vmatprep.subr.mxu0 0.0
    %1773 = vmatpush1.msra.mxu0 0.0
    %1774 = vmatprep.subr.mxu0 0.0
    %1775 = vmatpush1.msra.mxu0 0.0
    %1776 = vmatprep.subr.mxu0 0.0
    %1777 = vmatpush1.msra.mxu0 0.0
    %1778 = vmatprep.subr.mxu0 0.0
    %1779 = vmatpush1.msra.mxu0 0.0
    %1780 = vmatprep.subr.mxu0 0.0
    %1781 = vmatpush1.msra.mxu0 0.0
    %1782 = vmatprep.subr.mxu0 0.0
    %1783 = vmatpush1.msra.mxu0 0.0
    %1784 = vmatprep.subr.mxu0 0.0
    %1785 = vmatpush1.msra.mxu0 0.0
    %1786 = vmatprep.subr.mxu0 0.0
    %1787 = vmatpush1.msra.mxu0 0.0
    %1788 = vmatprep.subr.mxu0 0.0
    %1789 = vmatpush1.msra.mxu0 0.0
    %1790 = vmatprep.subr.mxu0 0.0
    %1791 = vmatpush1.msra.mxu0 0.0
    %1792 = vmatprep.subr.mxu0 0.0
    %1793 = vmatpush1.msra.mxu0 0.0
    %1794 = vmatprep.subr.mxu0 0.0
    %1795 = vmatpush1.msra.mxu0 0.0
    %1796 = vmatprep.subr.mxu0 0.0
    %1797 = vmatpush1.msra.mxu0 0.0
    %1798 = vmatprep.mubr.f32.mxu0 0.0
    %1799 = vmatmul.mubr.f32.gmra.mrb[0].mxu0 %v1732
    %v1800 = vpop.f32.mrb[0].mxu0
    %v1801 = vadd.f32 0.0, %v1800
    %v1802 = vpop.f32.mrb[0].mxu0
    %1803 = vdwg.mxu0
    %v1805 = vsel %vm215, %v1725, 0
    %v1808 = vsel %vm215, %v1801, 0
    %1810 = vmatprep.subr.mxu0 0.0
    %1811 = vmatpush1.msra.mxu0 %v211
    %1812 = vmatprep.subr.mxu0 0.0
    %1813 = vmatpush1.msra.mxu0 0.0
    %1814 = vmatprep.subr.mxu0 0.0
    %1815 = vmatpush1.msra.mxu0 0.0
    %1816 = vmatprep.subr.mxu0 0.0
    %1817 = vmatpush1.msra.mxu0 0.0
    %1818 = vmatprep.subr.mxu0 0.0
    %1819 = vmatpush1.msra.mxu0 0.0
    %1820 = vmatprep.subr.mxu0 0.0
    %1821 = vmatpush1.msra.mxu0 0.0
    %1822 = vmatprep.subr.mxu0 0.0
    %1823 = vmatpush1.msra.mxu0 0.0
    %1824 = vmatprep.subr.mxu0 0.0
    %1825 = vmatpush1.msra.mxu0 0.0
    %1826 = vmatprep.subr.mxu0 0.0
    %1827 = vmatpush1.msra.mxu0 0.0
    %1828 = vmatprep.subr.mxu0 0.0
    %1829 = vmatpush1.msra.mxu0 0.0
    %1830 = vmatprep.subr.mxu0 0.0
    %1831 = vmatpush1.msra.mxu0 0.0
    %1832 = vmatprep.subr.mxu0 0.0
    %1833 = vmatpush1.msra.mxu0 0.0
    %1834 = vmatprep.subr.mxu0 0.0
    %1835 = vmatpush1.msra.mxu0 0.0
    %1836 = vmatprep.subr.mxu0 0.0
    %1837 = vmatpush1.msra.mxu0 0.0
    %1838 = vmatprep.subr.mxu0 0.0
    %1839 = vmatpush1.msra.mxu0 0.0
    %1840 = vmatprep.subr.mxu0 0.0
    %1841 = vmatpush1.msra.mxu0 0.0
    %1842 = vmatprep.subr.mxu0 0.0
    %1843 = vmatpush1.msra.mxu0 0.0
    %1844 = vmatprep.subr.mxu0 0.0
    %1845 = vmatpush1.msra.mxu0 0.0
    %1846 = vmatprep.subr.mxu0 0.0
    %1847 = vmatpush1.msra.mxu0 0.0
    %1848 = vmatprep.subr.mxu0 0.0
    %1849 = vmatpush1.msra.mxu0 0.0
    %1850 = vmatprep.subr.mxu0 0.0
    %1851 = vmatpush1.msra.mxu0 0.0
    %1852 = vmatprep.subr.mxu0 0.0
    %1853 = vmatpush1.msra.mxu0 0.0
    %1854 = vmatprep.subr.mxu0 0.0
    %1855 = vmatpush1.msra.mxu0 0.0
    %1856 = vmatprep.subr.mxu0 0.0
    %1857 = vmatpush1.msra.mxu0 0.0
    %1858 = vmatprep.subr.mxu0 0.0
    %1859 = vmatpush1.msra.mxu0 0.0
    %1860 = vmatprep.subr.mxu0 0.0
    %1861 = vmatpush1.msra.mxu0 0.0
    %1862 = vmatprep.subr.mxu0 0.0
    %1863 = vmatpush1.msra.mxu0 0.0
    %1864 = vmatprep.subr.mxu0 0.0
    %1865 = vmatpush1.msra.mxu0 0.0
    %1866 = vmatprep.subr.mxu0 0.0
    %1867 = vmatpush1.msra.mxu0 0.0
    %1868 = vmatprep.subr.mxu0 0.0
    %1869 = vmatpush1.msra.mxu0 0.0
    %1870 = vmatprep.subr.mxu0 0.0
    %1871 = vmatpush1.msra.mxu0 0.0
    %1872 = vmatprep.subr.mxu0 0.0
    %1873 = vmatpush1.msra.mxu0 0.0
    %1874 = vmatprep.mubr.f32.mxu0 0.0
    %1875 = vmatmul.mubr.f32.gmra.mrb[0].mxu0 %v1805
    %v1876 = vpop.f32.mrb[0].mxu0
    %v1877 = vadd.f32 0.0, %v1876
    %v1878 = vpop.f32.mrb[0].mxu0
    %1879 = vmatprep.mubr.f32.mxu0 0.0
    %1880 = vmatmul.mubr.f32.gmra.mrb[0].mxu0 %v1808
    %v1881 = vpop.f32.mrb[0].mxu0
    %v1882 = vadd.f32 0.0, %v1881
    %v1883 = vpop.f32.mrb[0].mxu0
    %1884 = vdwg.mxu0
    %v1885 = vadd.f32 %v1468, %v1877
    %v1886 = vadd.f32 %v1469, %v1882
    %v1887 = vld [vmem:[%s7] sm:$0x1]
    %v1889 = vlaneseq
    %v1890 = vshrl.u32 %v1889, 7
    %v1891 = vsub.s32 0, %v1890
    %v1892 = vrot.slane %v1887, %v1891
    %v1894 = vadd.f32 %v1885, %v1892
    %v1895 = vadd.f32 %v1886, %v1892
    %v1896 = vadd.f32 %v1894, %v112
    %v1897 = vadd.f32 %v1895, %v113
    %v1898 = vld [vmem:[%s8] sm:$0x1]
    %v1899 = vld [vmem:[%s9] sm:$0x1]
    %v1900 = vsel %vm70, %v1896, 0.0
    %1901 = vadd.xlane.f32.xlu0 %v1900
    %v1902 = vpop.xlane.xlu0 %1901
    %v1903 = vsel %vm70, %v1897, 0.0
    %1904 = vadd.xlane.f32.xlu0 %v1903
    %v1905 = vpop.xlane.xlu0 %1904
    %v1906 = vmul.f32 %v1902, %v77
    %v1907 = vmul.f32 %v1905, %v77
    %v1908 = vsub.f32 %v1896, %v1906
    %v1909 = vsub.f32 %v1897, %v1907
    %v1910 = vmul.f32 %v1908, %v1908
    %v1911 = vmul.f32 %v1909, %v1909
    %v1912 = vsel %vm70, %v1910, 0.0
    %1913 = vadd.xlane.f32.xlu0 %v1912
    %v1914 = vpop.xlane.xlu0 %1913
    %v1915 = vsel %vm70, %v1911, 0.0
    %1916 = vadd.xlane.f32.xlu0 %v1915
    %v1917 = vpop.xlane.xlu0 %1916
    %v1918 = vmul.f32 %v1914, %v77
    %v1919 = vmul.f32 %v1917, %v77
    %v1920 = vadd.f32 %v1918, 1e-12
    %v1921 = vadd.f32 %v1919, 1e-12
    %v1922 = vrsqrt.pop %v1920
    %v1923 = vrsqrt.pop %v1921
    %v1924 = vmul.f32 %v1908, %v1922
    %v1925 = vmul.f32 %v1909, %v1923
    %v1927 = vlaneseq
    %v1928 = vshrl.u32 %v1927, 7
    %v1929 = vsub.s32 0, %v1928
    %v1930 = vrot.slane %v1898, %v1929
    %v1932 = vmul.f32 %v1924, %v1930
    %v1933 = vmul.f32 %v1925, %v1930
    %v1935 = vlaneseq
    %v1936 = vshrl.u32 %v1935, 7
    %v1937 = vsub.s32 0, %v1936
    %v1938 = vrot.slane %v1899, %v1937
    %v1940 = vadd.f32 %v1932, %v1938
    %v1941 = vadd.f32 %v1933, %v1938
    %v1942 = vld [vmem:[%s10] sm:$0xff]
    %v1943 = vld [vmem:[%s10 + $0x8] sm:$0xff]
    %v1944 = vld [vmem:[%s10 + $0x10] sm:$0xff]
    %v1945 = vld [vmem:[%s10 + $0x18] sm:$0xff]
    %v1946 = vld [vmem:[%s11] sm:$0x1]
    %v1948 = vlaneseq
    %v1949 = vshrl.u32 %v1948, 7
    %v1950 = vsub.s32 0, %v1949
    %v1951 = vrot.slane %v1946, %v1950
    %v1954 = vsel %vm70, %v1940, 0
    %v1957 = vsel %vm70, %v1941, 0
    %1959 = vmatprep.subr.mxu0 0.0
    %1960 = vmatpush1.msra.mxu0 %v1942
    %1961 = vmatprep.subr.mxu0 0.0
    %1962 = vmatpush1.msra.mxu0 %v1943
    %1963 = vmatprep.subr.mxu0 0.0
    %1964 = vmatpush1.msra.mxu0 %v1944
    %1965 = vmatprep.subr.mxu0 0.0
    %1966 = vmatpush1.msra.mxu0 %v1945
    %1967 = vmatprep.subr.mxu0 0.0
    %1968 = vmatpush1.msra.mxu0 0.0
    %1969 = vmatprep.subr.mxu0 0.0
    %1970 = vmatpush1.msra.mxu0 0.0
    %1971 = vmatprep.subr.mxu0 0.0
    %1972 = vmatpush1.msra.mxu0 0.0
    %1973 = vmatprep.subr.mxu0 0.0
    %1974 = vmatpush1.msra.mxu0 0.0
    %1975 = vmatprep.subr.mxu0 0.0
    %1976 = vmatpush1.msra.mxu0 0.0
    %1977 = vmatprep.subr.mxu0 0.0
    %1978 = vmatpush1.msra.mxu0 0.0
    %1979 = vmatprep.subr.mxu0 0.0
    %1980 = vmatpush1.msra.mxu0 0.0
    %1981 = vmatprep.subr.mxu0 0.0
    %1982 = vmatpush1.msra.mxu0 0.0
    %1983 = vmatprep.subr.mxu0 0.0
    %1984 = vmatpush1.msra.mxu0 0.0
    %1985 = vmatprep.subr.mxu0 0.0
    %1986 = vmatpush1.msra.mxu0 0.0
    %1987 = vmatprep.subr.mxu0 0.0
    %1988 = vmatpush1.msra.mxu0 0.0
    %1989 = vmatprep.subr.mxu0 0.0
    %1990 = vmatpush1.msra.mxu0 0.0
    %1991 = vmatprep.subr.mxu0 0.0
    %1992 = vmatpush1.msra.mxu0 0.0
    %1993 = vmatprep.subr.mxu0 0.0
    %1994 = vmatpush1.msra.mxu0 0.0
    %1995 = vmatprep.subr.mxu0 0.0
    %1996 = vmatpush1.msra.mxu0 0.0
    %1997 = vmatprep.subr.mxu0 0.0
    %1998 = vmatpush1.msra.mxu0 0.0
    %1999 = vmatprep.subr.mxu0 0.0
    %2000 = vmatpush1.msra.mxu0 0.0
    %2001 = vmatprep.subr.mxu0 0.0
    %2002 = vmatpush1.msra.mxu0 0.0
    %2003 = vmatprep.subr.mxu0 0.0
    %2004 = vmatpush1.msra.mxu0 0.0
    %2005 = vmatprep.subr.mxu0 0.0
    %2006 = vmatpush1.msra.mxu0 0.0
    %2007 = vmatprep.subr.mxu0 0.0
    %2008 = vmatpush1.msra.mxu0 0.0
    %2009 = vmatprep.subr.mxu0 0.0
    %2010 = vmatpush1.msra.mxu0 0.0
    %2011 = vmatprep.subr.mxu0 0.0
    %2012 = vmatpush1.msra.mxu0 0.0
    %2013 = vmatprep.subr.mxu0 0.0
    %2014 = vmatpush1.msra.mxu0 0.0
    %2015 = vmatprep.subr.mxu0 0.0
    %2016 = vmatpush1.msra.mxu0 0.0
    %2017 = vmatprep.subr.mxu0 0.0
    %2018 = vmatpush1.msra.mxu0 0.0
    %2019 = vmatprep.subr.mxu0 0.0
    %2020 = vmatpush1.msra.mxu0 0.0
    %2021 = vmatprep.subr.mxu0 0.0
    %2022 = vmatpush1.msra.mxu0 0.0
    %2023 = vmatprep.mubr.f32.mxu0 0.0
    %2024 = vmatmul.mubr.f32.gmra.mrb[0].mxu0 %v1954
    %v2025 = vpop.f32.mrb[0].mxu0
    %v2026 = vadd.f32 %v1951, %v2025
    %v2027 = vpop.f32.mrb[0].mxu0
    %2028 = vmatprep.mubr.f32.mxu0 0.0
    %2029 = vmatmul.mubr.f32.gmra.mrb[0].mxu0 %v1957
    %v2030 = vpop.f32.mrb[0].mxu0
    %v2031 = vadd.f32 %v1951, %v2030
    %v2032 = vpop.f32.mrb[0].mxu0
    %2033 = vdwg.mxu0
    %v2034 = vmul.f32 %v2026, 0.5
    %v2035 = vmul.f32 %v2031, 0.5
    %v2036 = vmul.f32 %v2026, 0.044715
    %v2037 = vmul.f32 %v2031, 0.044715
    %v2038 = vmul.f32 %v2036, %v2026
    %v2039 = vmul.f32 %v2037, %v2031
    %v2040 = vmul.f32 %v2038, %v2026
    %v2041 = vmul.f32 %v2039, %v2031
    %v2042 = vadd.f32 %v2026, %v2040
    %v2043 = vadd.f32 %v2031, %v2041
    %v2044 = vmul.f32 %v2042, 0.7978846
    %v2045 = vmul.f32 %v2043, 0.7978846
    %v2046 = vtanh.pop %v2044
    %v2047 = vtanh.pop %v2045
    %v2048 = vadd.f32 %v2046, 1.0
    %v2049 = vadd.f32 %v2047, 1.0
    %v2050 = vmul.f32 %v2034, %v2048
    %v2051 = vmul.f32 %v2035, %v2049
    %v2052 = vld [vmem:[%s12] sm:$0xff]
    %v2053 = vld [vmem:[%s12 + $0x8] sm:$0xff]
    %v2054 = vld [vmem:[%s12 + $0x10] sm:$0xff]
    %v2055 = vld [vmem:[%s12 + $0x18] sm:$0xff]
    %v2056 = vld [vmem:[%s12 + $0x20] sm:$0xff]
    %v2057 = vld [vmem:[%s12 + $0x28] sm:$0xff]
    %v2058 = vld [vmem:[%s12 + $0x30] sm:$0xff]
    %v2059 = vld [vmem:[%s12 + $0x38] sm:$0xff]
    %v2060 = vld [vmem:[%s13] sm:$0x1]
    %v2062 = vlaneseq
    %v2063 = vshrl.u32 %v2062, 7
    %v2064 = vsub.s32 0, %v2063
    %v2065 = vrot.slane %v2060, %v2064
    %vm2067 = vcmask 523264
    %v2069 = vsel %vm2067, %v2050, 0
    %v2072 = vsel %vm2067, %v2051, 0
    %2074 = vmatprep.subr.mxu0 0.0
    %2075 = vmatpush1.msra.mxu0 %v2052
    %2076 = vmatprep.subr.mxu0 0.0
    %2077 = vmatpush1.msra.mxu0 %v2053
    %2078 = vmatprep.subr.mxu0 0.0
    %2079 = vmatpush1.msra.mxu0 %v2054
    %2080 = vmatprep.subr.mxu0 0.0
    %2081 = vmatpush1.msra.mxu0 %v2055
    %2082 = vmatprep.subr.mxu0 0.0
    %2083 = vmatpush1.msra.mxu0 %v2056
    %2084 = vmatprep.subr.mxu0 0.0
    %2085 = vmatpush1.msra.mxu0 %v2057
    %2086 = vmatprep.subr.mxu0 0.0
    %2087 = vmatpush1.msra.mxu0 %v2058
    %2088 = vmatprep.subr.mxu0 0.0
    %2089 = vmatpush1.msra.mxu0 %v2059
    %2090 = vmatprep.subr.mxu0 0.0
    %2091 = vmatpush1.msra.mxu0 0.0
    %2092 = vmatprep.subr.mxu0 0.0
    %2093 = vmatpush1.msra.mxu0 0.0
    %2094 = vmatprep.subr.mxu0 0.0
    %2095 = vmatpush1.msra.mxu0 0.0
    %2096 = vmatprep.subr.mxu0 0.0
    %2097 = vmatpush1.msra.mxu0 0.0
    %2098 = vmatprep.subr.mxu0 0.0
    %2099 = vmatpush1.msra.mxu0 0.0
    %2100 = vmatprep.subr.mxu0 0.0
    %2101 = vmatpush1.msra.mxu0 0.0
    %2102 = vmatprep.subr.mxu0 0.0
    %2103 = vmatpush1.msra.mxu0 0.0
    %2104 = vmatprep.subr.mxu0 0.0
    %2105 = vmatpush1.msra.mxu0 0.0
    %2106 = vmatprep.subr.mxu0 0.0
    %2107 = vmatpush1.msra.mxu0 0.0
    %2108 = vmatprep.subr.mxu0 0.0
    %2109 = vmatpush1.msra.mxu0 0.0
    %2110 = vmatprep.subr.mxu0 0.0
    %2111 = vmatpush1.msra.mxu0 0.0
    %2112 = vmatprep.subr.mxu0 0.0
    %2113 = vmatpush1.msra.mxu0 0.0
    %2114 = vmatprep.subr.mxu0 0.0
    %2115 = vmatpush1.msra.mxu0 0.0
    %2116 = vmatprep.subr.mxu0 0.0
    %2117 = vmatpush1.msra.mxu0 0.0
    %2118 = vmatprep.subr.mxu0 0.0
    %2119 = vmatpush1.msra.mxu0 0.0
    %2120 = vmatprep.subr.mxu0 0.0
    %2121 = vmatpush1.msra.mxu0 0.0
    %2122 = vmatprep.subr.mxu0 0.0
    %2123 = vmatpush1.msra.mxu0 0.0
    %2124 = vmatprep.subr.mxu0 0.0
    %2125 = vmatpush1.msra.mxu0 0.0
    %2126 = vmatprep.subr.mxu0 0.0
    %2127 = vmatpush1.msra.mxu0 0.0
    %2128 = vmatprep.subr.mxu0 0.0
    %2129 = vmatpush1.msra.mxu0 0.0
    %2130 = vmatprep.subr.mxu0 0.0
    %2131 = vmatpush1.msra.mxu0 0.0
    %2132 = vmatprep.subr.mxu0 0.0
    %2133 = vmatpush1.msra.mxu0 0.0
    %2134 = vmatprep.subr.mxu0 0.0
    %2135 = vmatpush1.msra.mxu0 0.0
    %2136 = vmatprep.subr.mxu0 0.0
    %2137 = vmatpush1.msra.mxu0 0.0
    %2138 = vmatprep.mubr.f32.mxu0 0.0
    %2139 = vmatmul.mubr.f32.gmra.mrb[0].mxu0 %v2069
    %v2140 = vpop.f32.mrb[0].mxu0
    %v2141 = vadd.f32 %v2065, %v2140
    %v2142 = vpop.f32.mrb[0].mxu0
    %2143 = vmatprep.mubr.f32.mxu0 0.0
    %2144 = vmatmul.mubr.f32.gmra.mrb[0].mxu0 %v2072
    %v2145 = vpop.f32.mrb[0].mxu0
    %v2146 = vadd.f32 %v2065, %v2145
    %v2147 = vpop.f32.mrb[0].mxu0
    %2148 = vdwg.mxu0
    %v2149 = vadd.f32 %v2141, %v1940
    %v2150 = vadd.f32 %v2146, %v1941
    %v2151 = vld [vmem:[%s14] sm:$0x1]
    %v2152 = vld [vmem:[%s15] sm:$0x1]
    %v2153 = vsel %vm70, %v2149, 0.0
    %2154 = vadd.xlane.f32.xlu0 %v2153
    %v2155 = vpop.xlane.xlu0 %2154
    %v2156 = vsel %vm70, %v2150, 0.0
    %2157 = vadd.xlane.f32.xlu0 %v2156
    %v2158 = vpop.xlane.xlu0 %2157
    %v2159 = vmul.f32 %v2155, %v77
    %v2160 = vmul.f32 %v2158, %v77
    %v2161 = vsub.f32 %v2149, %v2159
    %v2162 = vsub.f32 %v2150, %v2160
    %v2163 = vmul.f32 %v2161, %v2161
    %v2164 = vmul.f32 %v2162, %v2162
    %v2165 = vsel %vm70, %v2163, 0.0
    %2166 = vadd.xlane.f32.xlu0 %v2165
    %v2167 = vpop.xlane.xlu0 %2166
    %v2168 = vsel %vm70, %v2164, 0.0
    %2169 = vadd.xlane.f32.xlu0 %v2168
    %v2170 = vpop.xlane.xlu0 %2169
    %v2171 = vmul.f32 %v2167, %v77
    %v2172 = vmul.f32 %v2170, %v77
    %v2173 = vadd.f32 %v2171, 1e-12
    %v2174 = vadd.f32 %v2172, 1e-12
    %v2175 = vrsqrt.pop %v2173
    %v2176 = vrsqrt.pop %v2174
    %v2177 = vmul.f32 %v2161, %v2175
    %v2178 = vmul.f32 %v2162, %v2176
    %v2180 = vlaneseq
    %v2181 = vshrl.u32 %v2180, 7
    %v2182 = vsub.s32 0, %v2181
    %v2183 = vrot.slane %v2151, %v2182
    %v2185 = vmul.f32 %v2177, %v2183
    %v2186 = vmul.f32 %v2178, %v2183
    %v2188 = vlaneseq
    %v2189 = vshrl.u32 %v2188, 7
    %v2190 = vsub.s32 0, %v2189
    %v2191 = vrot.slane %v2152, %v2190
    %v2193 = vadd.f32 %v2185, %v2191
    %v2194 = vadd.f32 %v2186, %v2191
    %s2195 = scalar_lea.vmem %s4, 32
    %v2196 = vld [vmem:[%s2195] sm:$0xff]
    %v2197 = vld [vmem:[%s2195 + $0x8] sm:$0xff]
    %v2198 = vld [vmem:[%s2195 + $0x10] sm:$0xff]
    %v2199 = vld [vmem:[%s2195 + $0x18] sm:$0xff]
    %s2200 = scalar_lea.vmem %s5, 1
    %v2201 = vld [vmem:[%s2200] sm:$0x1]
    %v2203 = vlaneseq
    %v2204 = vshrl.u32 %v2203, 7
    %v2205 = vsub.s32 0, %v2204
    %v2206 = vrot.slane %v2201, %v2205
    %v2209 = vsel %vm70, %v2193, 0
    %v2212 = vsel %vm70, %v2194, 0
    %2214 = vmatprep.subr.mxu0 0.0
    %2215 = vmatpush1.msra.mxu0 %v2196
    %2216 = vmatprep.subr.mxu0 0.0
    %2217 = vmatpush1.msra.mxu0 %v2197
    %2218 = vmatprep.subr.mxu0 0.0
    %2219 = vmatpush1.msra.mxu0 %v2198
    %2220 = vmatprep.subr.mxu0 0.0
    %2221 = vmatpush1.msra.mxu0 %v2199
    %2222 = vmatprep.subr.mxu0 0.0
    %2223 = vmatpush1.msra.mxu0 0.0
    %2224 = vmatprep.subr.mxu0 0.0
    %2225 = vmatpush1.msra.mxu0 0.0
    %2226 = vmatprep.subr.mxu0 0.0
    %2227 = vmatpush1.msra.mxu0 0.0
    %2228 = vmatprep.subr.mxu0 0.0
    %2229 = vmatpush1.msra.mxu0 0.0
    %2230 = vmatprep.subr.mxu0 0.0
    %2231 = vmatpush1.msra.mxu0 0.0
    %2232 = vmatprep.subr.mxu0 0.0
    %2233 = vmatpush1.msra.mxu0 0.0
    %2234 = vmatprep.subr.mxu0 0.0
    %2235 = vmatpush1.msra.mxu0 0.0
    %2236 = vmatprep.subr.mxu0 0.0
    %2237 = vmatpush1.msra.mxu0 0.0
    %2238 = vmatprep.subr.mxu0 0.0
    %2239 = vmatpush1.msra.mxu0 0.0
    %2240 = vmatprep.subr.mxu0 0.0
    %2241 = vmatpush1.msra.mxu0 0.0
    %2242 = vmatprep.subr.mxu0 0.0
    %2243 = vmatpush1.msra.mxu0 0.0
    %2244 = vmatprep.subr.mxu0 0.0
    %2245 = vmatpush1.msra.mxu0 0.0
    %2246 = vmatprep.subr.mxu0 0.0
    %2247 = vmatpush1.msra.mxu0 0.0
    %2248 = vmatprep.subr.mxu0 0.0
    %2249 = vmatpush1.msra.mxu0 0.0
    %2250 = vmatprep.subr.mxu0 0.0
    %2251 = vmatpush1.msra.mxu0 0.0
    %2252 = vmatprep.subr.mxu0 0.0
    %2253 = vmatpush1.msra.mxu0 0.0
    %2254 = vmatprep.subr.mxu0 0.0
    %2255 = vmatpush1.msra.mxu0 0.0
    %2256 = vmatprep.subr.mxu0 0.0
    %2257 = vmatpush1.msra.mxu0 0.0
    %2258 = vmatprep.subr.mxu0 0.0
    %2259 = vmatpush1.msra.mxu0 0.0
    %2260 = vmatprep.subr.mxu0 0.0
    %2261 = vmatpush1.msra.mxu0 0.0
    %2262 = vmatprep.subr.mxu0 0.0
    %2263 = vmatpush1.msra.mxu0 0.0
    %2264 = vmatprep.subr.mxu0 0.0
    %2265 = vmatpush1.msra.mxu0 0.0
    %2266 = vmatprep.subr.mxu0 0.0
    %2267 = vmatpush1.msra.mxu0 0.0
    %2268 = vmatprep.subr.mxu0 0.0
    %2269 = vmatpush1.msra.mxu0 0.0
    %2270 = vmatprep.subr.mxu0 0.0
    %2271 = vmatpush1.msra.mxu0 0.0
    %2272 = vmatprep.subr.mxu0 0.0
    %2273 = vmatpush1.msra.mxu0 0.0
    %2274 = vmatprep.subr.mxu0 0.0
    %2275 = vmatpush1.msra.mxu0 0.0
    %2276 = vmatprep.subr.mxu0 0.0
    %2277 = vmatpush1.msra.mxu0 0.0
    %2278 = vmatprep.mubr.f32.mxu0 0.0
    %2279 = vmatmul.mubr.f32.gmra.mrb[0].mxu0 %v2209
    %v2280 = vpop.f32.mrb[0].mxu0
    %v2281 = vadd.f32 %v2206, %v2280
    %v2282 = vpop.f32.mrb[0].mxu0
    %2283 = vmatprep.mubr.f32.mxu0 0.0
    %2284 = vmatmul.mubr.f32.gmra.mrb[0].mxu0 %v2212
    %v2285 = vpop.f32.mrb[0].mxu0
    %v2286 = vadd.f32 %v2206, %v2285
    %v2287 = vpop.f32.mrb[0].mxu0
    %2288 = vdwg.mxu0
    %s2289 = scalar_lea.vmem %s6, 32
    %v2290 = vld [vmem:[%s2289] sm:$0xff]
    %v2291 = vld [vmem:[%s2289 + $0x8] sm:$0xff]
    %v2292 = vld [vmem:[%s2289 + $0x10] sm:$0xff]
    %v2293 = vld [vmem:[%s2289 + $0x18] sm:$0xff]
    %2295 = vrot.lane.b32.xlu0 %v2281, 96
    %v2296 = vpop.permute.xlu0 %2295
    %v2297 = vsel %vm215, %v2281, 0
    %v2299 = vsel %vm215, %v2296, 0
    %2301 = vmatprep.subr.mxu0 0.0
    %2302 = vmatpush1.xpose.msra.mxu0 %v2299
    %2303 = vmatprep.subr.mxu0 0.0
    %2304 = vmatpush1.xpose.msra.mxu0 0.0
    %2305 = vmatprep.subr.mxu0 0.0
    %2306 = vmatpush1.xpose.msra.mxu0 0.0
    %2307 = vmatprep.subr.mxu0 0.0
    %2308 = vmatpush1.xpose.msra.mxu0 0.0
    %2309 = vmatprep.subr.mxu0 0.0
    %2310 = vmatpush1.xpose.msra.mxu0 0.0
    %2311 = vmatprep.subr.mxu0 0.0
    %2312 = vmatpush1.xpose.msra.mxu0 0.0
    %2313 = vmatprep.subr.mxu0 0.0
    %2314 = vmatpush1.xpose.msra.mxu0 0.0
    %2315 = vmatprep.subr.mxu0 0.0
    %2316 = vmatpush1.xpose.msra.mxu0 0.0
    %2317 = vmatprep.subr.mxu0 0.0
    %2318 = vmatpush1.xpose.msra.mxu0 0.0
    %2319 = vmatprep.subr.mxu0 0.0
    %2320 = vmatpush1.xpose.msra.mxu0 0.0
    %2321 = vmatprep.subr.mxu0 0.0
    %2322 = vmatpush1.xpose.msra.mxu0 0.0
    %2323 = vmatprep.subr.mxu0 0.0
    %2324 = vmatpush1.xpose.msra.mxu0 0.0
    %2325 = vmatprep.subr.mxu0 0.0
    %2326 = vmatpush1.xpose.msra.mxu0 0.0
    %2327 = vmatprep.subr.mxu0 0.0
    %2328 = vmatpush1.xpose.msra.mxu0 0.0
    %2329 = vmatprep.subr.mxu0 0.0
    %2330 = vmatpush1.xpose.msra.mxu0 0.0
    %2331 = vmatprep.subr.mxu0 0.0
    %2332 = vmatpush1.xpose.msra.mxu0 0.0
    %2333 = vmatprep.subr.mxu0 0.0
    %2334 = vmatpush1.xpose.msra.mxu0 0.0
    %2335 = vmatprep.subr.mxu0 0.0
    %2336 = vmatpush1.xpose.msra.mxu0 0.0
    %2337 = vmatprep.subr.mxu0 0.0
    %2338 = vmatpush1.xpose.msra.mxu0 0.0
    %2339 = vmatprep.subr.mxu0 0.0
    %2340 = vmatpush1.xpose.msra.mxu0 0.0
    %2341 = vmatprep.subr.mxu0 0.0
    %2342 = vmatpush1.xpose.msra.mxu0 0.0
    %2343 = vmatprep.subr.mxu0 0.0
    %2344 = vmatpush1.xpose.msra.mxu0 0.0
    %2345 = vmatprep.subr.mxu0 0.0
    %2346 = vmatpush1.xpose.msra.mxu0 0.0
    %2347 = vmatprep.subr.mxu0 0.0
    %2348 = vmatpush1.xpose.msra.mxu0 0.0
    %2349 = vmatprep.subr.mxu0 0.0
    %2350 = vmatpush1.xpose.msra.mxu0 0.0
    %2351 = vmatprep.subr.mxu0 0.0
    %2352 = vmatpush1.xpose.msra.mxu0 0.0
    %2353 = vmatprep.subr.mxu0 0.0
    %2354 = vmatpush1.xpose.msra.mxu0 0.0
    %2355 = vmatprep.subr.mxu0 0.0
    %2356 = vmatpush1.xpose.msra.mxu0 0.0
    %2357 = vmatprep.subr.mxu0 0.0
    %2358 = vmatpush1.xpose.msra.mxu0 0.0
    %2359 = vmatprep.subr.mxu0 0.0
    %2360 = vmatpush1.xpose.msra.mxu0 0.0
    %2361 = vmatprep.subr.mxu0 0.0
    %2362 = vmatpush1.xpose.msra.mxu0 0.0
    %2363 = vmatprep.subr.mxu0 0.0
    %2364 = vmatpush1.xpose.msra.mxu0 0.0
    %2365 = vmatprep.mubr.f32.mxu0 0.0
    %2366 = vmatmul.mubr.f32.gmra.mrb[0].mxu0 %v2297
    %v2367 = vpop.f32.mrb[0].mxu0
    %v2368 = vadd.f32 0.0, %v2367
    %v2369 = vpop.f32.mrb[0].mxu0
    %2370 = vdwg.mxu0
    %2372 = vrot.lane.b32.xlu0 %v2286, 96
    %v2373 = vpop.permute.xlu0 %2372
    %v2374 = vsel %vm215, %v2286, 0
    %v2376 = vsel %vm215, %v2373, 0
    %2378 = vmatprep.subr.mxu0 0.0
    %2379 = vmatpush1.xpose.msra.mxu0 %v2376
    %2380 = vmatprep.subr.mxu0 0.0
    %2381 = vmatpush1.xpose.msra.mxu0 0.0
    %2382 = vmatprep.subr.mxu0 0.0
    %2383 = vmatpush1.xpose.msra.mxu0 0.0
    %2384 = vmatprep.subr.mxu0 0.0
    %2385 = vmatpush1.xpose.msra.mxu0 0.0
    %2386 = vmatprep.subr.mxu0 0.0
    %2387 = vmatpush1.xpose.msra.mxu0 0.0
    %2388 = vmatprep.subr.mxu0 0.0
    %2389 = vmatpush1.xpose.msra.mxu0 0.0
    %2390 = vmatprep.subr.mxu0 0.0
    %2391 = vmatpush1.xpose.msra.mxu0 0.0
    %2392 = vmatprep.subr.mxu0 0.0
    %2393 = vmatpush1.xpose.msra.mxu0 0.0
    %2394 = vmatprep.subr.mxu0 0.0
    %2395 = vmatpush1.xpose.msra.mxu0 0.0
    %2396 = vmatprep.subr.mxu0 0.0
    %2397 = vmatpush1.xpose.msra.mxu0 0.0
    %2398 = vmatprep.subr.mxu0 0.0
    %2399 = vmatpush1.xpose.msra.mxu0 0.0
    %2400 = vmatprep.subr.mxu0 0.0
    %2401 = vmatpush1.xpose.msra.mxu0 0.0
    %2402 = vmatprep.subr.mxu0 0.0
    %2403 = vmatpush1.xpose.msra.mxu0 0.0
    %2404 = vmatprep.subr.mxu0 0.0
    %2405 = vmatpush1.xpose.msra.mxu0 0.0
    %2406 = vmatprep.subr.mxu0 0.0
    %2407 = vmatpush1.xpose.msra.mxu0 0.0
    %2408 = vmatprep.subr.mxu0 0.0
    %2409 = vmatpush1.xpose.msra.mxu0 0.0
    %2410 = vmatprep.subr.mxu0 0.0
    %2411 = vmatpush1.xpose.msra.mxu0 0.0
    %2412 = vmatprep.subr.mxu0 0.0
    %2413 = vmatpush1.xpose.msra.mxu0 0.0
    %2414 = vmatprep.subr.mxu0 0.0
    %2415 = vmatpush1.xpose.msra.mxu0 0.0
    %2416 = vmatprep.subr.mxu0 0.0
    %2417 = vmatpush1.xpose.msra.mxu0 0.0
    %2418 = vmatprep.subr.mxu0 0.0
    %2419 = vmatpush1.xpose.msra.mxu0 0.0
    %2420 = vmatprep.subr.mxu0 0.0
    %2421 = vmatpush1.xpose.msra.mxu0 0.0
    %2422 = vmatprep.subr.mxu0 0.0
    %2423 = vmatpush1.xpose.msra.mxu0 0.0
    %2424 = vmatprep.subr.mxu0 0.0
    %2425 = vmatpush1.xpose.msra.mxu0 0.0
    %2426 = vmatprep.subr.mxu0 0.0
    %2427 = vmatpush1.xpose.msra.mxu0 0.0
    %2428 = vmatprep.subr.mxu0 0.0
    %2429 = vmatpush1.xpose.msra.mxu0 0.0
    %2430 = vmatprep.subr.mxu0 0.0
    %2431 = vmatpush1.xpose.msra.mxu0 0.0
    %2432 = vmatprep.subr.mxu0 0.0
    %2433 = vmatpush1.xpose.msra.mxu0 0.0
    %2434 = vmatprep.subr.mxu0 0.0
    %2435 = vmatpush1.xpose.msra.mxu0 0.0
    %2436 = vmatprep.subr.mxu0 0.0
    %2437 = vmatpush1.xpose.msra.mxu0 0.0
    %2438 = vmatprep.subr.mxu0 0.0
    %2439 = vmatpush1.xpose.msra.mxu0 0.0
    %2440 = vmatprep.subr.mxu0 0.0
    %2441 = vmatpush1.xpose.msra.mxu0 0.0
    %2442 = vmatprep.mubr.f32.mxu0 0.0
    %2443 = vmatmul.mubr.f32.gmra.mrb[0].mxu0 %v2374
    %v2444 = vpop.f32.mrb[0].mxu0
    %v2445 = vadd.f32 0.0, %v2444
    %v2446 = vpop.f32.mrb[0].mxu0
    %2447 = vdwg.mxu0
    %v2448 = vmul.f32 %v2368, 0.35355338
    %v2449 = vmul.f32 %v2445, 0.35355338
    %v2450 = vadd.f32 %v2448, %v374
    %v2451 = vadd.f32 %v2449, %v378
    %v2452 = vsel %vm215, %v2450, -inf
    %2453 = vmax.xlane.f32.xlu0 %v2452
    %v2454 = vpop.xlane.xlu0 %2453
    %v2455 = vsel %vm215, %v2451, -inf
    %2456 = vmax.xlane.f32.xlu0 %v2455
    %v2457 = vpop.xlane.xlu0 %2456
    %v2458 = vsub.f32 %v2450, %v2454
    %v2459 = vsub.f32 %v2451, %v2457
    %v2460 = vmul.f32 %v2458, 1.442695
    %v2461 = vpow.pop %v2460
    %v2462 = vmul.f32 %v2459, 1.442695
    %v2463 = vpow.pop %v2462
    %v2464 = vsel %vm215, %v2461, 0.0
    %2465 = vadd.xlane.f32.xlu0 %v2464
    %v2466 = vpop.xlane.xlu0 %2465
    %v2467 = vsel %vm215, %v2463, 0.0
    %2468 = vadd.xlane.f32.xlu0 %v2467
    %v2469 = vpop.xlane.xlu0 %2468
    %v2470 = vrcp.pop %v2466
    %v2471 = vrcp.pop %v2469
    %v2472 = vmul.f32 %v2461, %v2470
    %v2473 = vmul.f32 %v2463, %v2471
    %2474 = vrot.lane.b32.xlu0 %v2281, 64
    %v2475 = vpop.permute.xlu0 %2474
    %v2478 = vsel %vm215, %v2472, 0
    %2480 = vmatprep.subr.mxu0 0.0
    %2481 = vmatpush1.msra.mxu0 %v2475
    %2482 = vmatprep.subr.mxu0 0.0
    %2483 = vmatpush1.msra.mxu0 0.0
    %2484 = vmatprep.subr.mxu0 0.0
    %2485 = vmatpush1.msra.mxu0 0.0
    %2486 = vmatprep.subr.mxu0 0.0
    %2487 = vmatpush1.msra.mxu0 0.0
    %2488 = vmatprep.subr.mxu0 0.0
    %2489 = vmatpush1.msra.mxu0 0.0
    %2490 = vmatprep.subr.mxu0 0.0
    %2491 = vmatpush1.msra.mxu0 0.0
    %2492 = vmatprep.subr.mxu0 0.0
    %2493 = vmatpush1.msra.mxu0 0.0
    %2494 = vmatprep.subr.mxu0 0.0
    %2495 = vmatpush1.msra.mxu0 0.0
    %2496 = vmatprep.subr.mxu0 0.0
    %2497 = vmatpush1.msra.mxu0 0.0
    %2498 = vmatprep.subr.mxu0 0.0
    %2499 = vmatpush1.msra.mxu0 0.0
    %2500 = vmatprep.subr.mxu0 0.0
    %2501 = vmatpush1.msra.mxu0 0.0
    %2502 = vmatprep.subr.mxu0 0.0
    %2503 = vmatpush1.msra.mxu0 0.0
    %2504 = vmatprep.subr.mxu0 0.0
    %2505 = vmatpush1.msra.mxu0 0.0
    %2506 = vmatprep.subr.mxu0 0.0
    %2507 = vmatpush1.msra.mxu0 0.0
    %2508 = vmatprep.subr.mxu0 0.0
    %2509 = vmatpush1.msra.mxu0 0.0
    %2510 = vmatprep.subr.mxu0 0.0
    %2511 = vmatpush1.msra.mxu0 0.0
    %2512 = vmatprep.subr.mxu0 0.0
    %2513 = vmatpush1.msra.mxu0 0.0
    %2514 = vmatprep.subr.mxu0 0.0
    %2515 = vmatpush1.msra.mxu0 0.0
    %2516 = vmatprep.subr.mxu0 0.0
    %2517 = vmatpush1.msra.mxu0 0.0
    %2518 = vmatprep.subr.mxu0 0.0
    %2519 = vmatpush1.msra.mxu0 0.0
    %2520 = vmatprep.subr.mxu0 0.0
    %2521 = vmatpush1.msra.mxu0 0.0
    %2522 = vmatprep.subr.mxu0 0.0
    %2523 = vmatpush1.msra.mxu0 0.0
    %2524 = vmatprep.subr.mxu0 0.0
    %2525 = vmatpush1.msra.mxu0 0.0
    %2526 = vmatprep.subr.mxu0 0.0
    %2527 = vmatpush1.msra.mxu0 0.0
    %2528 = vmatprep.subr.mxu0 0.0
    %2529 = vmatpush1.msra.mxu0 0.0
    %2530 = vmatprep.subr.mxu0 0.0
    %2531 = vmatpush1.msra.mxu0 0.0
    %2532 = vmatprep.subr.mxu0 0.0
    %2533 = vmatpush1.msra.mxu0 0.0
    %2534 = vmatprep.subr.mxu0 0.0
    %2535 = vmatpush1.msra.mxu0 0.0
    %2536 = vmatprep.subr.mxu0 0.0
    %2537 = vmatpush1.msra.mxu0 0.0
    %2538 = vmatprep.subr.mxu0 0.0
    %2539 = vmatpush1.msra.mxu0 0.0
    %2540 = vmatprep.subr.mxu0 0.0
    %2541 = vmatpush1.msra.mxu0 0.0
    %2542 = vmatprep.subr.mxu0 0.0
    %2543 = vmatpush1.msra.mxu0 0.0
    %2544 = vmatprep.mubr.f32.mxu0 0.0
    %2545 = vmatmul.mubr.f32.gmra.mrb[0].mxu0 %v2478
    %v2546 = vpop.f32.mrb[0].mxu0
    %v2547 = vadd.f32 0.0, %v2546
    %v2548 = vpop.f32.mrb[0].mxu0
    %2549 = vdwg.mxu0
    %2550 = vrot.lane.b32.xlu0 %v2286, 64
    %v2551 = vpop.permute.xlu0 %2550
    %v2554 = vsel %vm215, %v2473, 0
    %2556 = vmatprep.subr.mxu0 0.0
    %2557 = vmatpush1.msra.mxu0 %v2551
    %2558 = vmatprep.subr.mxu0 0.0
    %2559 = vmatpush1.msra.mxu0 0.0
    %2560 = vmatprep.subr.mxu0 0.0
    %2561 = vmatpush1.msra.mxu0 0.0
    %2562 = vmatprep.subr.mxu0 0.0
    %2563 = vmatpush1.msra.mxu0 0.0
    %2564 = vmatprep.subr.mxu0 0.0
    %2565 = vmatpush1.msra.mxu0 0.0
    %2566 = vmatprep.subr.mxu0 0.0
    %2567 = vmatpush1.msra.mxu0 0.0
    %2568 = vmatprep.subr.mxu0 0.0
    %2569 = vmatpush1.msra.mxu0 0.0
    %2570 = vmatprep.subr.mxu0 0.0
    %2571 = vmatpush1.msra.mxu0 0.0
    %2572 = vmatprep.subr.mxu0 0.0
    %2573 = vmatpush1.msra.mxu0 0.0
    %2574 = vmatprep.subr.mxu0 0.0
    %2575 = vmatpush1.msra.mxu0 0.0
    %2576 = vmatprep.subr.mxu0 0.0
    %2577 = vmatpush1.msra.mxu0 0.0
    %2578 = vmatprep.subr.mxu0 0.0
    %2579 = vmatpush1.msra.mxu0 0.0
    %2580 = vmatprep.subr.mxu0 0.0
    %2581 = vmatpush1.msra.mxu0 0.0
    %2582 = vmatprep.subr.mxu0 0.0
    %2583 = vmatpush1.msra.mxu0 0.0
    %2584 = vmatprep.subr.mxu0 0.0
    %2585 = vmatpush1.msra.mxu0 0.0
    %2586 = vmatprep.subr.mxu0 0.0
    %2587 = vmatpush1.msra.mxu0 0.0
    %2588 = vmatprep.subr.mxu0 0.0
    %2589 = vmatpush1.msra.mxu0 0.0
    %2590 = vmatprep.subr.mxu0 0.0
    %2591 = vmatpush1.msra.mxu0 0.0
    %2592 = vmatprep.subr.mxu0 0.0
    %2593 = vmatpush1.msra.mxu0 0.0
    %2594 = vmatprep.subr.mxu0 0.0
    %2595 = vmatpush1.msra.mxu0 0.0
    %2596 = vmatprep.subr.mxu0 0.0
    %2597 = vmatpush1.msra.mxu0 0.0
    %2598 = vmatprep.subr.mxu0 0.0
    %2599 = vmatpush1.msra.mxu0 0.0
    %2600 = vmatprep.subr.mxu0 0.0
    %2601 = vmatpush1.msra.mxu0 0.0
    %2602 = vmatprep.subr.mxu0 0.0
    %2603 = vmatpush1.msra.mxu0 0.0
    %2604 = vmatprep.subr.mxu0 0.0
    %2605 = vmatpush1.msra.mxu0 0.0
    %2606 = vmatprep.subr.mxu0 0.0
    %2607 = vmatpush1.msra.mxu0 0.0
    %2608 = vmatprep.subr.mxu0 0.0
    %2609 = vmatpush1.msra.mxu0 0.0
    %2610 = vmatprep.subr.mxu0 0.0
    %2611 = vmatpush1.msra.mxu0 0.0
    %2612 = vmatprep.subr.mxu0 0.0
    %2613 = vmatpush1.msra.mxu0 0.0
    %2614 = vmatprep.subr.mxu0 0.0
    %2615 = vmatpush1.msra.mxu0 0.0
    %2616 = vmatprep.subr.mxu0 0.0
    %2617 = vmatpush1.msra.mxu0 0.0
    %2618 = vmatprep.subr.mxu0 0.0
    %2619 = vmatpush1.msra.mxu0 0.0
    %2620 = vmatprep.mubr.f32.mxu0 0.0
    %2621 = vmatmul.mubr.f32.gmra.mrb[0].mxu0 %v2554
    %v2622 = vpop.f32.mrb[0].mxu0
    %v2623 = vadd.f32 0.0, %v2622
    %v2624 = vpop.f32.mrb[0].mxu0
    %2625 = vdwg.mxu0
    %2626 = vrot.lane.b32.xlu0 %v2281, 120
    %v2627 = vpop.permute.xlu0 %2626
    %2628 = vrot.lane.b32.xlu0 %v2281, 88
    %v2629 = vpop.permute.xlu0 %2628
    %v2630 = vsel %vm215, %v2627, 0
    %v2632 = vsel %vm215, %v2629, 0
    %2634 = vmatprep.subr.mxu0 0.0
    %2635 = vmatpush1.xpose.msra.mxu0 %v2632
    %2636 = vmatprep.subr.mxu0 0.0
    %2637 = vmatpush1.xpose.msra.mxu0 0.0
    %2638 = vmatprep.subr.mxu0 0.0
    %2639 = vmatpush1.xpose.msra.mxu0 0.0
    %2640 = vmatprep.subr.mxu0 0.0
    %2641 = vmatpush1.xpose.msra.mxu0 0.0
    %2642 = vmatprep.subr.mxu0 0.0
    %2643 = vmatpush1.xpose.msra.mxu0 0.0
    %2644 = vmatprep.subr.mxu0 0.0
    %2645 = vmatpush1.xpose.msra.mxu0 0.0
    %2646 = vmatprep.subr.mxu0 0.0
    %2647 = vmatpush1.xpose.msra.mxu0 0.0
    %2648 = vmatprep.subr.mxu0 0.0
    %2649 = vmatpush1.xpose.msra.mxu0 0.0
    %2650 = vmatprep.subr.mxu0 0.0
    %2651 = vmatpush1.xpose.msra.mxu0 0.0
    %2652 = vmatprep.subr.mxu0 0.0
    %2653 = vmatpush1.xpose.msra.mxu0 0.0
    %2654 = vmatprep.subr.mxu0 0.0
    %2655 = vmatpush1.xpose.msra.mxu0 0.0
    %2656 = vmatprep.subr.mxu0 0.0
    %2657 = vmatpush1.xpose.msra.mxu0 0.0
    %2658 = vmatprep.subr.mxu0 0.0
    %2659 = vmatpush1.xpose.msra.mxu0 0.0
    %2660 = vmatprep.subr.mxu0 0.0
    %2661 = vmatpush1.xpose.msra.mxu0 0.0
    %2662 = vmatprep.subr.mxu0 0.0
    %2663 = vmatpush1.xpose.msra.mxu0 0.0
    %2664 = vmatprep.subr.mxu0 0.0
    %2665 = vmatpush1.xpose.msra.mxu0 0.0
    %2666 = vmatprep.subr.mxu0 0.0
    %2667 = vmatpush1.xpose.msra.mxu0 0.0
    %2668 = vmatprep.subr.mxu0 0.0
    %2669 = vmatpush1.xpose.msra.mxu0 0.0
    %2670 = vmatprep.subr.mxu0 0.0
    %2671 = vmatpush1.xpose.msra.mxu0 0.0
    %2672 = vmatprep.subr.mxu0 0.0
    %2673 = vmatpush1.xpose.msra.mxu0 0.0
    %2674 = vmatprep.subr.mxu0 0.0
    %2675 = vmatpush1.xpose.msra.mxu0 0.0
    %2676 = vmatprep.subr.mxu0 0.0
    %2677 = vmatpush1.xpose.msra.mxu0 0.0
    %2678 = vmatprep.subr.mxu0 0.0
    %2679 = vmatpush1.xpose.msra.mxu0 0.0
    %2680 = vmatprep.subr.mxu0 0.0
    %2681 = vmatpush1.xpose.msra.mxu0 0.0
    %2682 = vmatprep.subr.mxu0 0.0
    %2683 = vmatpush1.xpose.msra.mxu0 0.0
    %2684 = vmatprep.subr.mxu0 0.0
    %2685 = vmatpush1.xpose.msra.mxu0 0.0
    %2686 = vmatprep.subr.mxu0 0.0
    %2687 = vmatpush1.xpose.msra.mxu0 0.0
    %2688 = vmatprep.subr.mxu0 0.0
    %2689 = vmatpush1.xpose.msra.mxu0 0.0
    %2690 = vmatprep.subr.mxu0 0.0
    %2691 = vmatpush1.xpose.msra.mxu0 0.0
    %2692 = vmatprep.subr.mxu0 0.0
    %2693 = vmatpush1.xpose.msra.mxu0 0.0
    %2694 = vmatprep.subr.mxu0 0.0
    %2695 = vmatpush1.xpose.msra.mxu0 0.0
    %2696 = vmatprep.subr.mxu0 0.0
    %2697 = vmatpush1.xpose.msra.mxu0 0.0
    %2698 = vmatprep.mubr.f32.mxu0 0.0
    %2699 = vmatmul.mubr.f32.gmra.mrb[0].mxu0 %v2630
    %v2700 = vpop.f32.mrb[0].mxu0
    %v2701 = vadd.f32 0.0, %v2700
    %v2702 = vpop.f32.mrb[0].mxu0
    %2703 = vdwg.mxu0
    %2704 = vrot.lane.b32.xlu0 %v2286, 120
    %v2705 = vpop.permute.xlu0 %2704
    %2706 = vrot.lane.b32.xlu0 %v2286, 88
    %v2707 = vpop.permute.xlu0 %2706
    %v2708 = vsel %vm215, %v2705, 0
    %v2710 = vsel %vm215, %v2707, 0
    %2712 = vmatprep.subr.mxu0 0.0
    %2713 = vmatpush1.xpose.msra.mxu0 %v2710
    %2714 = vmatprep.subr.mxu0 0.0
    %2715 = vmatpush1.xpose.msra.mxu0 0.0
    %2716 = vmatprep.subr.mxu0 0.0
    %2717 = vmatpush1.xpose.msra.mxu0 0.0
    %2718 = vmatprep.subr.mxu0 0.0
    %2719 = vmatpush1.xpose.msra.mxu0 0.0
    %2720 = vmatprep.subr.mxu0 0.0
    %2721 = vmatpush1.xpose.msra.mxu0 0.0
    %2722 = vmatprep.subr.mxu0 0.0
    %2723 = vmatpush1.xpose.msra.mxu0 0.0
    %2724 = vmatprep.subr.mxu0 0.0
    %2725 = vmatpush1.xpose.msra.mxu0 0.0
    %2726 = vmatprep.subr.mxu0 0.0
    %2727 = vmatpush1.xpose.msra.mxu0 0.0
    %2728 = vmatprep.subr.mxu0 0.0
    %2729 = vmatpush1.xpose.msra.mxu0 0.0
    %2730 = vmatprep.subr.mxu0 0.0
    %2731 = vmatpush1.xpose.msra.mxu0 0.0
    %2732 = vmatprep.subr.mxu0 0.0
    %2733 = vmatpush1.xpose.msra.mxu0 0.0
    %2734 = vmatprep.subr.mxu0 0.0
    %2735 = vmatpush1.xpose.msra.mxu0 0.0
    %2736 = vmatprep.subr.mxu0 0.0
    %2737 = vmatpush1.xpose.msra.mxu0 0.0
    %2738 = vmatprep.subr.mxu0 0.0
    %2739 = vmatpush1.xpose.msra.mxu0 0.0
    %2740 = vmatprep.subr.mxu0 0.0
    %2741 = vmatpush1.xpose.msra.mxu0 0.0
    %2742 = vmatprep.subr.mxu0 0.0
    %2743 = vmatpush1.xpose.msra.mxu0 0.0
    %2744 = vmatprep.subr.mxu0 0.0
    %2745 = vmatpush1.xpose.msra.mxu0 0.0
    %2746 = vmatprep.subr.mxu0 0.0
    %2747 = vmatpush1.xpose.msra.mxu0 0.0
    %2748 = vmatprep.subr.mxu0 0.0
    %2749 = vmatpush1.xpose.msra.mxu0 0.0
    %2750 = vmatprep.subr.mxu0 0.0
    %2751 = vmatpush1.xpose.msra.mxu0 0.0
    %2752 = vmatprep.subr.mxu0 0.0
    %2753 = vmatpush1.xpose.msra.mxu0 0.0
    %2754 = vmatprep.subr.mxu0 0.0
    %2755 = vmatpush1.xpose.msra.mxu0 0.0
    %2756 = vmatprep.subr.mxu0 0.0
    %2757 = vmatpush1.xpose.msra.mxu0 0.0
    %2758 = vmatprep.subr.mxu0 0.0
    %2759 = vmatpush1.xpose.msra.mxu0 0.0
    %2760 = vmatprep.subr.mxu0 0.0
    %2761 = vmatpush1.xpose.msra.mxu0 0.0
    %2762 = vmatprep.subr.mxu0 0.0
    %2763 = vmatpush1.xpose.msra.mxu0 0.0
    %2764 = vmatprep.subr.mxu0 0.0
    %2765 = vmatpush1.xpose.msra.mxu0 0.0
    %2766 = vmatprep.subr.mxu0 0.0
    %2767 = vmatpush1.xpose.msra.mxu0 0.0
    %2768 = vmatprep.subr.mxu0 0.0
    %2769 = vmatpush1.xpose.msra.mxu0 0.0
    %2770 = vmatprep.subr.mxu0 0.0
    %2771 = vmatpush1.xpose.msra.mxu0 0.0
    %2772 = vmatprep.subr.mxu0 0.0
    %2773 = vmatpush1.xpose.msra.mxu0 0.0
    %2774 = vmatprep.subr.mxu0 0.0
    %2775 = vmatpush1.xpose.msra.mxu0 0.0
    %2776 = vmatprep.mubr.f32.mxu0 0.0
    %2777 = vmatmul.mubr.f32.gmra.mrb[0].mxu0 %v2708
    %v2778 = vpop.f32.mrb[0].mxu0
    %v2779 = vadd.f32 0.0, %v2778
    %v2780 = vpop.f32.mrb[0].mxu0
    %2781 = vdwg.mxu0
    %v2782 = vmul.f32 %v2701, 0.35355338
    %v2783 = vmul.f32 %v2779, 0.35355338
    %v2784 = vadd.f32 %v2782, %v374
    %v2785 = vadd.f32 %v2783, %v378
    %v2786 = vsel %vm215, %v2784, -inf
    %2787 = vmax.xlane.f32.xlu0 %v2786
    %v2788 = vpop.xlane.xlu0 %2787
    %v2789 = vsel %vm215, %v2785, -inf
    %2790 = vmax.xlane.f32.xlu0 %v2789
    %v2791 = vpop.xlane.xlu0 %2790
    %v2792 = vsub.f32 %v2784, %v2788
    %v2793 = vsub.f32 %v2785, %v2791
    %v2794 = vmul.f32 %v2792, 1.442695
    %v2795 = vpow.pop %v2794
    %v2796 = vmul.f32 %v2793, 1.442695
    %v2797 = vpow.pop %v2796
    %v2798 = vsel %vm215, %v2795, 0.0
    %2799 = vadd.xlane.f32.xlu0 %v2798
    %v2800 = vpop.xlane.xlu0 %2799
    %v2801 = vsel %vm215, %v2797, 0.0
    %2802 = vadd.xlane.f32.xlu0 %v2801
    %v2803 = vpop.xlane.xlu0 %2802
    %v2804 = vrcp.pop %v2800
    %v2805 = vrcp.pop %v2803
    %v2806 = vmul.f32 %v2795, %v2804
    %v2807 = vmul.f32 %v2797, %v2805
    %2808 = vrot.lane.b32.xlu0 %v2281, 56
    %v2809 = vpop.permute.xlu0 %2808
    %v2812 = vsel %vm215, %v2806, 0
    %2814 = vmatprep.subr.mxu0 0.0
    %2815 = vmatpush1.msra.mxu0 %v2809
    %2816 = vmatprep.subr.mxu0 0.0
    %2817 = vmatpush1.msra.mxu0 0.0
    %2818 = vmatprep.subr.mxu0 0.0
    %2819 = vmatpush1.msra.mxu0 0.0
    %2820 = vmatprep.subr.mxu0 0.0
    %2821 = vmatpush1.msra.mxu0 0.0
    %2822 = vmatprep.subr.mxu0 0.0
    %2823 = vmatpush1.msra.mxu0 0.0
    %2824 = vmatprep.subr.mxu0 0.0
    %2825 = vmatpush1.msra.mxu0 0.0
    %2826 = vmatprep.subr.mxu0 0.0
    %2827 = vmatpush1.msra.mxu0 0.0
    %2828 = vmatprep.subr.mxu0 0.0
    %2829 = vmatpush1.msra.mxu0 0.0
    %2830 = vmatprep.subr.mxu0 0.0
    %2831 = vmatpush1.msra.mxu0 0.0
    %2832 = vmatprep.subr.mxu0 0.0
    %2833 = vmatpush1.msra.mxu0 0.0
    %2834 = vmatprep.subr.mxu0 0.0
    %2835 = vmatpush1.msra.mxu0 0.0
    %2836 = vmatprep.subr.mxu0 0.0
    %2837 = vmatpush1.msra.mxu0 0.0
    %2838 = vmatprep.subr.mxu0 0.0
    %2839 = vmatpush1.msra.mxu0 0.0
    %2840 = vmatprep.subr.mxu0 0.0
    %2841 = vmatpush1.msra.mxu0 0.0
    %2842 = vmatprep.subr.mxu0 0.0
    %2843 = vmatpush1.msra.mxu0 0.0
    %2844 = vmatprep.subr.mxu0 0.0
    %2845 = vmatpush1.msra.mxu0 0.0
    %2846 = vmatprep.subr.mxu0 0.0
    %2847 = vmatpush1.msra.mxu0 0.0
    %2848 = vmatprep.subr.mxu0 0.0
    %2849 = vmatpush1.msra.mxu0 0.0
    %2850 = vmatprep.subr.mxu0 0.0
    %2851 = vmatpush1.msra.mxu0 0.0
    %2852 = vmatprep.subr.mxu0 0.0
    %2853 = vmatpush1.msra.mxu0 0.0
    %2854 = vmatprep.subr.mxu0 0.0
    %2855 = vmatpush1.msra.mxu0 0.0
    %2856 = vmatprep.subr.mxu0 0.0
    %2857 = vmatpush1.msra.mxu0 0.0
    %2858 = vmatprep.subr.mxu0 0.0
    %2859 = vmatpush1.msra.mxu0 0.0
    %2860 = vmatprep.subr.mxu0 0.0
    %2861 = vmatpush1.msra.mxu0 0.0
    %2862 = vmatprep.subr.mxu0 0.0
    %2863 = vmatpush1.msra.mxu0 0.0
    %2864 = vmatprep.subr.mxu0 0.0
    %2865 = vmatpush1.msra.mxu0 0.0
    %2866 = vmatprep.subr.mxu0 0.0
    %2867 = vmatpush1.msra.mxu0 0.0
    %2868 = vmatprep.subr.mxu0 0.0
    %2869 = vmatpush1.msra.mxu0 0.0
    %2870 = vmatprep.subr.mxu0 0.0
    %2871 = vmatpush1.msra.mxu0 0.0
    %2872 = vmatprep.subr.mxu0 0.0
    %2873 = vmatpush1.msra.mxu0 0.0
    %2874 = vmatprep.subr.mxu0 0.0
    %2875 = vmatpush1.msra.mxu0 0.0
    %2876 = vmatprep.subr.mxu0 0.0
    %2877 = vmatpush1.msra.mxu0 0.0
    %2878 = vmatprep.mubr.f32.mxu0 0.0
    %2879 = vmatmul.mubr.f32.gmra.mrb[0].mxu0 %v2812
    %v2880 = vpop.f32.mrb[0].mxu0
    %v2881 = vadd.f32 0.0, %v2880
    %v2882 = vpop.f32.mrb[0].mxu0
    %2883 = vdwg.mxu0
    %2884 = vrot.lane.b32.xlu0 %v2286, 56
    %v2885 = vpop.permute.xlu0 %2884
    %v2888 = vsel %vm215, %v2807, 0
    %2890 = vmatprep.subr.mxu0 0.0
    %2891 = vmatpush1.msra.mxu0 %v2885
    %2892 = vmatprep.subr.mxu0 0.0
    %2893 = vmatpush1.msra.mxu0 0.0
    %2894 = vmatprep.subr.mxu0 0.0
    %2895 = vmatpush1.msra.mxu0 0.0
    %2896 = vmatprep.subr.mxu0 0.0
    %2897 = vmatpush1.msra.mxu0 0.0
    %2898 = vmatprep.subr.mxu0 0.0
    %2899 = vmatpush1.msra.mxu0 0.0
    %2900 = vmatprep.subr.mxu0 0.0
    %2901 = vmatpush1.msra.mxu0 0.0
    %2902 = vmatprep.subr.mxu0 0.0
    %2903 = vmatpush1.msra.mxu0 0.0
    %2904 = vmatprep.subr.mxu0 0.0
    %2905 = vmatpush1.msra.mxu0 0.0
    %2906 = vmatprep.subr.mxu0 0.0
    %2907 = vmatpush1.msra.mxu0 0.0
    %2908 = vmatprep.subr.mxu0 0.0
    %2909 = vmatpush1.msra.mxu0 0.0
    %2910 = vmatprep.subr.mxu0 0.0
    %2911 = vmatpush1.msra.mxu0 0.0
    %2912 = vmatprep.subr.mxu0 0.0
    %2913 = vmatpush1.msra.mxu0 0.0
    %2914 = vmatprep.subr.mxu0 0.0
    %2915 = vmatpush1.msra.mxu0 0.0
    %2916 = vmatprep.subr.mxu0 0.0
    %2917 = vmatpush1.msra.mxu0 0.0
    %2918 = vmatprep.subr.mxu0 0.0
    %2919 = vmatpush1.msra.mxu0 0.0
    %2920 = vmatprep.subr.mxu0 0.0
    %2921 = vmatpush1.msra.mxu0 0.0
    %2922 = vmatprep.subr.mxu0 0.0
    %2923 = vmatpush1.msra.mxu0 0.0
    %2924 = vmatprep.subr.mxu0 0.0
    %2925 = vmatpush1.msra.mxu0 0.0
    %2926 = vmatprep.subr.mxu0 0.0
    %2927 = vmatpush1.msra.mxu0 0.0
    %2928 = vmatprep.subr.mxu0 0.0
    %2929 = vmatpush1.msra.mxu0 0.0
    %2930 = vmatprep.subr.mxu0 0.0
    %2931 = vmatpush1.msra.mxu0 0.0
    %2932 = vmatprep.subr.mxu0 0.0
    %2933 = vmatpush1.msra.mxu0 0.0
    %2934 = vmatprep.subr.mxu0 0.0
    %2935 = vmatpush1.msra.mxu0 0.0
    %2936 = vmatprep.subr.mxu0 0.0
    %2937 = vmatpush1.msra.mxu0 0.0
    %2938 = vmatprep.subr.mxu0 0.0
    %2939 = vmatpush1.msra.mxu0 0.0
    %2940 = vmatprep.subr.mxu0 0.0
    %2941 = vmatpush1.msra.mxu0 0.0
    %2942 = vmatprep.subr.mxu0 0.0
    %2943 = vmatpush1.msra.mxu0 0.0
    %2944 = vmatprep.subr.mxu0 0.0
    %2945 = vmatpush1.msra.mxu0 0.0
    %2946 = vmatprep.subr.mxu0 0.0
    %2947 = vmatpush1.msra.mxu0 0.0
    %2948 = vmatprep.subr.mxu0 0.0
    %2949 = vmatpush1.msra.mxu0 0.0
    %2950 = vmatprep.subr.mxu0 0.0
    %2951 = vmatpush1.msra.mxu0 0.0
    %2952 = vmatprep.subr.mxu0 0.0
    %2953 = vmatpush1.msra.mxu0 0.0
    %2954 = vmatprep.mubr.f32.mxu0 0.0
    %2955 = vmatmul.mubr.f32.gmra.mrb[0].mxu0 %v2888
    %v2956 = vpop.f32.mrb[0].mxu0
    %v2957 = vadd.f32 0.0, %v2956
    %v2958 = vpop.f32.mrb[0].mxu0
    %2959 = vdwg.mxu0
    %v2961 = vsel %vm215, %v2881, 0
    %v2964 = vsel %vm215, %v2957, 0
    %2966 = vmatprep.subr.mxu0 0.0
    %2967 = vmatpush1.msra.mxu0 %v2291
    %2968 = vmatprep.subr.mxu0 0.0
    %2969 = vmatpush1.msra.mxu0 0.0
    %2970 = vmatprep.subr.mxu0 0.0
    %2971 = vmatpush1.msra.mxu0 0.0
    %2972 = vmatprep.subr.mxu0 0.0
    %2973 = vmatpush1.msra.mxu0 0.0
    %2974 = vmatprep.subr.mxu0 0.0
    %2975 = vmatpush1.msra.mxu0 0.0
    %2976 = vmatprep.subr.mxu0 0.0
    %2977 = vmatpush1.msra.mxu0 0.0
    %2978 = vmatprep.subr.mxu0 0.0
    %2979 = vmatpush1.msra.mxu0 0.0
    %2980 = vmatprep.subr.mxu0 0.0
    %2981 = vmatpush1.msra.mxu0 0.0
    %2982 = vmatprep.subr.mxu0 0.0
    %2983 = vmatpush1.msra.mxu0 0.0
    %2984 = vmatprep.subr.mxu0 0.0
    %2985 = vmatpush1.msra.mxu0 0.0
    %2986 = vmatprep.subr.mxu0 0.0
    %2987 = vmatpush1.msra.mxu0 0.0
    %2988 = vmatprep.subr.mxu0 0.0
    %2989 = vmatpush1.msra.mxu0 0.0
    %2990 = vmatprep.subr.mxu0 0.0
    %2991 = vmatpush1.msra.mxu0 0.0
    %2992 = vmatprep.subr.mxu0 0.0
    %2993 = vmatpush1.msra.mxu0 0.0
    %2994 = vmatprep.subr.mxu0 0.0
    %2995 = vmatpush1.msra.mxu0 0.0
    %2996 = vmatprep.subr.mxu0 0.0
    %2997 = vmatpush1.msra.mxu0 0.0
    %2998 = vmatprep.subr.mxu0 0.0
    %2999 = vmatpush1.msra.mxu0 0.0
    %3000 = vmatprep.subr.mxu0 0.0
    %3001 = vmatpush1.msra.mxu0 0.0
    %3002 = vmatprep.subr.mxu0 0.0
    %3003 = vmatpush1.msra.mxu0 0.0
    %3004 = vmatprep.subr.mxu0 0.0
    %3005 = vmatpush1.msra.mxu0 0.0
    %3006 = vmatprep.subr.mxu0 0.0
    %3007 = vmatpush1.msra.mxu0 0.0
    %3008 = vmatprep.subr.mxu0 0.0
    %3009 = vmatpush1.msra.mxu0 0.0
    %3010 = vmatprep.subr.mxu0 0.0
    %3011 = vmatpush1.msra.mxu0 0.0
    %3012 = vmatprep.subr.mxu0 0.0
    %3013 = vmatpush1.msra.mxu0 0.0
    %3014 = vmatprep.subr.mxu0 0.0
    %3015 = vmatpush1.msra.mxu0 0.0
    %3016 = vmatprep.subr.mxu0 0.0
    %3017 = vmatpush1.msra.mxu0 0.0
    %3018 = vmatprep.subr.mxu0 0.0
    %3019 = vmatpush1.msra.mxu0 0.0
    %3020 = vmatprep.subr.mxu0 0.0
    %3021 = vmatpush1.msra.mxu0 0.0
    %3022 = vmatprep.subr.mxu0 0.0
    %3023 = vmatpush1.msra.mxu0 0.0
    %3024 = vmatprep.subr.mxu0 0.0
    %3025 = vmatpush1.msra.mxu0 0.0
    %3026 = vmatprep.subr.mxu0 0.0
    %3027 = vmatpush1.msra.mxu0 0.0
    %3028 = vmatprep.subr.mxu0 0.0
    %3029 = vmatpush1.msra.mxu0 0.0
    %3030 = vmatprep.mubr.f32.mxu0 0.0
    %3031 = vmatmul.mubr.f32.gmra.mrb[0].mxu0 %v2961
    %v3032 = vpop.f32.mrb[0].mxu0
    %v3033 = vadd.f32 0.0, %v3032
    %v3034 = vpop.f32.mrb[0].mxu0
    %3035 = vmatprep.mubr.f32.mxu0 0.0
    %3036 = vmatmul.mubr.f32.gmra.mrb[0].mxu0 %v2964
    %v3037 = vpop.f32.mrb[0].mxu0
    %v3038 = vadd.f32 0.0, %v3037
    %v3039 = vpop.f32.mrb[0].mxu0
    %3040 = vdwg.mxu0
    %v3042 = vsel %vm215, %v2547, 0
    %v3045 = vsel %vm215, %v2623, 0
    %3047 = vmatprep.subr.mxu0 0.0
    %3048 = vmatpush1.msra.mxu0 %v2290
    %3049 = vmatprep.subr.mxu0 0.0
    %3050 = vmatpush1.msra.mxu0 0.0
    %3051 = vmatprep.subr.mxu0 0.0
    %3052 = vmatpush1.msra.mxu0 0.0
    %3053 = vmatprep.subr.mxu0 0.0
    %3054 = vmatpush1.msra.mxu0 0.0
    %3055 = vmatprep.subr.mxu0 0.0
    %3056 = vmatpush1.msra.mxu0 0.0
    %3057 = vmatprep.subr.mxu0 0.0
    %3058 = vmatpush1.msra.mxu0 0.0
    %3059 = vmatprep.subr.mxu0 0.0
    %3060 = vmatpush1.msra.mxu0 0.0
    %3061 = vmatprep.subr.mxu0 0.0
    %3062 = vmatpush1.msra.mxu0 0.0
    %3063 = vmatprep.subr.mxu0 0.0
    %3064 = vmatpush1.msra.mxu0 0.0
    %3065 = vmatprep.subr.mxu0 0.0
    %3066 = vmatpush1.msra.mxu0 0.0
    %3067 = vmatprep.subr.mxu0 0.0
    %3068 = vmatpush1.msra.mxu0 0.0
    %3069 = vmatprep.subr.mxu0 0.0
    %3070 = vmatpush1.msra.mxu0 0.0
    %3071 = vmatprep.subr.mxu0 0.0
    %3072 = vmatpush1.msra.mxu0 0.0
    %3073 = vmatprep.subr.mxu0 0.0
    %3074 = vmatpush1.msra.mxu0 0.0
    %3075 = vmatprep.subr.mxu0 0.0
    %3076 = vmatpush1.msra.mxu0 0.0
    %3077 = vmatprep.subr.mxu0 0.0
    %3078 = vmatpush1.msra.mxu0 0.0
    %3079 = vmatprep.subr.mxu0 0.0
    %3080 = vmatpush1.msra.mxu0 0.0
    %3081 = vmatprep.subr.mxu0 0.0
    %3082 = vmatpush1.msra.mxu0 0.0
    %3083 = vmatprep.subr.mxu0 0.0
    %3084 = vmatpush1.msra.mxu0 0.0
    %3085 = vmatprep.subr.mxu0 0.0
    %3086 = vmatpush1.msra.mxu0 0.0
    %3087 = vmatprep.subr.mxu0 0.0
    %3088 = vmatpush1.msra.mxu0 0.0
    %3089 = vmatprep.subr.mxu0 0.0
    %3090 = vmatpush1.msra.mxu0 0.0
    %3091 = vmatprep.subr.mxu0 0.0
    %3092 = vmatpush1.msra.mxu0 0.0
    %3093 = vmatprep.subr.mxu0 0.0
    %3094 = vmatpush1.msra.mxu0 0.0
    %3095 = vmatprep.subr.mxu0 0.0
    %3096 = vmatpush1.msra.mxu0 0.0
    %3097 = vmatprep.subr.mxu0 0.0
    %3098 = vmatpush1.msra.mxu0 0.0
    %3099 = vmatprep.subr.mxu0 0.0
    %3100 = vmatpush1.msra.mxu0 0.0
    %3101 = vmatprep.subr.mxu0 0.0
    %3102 = vmatpush1.msra.mxu0 0.0
    %3103 = vmatprep.subr.mxu0 0.0
    %3104 = vmatpush1.msra.mxu0 0.0
    %3105 = vmatprep.subr.mxu0 0.0
    %3106 = vmatpush1.msra.mxu0 0.0
    %3107 = vmatprep.subr.mxu0 0.0
    %3108 = vmatpush1.msra.mxu0 0.0
    %3109 = vmatprep.subr.mxu0 0.0
    %3110 = vmatpush1.msra.mxu0 0.0
    %3111 = vmatprep.mubr.f32.mxu0 0.0
    %3112 = vmatmul.mubr.f32.gmra.mrb[0].mxu0 %v3042
    %v3113 = vpop.f32.mrb[0].mxu0
    %v3114 = vadd.f32 %v3033, %v3113
    %v3115 = vpop.f32.mrb[0].mxu0
    %3116 = vmatprep.mubr.f32.mxu0 0.0
    %3117 = vmatmul.mubr.f32.gmra.mrb[0].mxu0 %v3045
    %v3118 = vpop.f32.mrb[0].mxu0
    %v3119 = vadd.f32 %v3038, %v3118
    %v3120 = vpop.f32.mrb[0].mxu0
    %3121 = vdwg.mxu0
    %3122 = vrot.lane.b32.xlu0 %v2281, 112
    %v3123 = vpop.permute.xlu0 %3122
    %3124 = vrot.lane.b32.xlu0 %v2281, 80
    %v3125 = vpop.permute.xlu0 %3124
    %v3126 = vsel %vm215, %v3123, 0
    %v3128 = vsel %vm215, %v3125, 0
    %3130 = vmatprep.subr.mxu0 0.0
    %3131 = vmatpush1.xpose.msra.mxu0 %v3128
    %3132 = vmatprep.subr.mxu0 0.0
    %3133 = vmatpush1.xpose.msra.mxu0 0.0
    %3134 = vmatprep.subr.mxu0 0.0
    %3135 = vmatpush1.xpose.msra.mxu0 0.0
    %3136 = vmatprep.subr.mxu0 0.0
    %3137 = vmatpush1.xpose.msra.mxu0 0.0
    %3138 = vmatprep.subr.mxu0 0.0
    %3139 = vmatpush1.xpose.msra.mxu0 0.0
    %3140 = vmatprep.subr.mxu0 0.0
    %3141 = vmatpush1.xpose.msra.mxu0 0.0
    %3142 = vmatprep.subr.mxu0 0.0
    %3143 = vmatpush1.xpose.msra.mxu0 0.0
    %3144 = vmatprep.subr.mxu0 0.0
    %3145 = vmatpush1.xpose.msra.mxu0 0.0
    %3146 = vmatprep.subr.mxu0 0.0
    %3147 = vmatpush1.xpose.msra.mxu0 0.0
    %3148 = vmatprep.subr.mxu0 0.0
    %3149 = vmatpush1.xpose.msra.mxu0 0.0
    %3150 = vmatprep.subr.mxu0 0.0
    %3151 = vmatpush1.xpose.msra.mxu0 0.0
    %3152 = vmatprep.subr.mxu0 0.0
    %3153 = vmatpush1.xpose.msra.mxu0 0.0
    %3154 = vmatprep.subr.mxu0 0.0
    %3155 = vmatpush1.xpose.msra.mxu0 0.0
    %3156 = vmatprep.subr.mxu0 0.0
    %3157 = vmatpush1.xpose.msra.mxu0 0.0
    %3158 = vmatprep.subr.mxu0 0.0
    %3159 = vmatpush1.xpose.msra.mxu0 0.0
    %3160 = vmatprep.subr.mxu0 0.0
    %3161 = vmatpush1.xpose.msra.mxu0 0.0
    %3162 = vmatprep.subr.mxu0 0.0
    %3163 = vmatpush1.xpose.msra.mxu0 0.0
    %3164 = vmatprep.subr.mxu0 0.0
    %3165 = vmatpush1.xpose.msra.mxu0 0.0
    %3166 = vmatprep.subr.mxu0 0.0
    %3167 = vmatpush1.xpose.msra.mxu0 0.0
    %3168 = vmatprep.subr.mxu0 0.0
    %3169 = vmatpush1.xpose.msra.mxu0 0.0
    %3170 = vmatprep.subr.mxu0 0.0
    %3171 = vmatpush1.xpose.msra.mxu0 0.0
    %3172 = vmatprep.subr.mxu0 0.0
    %3173 = vmatpush1.xpose.msra.mxu0 0.0
    %3174 = vmatprep.subr.mxu0 0.0
    %3175 = vmatpush1.xpose.msra.mxu0 0.0
    %3176 = vmatprep.subr.mxu0 0.0
    %3177 = vmatpush1.xpose.msra.mxu0 0.0
    %3178 = vmatprep.subr.mxu0 0.0
    %3179 = vmatpush1.xpose.msra.mxu0 0.0
    %3180 = vmatprep.subr.mxu0 0.0
    %3181 = vmatpush1.xpose.msra.mxu0 0.0
    %3182 = vmatprep.subr.mxu0 0.0
    %3183 = vmatpush1.xpose.msra.mxu0 0.0
    %3184 = vmatprep.subr.mxu0 0.0
    %3185 = vmatpush1.xpose.msra.mxu0 0.0
    %3186 = vmatprep.subr.mxu0 0.0
    %3187 = vmatpush1.xpose.msra.mxu0 0.0
    %3188 = vmatprep.subr.mxu0 0.0
    %3189 = vmatpush1.xpose.msra.mxu0 0.0
    %3190 = vmatprep.subr.mxu0 0.0
    %3191 = vmatpush1.xpose.msra.mxu0 0.0
    %3192 = vmatprep.subr.mxu0 0.0
    %3193 = vmatpush1.xpose.msra.mxu0 0.0
    %3194 = vmatprep.mubr.f32.mxu0 0.0
    %3195 = vmatmul.mubr.f32.gmra.mrb[0].mxu0 %v3126
    %v3196 = vpop.f32.mrb[0].mxu0
    %v3197 = vadd.f32 0.0, %v3196
    %v3198 = vpop.f32.mrb[0].mxu0
    %3199 = vdwg.mxu0
    %3200 = vrot.lane.b32.xlu0 %v2286, 112
    %v3201 = vpop.permute.xlu0 %3200
    %3202 = vrot.lane.b32.xlu0 %v2286, 80
    %v3203 = vpop.permute.xlu0 %3202
    %v3204 = vsel %vm215, %v3201, 0
    %v3206 = vsel %vm215, %v3203, 0
    %3208 = vmatprep.subr.mxu0 0.0
    %3209 = vmatpush1.xpose.msra.mxu0 %v3206
    %3210 = vmatprep.subr.mxu0 0.0
    %3211 = vmatpush1.xpose.msra.mxu0 0.0
    %3212 = vmatprep.subr.mxu0 0.0
    %3213 = vmatpush1.xpose.msra.mxu0 0.0
    %3214 = vmatprep.subr.mxu0 0.0
    %3215 = vmatpush1.xpose.msra.mxu0 0.0
    %3216 = vmatprep.subr.mxu0 0.0
    %3217 = vmatpush1.xpose.msra.mxu0 0.0
    %3218 = vmatprep.subr.mxu0 0.0
    %3219 = vmatpush1.xpose.msra.mxu0 0.0
    %3220 = vmatprep.subr.mxu0 0.0
    %3221 = vmatpush1.xpose.msra.mxu0 0.0
    %3222 = vmatprep.subr.mxu0 0.0
    %3223 = vmatpush1.xpose.msra.mxu0 0.0
    %3224 = vmatprep.subr.mxu0 0.0
    %3225 = vmatpush1.xpose.msra.mxu0 0.0
    %3226 = vmatprep.subr.mxu0 0.0
    %3227 = vmatpush1.xpose.msra.mxu0 0.0
    %3228 = vmatprep.subr.mxu0 0.0
    %3229 = vmatpush1.xpose.msra.mxu0 0.0
    %3230 = vmatprep.subr.mxu0 0.0
    %3231 = vmatpush1.xpose.msra.mxu0 0.0
    %3232 = vmatprep.subr.mxu0 0.0
    %3233 = vmatpush1.xpose.msra.mxu0 0.0
    %3234 = vmatprep.subr.mxu0 0.0
    %3235 = vmatpush1.xpose.msra.mxu0 0.0
    %3236 = vmatprep.subr.mxu0 0.0
    %3237 = vmatpush1.xpose.msra.mxu0 0.0
    %3238 = vmatprep.subr.mxu0 0.0
    %3239 = vmatpush1.xpose.msra.mxu0 0.0
    %3240 = vmatprep.subr.mxu0 0.0
    %3241 = vmatpush1.xpose.msra.mxu0 0.0
    %3242 = vmatprep.subr.mxu0 0.0
    %3243 = vmatpush1.xpose.msra.mxu0 0.0
    %3244 = vmatprep.subr.mxu0 0.0
    %3245 = vmatpush1.xpose.msra.mxu0 0.0
    %3246 = vmatprep.subr.mxu0 0.0
    %3247 = vmatpush1.xpose.msra.mxu0 0.0
    %3248 = vmatprep.subr.mxu0 0.0
    %3249 = vmatpush1.xpose.msra.mxu0 0.0
    %3250 = vmatprep.subr.mxu0 0.0
    %3251 = vmatpush1.xpose.msra.mxu0 0.0
    %3252 = vmatprep.subr.mxu0 0.0
    %3253 = vmatpush1.xpose.msra.mxu0 0.0
    %3254 = vmatprep.subr.mxu0 0.0
    %3255 = vmatpush1.xpose.msra.mxu0 0.0
    %3256 = vmatprep.subr.mxu0 0.0
    %3257 = vmatpush1.xpose.msra.mxu0 0.0
    %3258 = vmatprep.subr.mxu0 0.0
    %3259 = vmatpush1.xpose.msra.mxu0 0.0
    %3260 = vmatprep.subr.mxu0 0.0
    %3261 = vmatpush1.xpose.msra.mxu0 0.0
    %3262 = vmatprep.subr.mxu0 0.0
    %3263 = vmatpush1.xpose.msra.mxu0 0.0
    %3264 = vmatprep.subr.mxu0 0.0
    %3265 = vmatpush1.xpose.msra.mxu0 0.0
    %3266 = vmatprep.subr.mxu0 0.0
    %3267 = vmatpush1.xpose.msra.mxu0 0.0
    %3268 = vmatprep.subr.mxu0 0.0
    %3269 = vmatpush1.xpose.msra.mxu0 0.0
    %3270 = vmatprep.subr.mxu0 0.0
    %3271 = vmatpush1.xpose.msra.mxu0 0.0
    %3272 = vmatprep.mubr.f32.mxu0 0.0
    %3273 = vmatmul.mubr.f32.gmra.mrb[0].mxu0 %v3204
    %v3274 = vpop.f32.mrb[0].mxu0
    %v3275 = vadd.f32 0.0, %v3274
    %v3276 = vpop.f32.mrb[0].mxu0
    %3277 = vdwg.mxu0
    %v3278 = vmul.f32 %v3197, 0.35355338
    %v3279 = vmul.f32 %v3275, 0.35355338
    %v3280 = vadd.f32 %v3278, %v374
    %v3281 = vadd.f32 %v3279, %v378
    %v3282 = vsel %vm215, %v3280, -inf
    %3283 = vmax.xlane.f32.xlu0 %v3282
    %v3284 = vpop.xlane.xlu0 %3283
    %v3285 = vsel %vm215, %v3281, -inf
    %3286 = vmax.xlane.f32.xlu0 %v3285
    %v3287 = vpop.xlane.xlu0 %3286
    %v3288 = vsub.f32 %v3280, %v3284
    %v3289 = vsub.f32 %v3281, %v3287
    %v3290 = vmul.f32 %v3288, 1.442695
    %v3291 = vpow.pop %v3290
    %v3292 = vmul.f32 %v3289, 1.442695
    %v3293 = vpow.pop %v3292
    %v3294 = vsel %vm215, %v3291, 0.0
    %3295 = vadd.xlane.f32.xlu0 %v3294
    %v3296 = vpop.xlane.xlu0 %3295
    %v3297 = vsel %vm215, %v3293, 0.0
    %3298 = vadd.xlane.f32.xlu0 %v3297
    %v3299 = vpop.xlane.xlu0 %3298
    %v3300 = vrcp.pop %v3296
    %v3301 = vrcp.pop %v3299
    %v3302 = vmul.f32 %v3291, %v3300
    %v3303 = vmul.f32 %v3293, %v3301
    %3304 = vrot.lane.b32.xlu0 %v2281, 48
    %v3305 = vpop.permute.xlu0 %3304
    %v3308 = vsel %vm215, %v3302, 0
    %3310 = vmatprep.subr.mxu0 0.0
    %3311 = vmatpush1.msra.mxu0 %v3305
    %3312 = vmatprep.subr.mxu0 0.0
    %3313 = vmatpush1.msra.mxu0 0.0
    %3314 = vmatprep.subr.mxu0 0.0
    %3315 = vmatpush1.msra.mxu0 0.0
    %3316 = vmatprep.subr.mxu0 0.0
    %3317 = vmatpush1.msra.mxu0 0.0
    %3318 = vmatprep.subr.mxu0 0.0
    %3319 = vmatpush1.msra.mxu0 0.0
    %3320 = vmatprep.subr.mxu0 0.0
    %3321 = vmatpush1.msra.mxu0 0.0
    %3322 = vmatprep.subr.mxu0 0.0
    %3323 = vmatpush1.msra.mxu0 0.0
    %3324 = vmatprep.subr.mxu0 0.0
    %3325 = vmatpush1.msra.mxu0 0.0
    %3326 = vmatprep.subr.mxu0 0.0
    %3327 = vmatpush1.msra.mxu0 0.0
    %3328 = vmatprep.subr.mxu0 0.0
    %3329 = vmatpush1.msra.mxu0 0.0
    %3330 = vmatprep.subr.mxu0 0.0
    %3331 = vmatpush1.msra.mxu0 0.0
    %3332 = vmatprep.subr.mxu0 0.0
    %3333 = vmatpush1.msra.mxu0 0.0
    %3334 = vmatprep.subr.mxu0 0.0
    %3335 = vmatpush1.msra.mxu0 0.0
    %3336 = vmatprep.subr.mxu0 0.0
    %3337 = vmatpush1.msra.mxu0 0.0
    %3338 = vmatprep.subr.mxu0 0.0
    %3339 = vmatpush1.msra.mxu0 0.0
    %3340 = vmatprep.subr.mxu0 0.0
    %3341 = vmatpush1.msra.mxu0 0.0
    %3342 = vmatprep.subr.mxu0 0.0
    %3343 = vmatpush1.msra.mxu0 0.0
    %3344 = vmatprep.subr.mxu0 0.0
    %3345 = vmatpush1.msra.mxu0 0.0
    %3346 = vmatprep.subr.mxu0 0.0
    %3347 = vmatpush1.msra.mxu0 0.0
    %3348 = vmatprep.subr.mxu0 0.0
    %3349 = vmatpush1.msra.mxu0 0.0
    %3350 = vmatprep.subr.mxu0 0.0
    %3351 = vmatpush1.msra.mxu0 0.0
    %3352 = vmatprep.subr.mxu0 0.0
    %3353 = vmatpush1.msra.mxu0 0.0
    %3354 = vmatprep.subr.mxu0 0.0
    %3355 = vmatpush1.msra.mxu0 0.0
    %3356 = vmatprep.subr.mxu0 0.0
    %3357 = vmatpush1.msra.mxu0 0.0
    %3358 = vmatprep.subr.mxu0 0.0
    %3359 = vmatpush1.msra.mxu0 0.0
    %3360 = vmatprep.subr.mxu0 0.0
    %3361 = vmatpush1.msra.mxu0 0.0
    %3362 = vmatprep.subr.mxu0 0.0
    %3363 = vmatpush1.msra.mxu0 0.0
    %3364 = vmatprep.subr.mxu0 0.0
    %3365 = vmatpush1.msra.mxu0 0.0
    %3366 = vmatprep.subr.mxu0 0.0
    %3367 = vmatpush1.msra.mxu0 0.0
    %3368 = vmatprep.subr.mxu0 0.0
    %3369 = vmatpush1.msra.mxu0 0.0
    %3370 = vmatprep.subr.mxu0 0.0
    %3371 = vmatpush1.msra.mxu0 0.0
    %3372 = vmatprep.subr.mxu0 0.0
    %3373 = vmatpush1.msra.mxu0 0.0
    %3374 = vmatprep.mubr.f32.mxu0 0.0
    %3375 = vmatmul.mubr.f32.gmra.mrb[0].mxu0 %v3308
    %v3376 = vpop.f32.mrb[0].mxu0
    %v3377 = vadd.f32 0.0, %v3376
    %v3378 = vpop.f32.mrb[0].mxu0
    %3379 = vdwg.mxu0
    %3380 = vrot.lane.b32.xlu0 %v2286, 48
    %v3381 = vpop.permute.xlu0 %3380
    %v3384 = vsel %vm215, %v3303, 0
    %3386 = vmatprep.subr.mxu0 0.0
    %3387 = vmatpush1.msra.mxu0 %v3381
    %3388 = vmatprep.subr.mxu0 0.0
    %3389 = vmatpush1.msra.mxu0 0.0
    %3390 = vmatprep.subr.mxu0 0.0
    %3391 = vmatpush1.msra.mxu0 0.0
    %3392 = vmatprep.subr.mxu0 0.0
    %3393 = vmatpush1.msra.mxu0 0.0
    %3394 = vmatprep.subr.mxu0 0.0
    %3395 = vmatpush1.msra.mxu0 0.0
    %3396 = vmatprep.subr.mxu0 0.0
    %3397 = vmatpush1.msra.mxu0 0.0
    %3398 = vmatprep.subr.mxu0 0.0
    %3399 = vmatpush1.msra.mxu0 0.0
    %3400 = vmatprep.subr.mxu0 0.0
    %3401 = vmatpush1.msra.mxu0 0.0
    %3402 = vmatprep.subr.mxu0 0.0
    %3403 = vmatpush1.msra.mxu0 0.0
    %3404 = vmatprep.subr.mxu0 0.0
    %3405 = vmatpush1.msra.mxu0 0.0
    %3406 = vmatprep.subr.mxu0 0.0
    %3407 = vmatpush1.msra.mxu0 0.0
    %3408 = vmatprep.subr.mxu0 0.0
    %3409 = vmatpush1.msra.mxu0 0.0
    %3410 = vmatprep.subr.mxu0 0.0
    %3411 = vmatpush1.msra.mxu0 0.0
    %3412 = vmatprep.subr.mxu0 0.0
    %3413 = vmatpush1.msra.mxu0 0.0
    %3414 = vmatprep.subr.mxu0 0.0
    %3415 = vmatpush1.msra.mxu0 0.0
    %3416 = vmatprep.subr.mxu0 0.0
    %3417 = vmatpush1.msra.mxu0 0.0
    %3418 = vmatprep.subr.mxu0 0.0
    %3419 = vmatpush1.msra.mxu0 0.0
    %3420 = vmatprep.subr.mxu0 0.0
    %3421 = vmatpush1.msra.mxu0 0.0
    %3422 = vmatprep.subr.mxu0 0.0
    %3423 = vmatpush1.msra.mxu0 0.0
    %3424 = vmatprep.subr.mxu0 0.0
    %3425 = vmatpush1.msra.mxu0 0.0
    %3426 = vmatprep.subr.mxu0 0.0
    %3427 = vmatpush1.msra.mxu0 0.0
    %3428 = vmatprep.subr.mxu0 0.0
    %3429 = vmatpush1.msra.mxu0 0.0
    %3430 = vmatprep.subr.mxu0 0.0
    %3431 = vmatpush1.msra.mxu0 0.0
    %3432 = vmatprep.subr.mxu0 0.0
    %3433 = vmatpush1.msra.mxu0 0.0
    %3434 = vmatprep.subr.mxu0 0.0
    %3435 = vmatpush1.msra.mxu0 0.0
    %3436 = vmatprep.subr.mxu0 0.0
    %3437 = vmatpush1.msra.mxu0 0.0
    %3438 = vmatprep.subr.mxu0 0.0
    %3439 = vmatpush1.msra.mxu0 0.0
    %3440 = vmatprep.subr.mxu0 0.0
    %3441 = vmatpush1.msra.mxu0 0.0
    %3442 = vmatprep.subr.mxu0 0.0
    %3443 = vmatpush1.msra.mxu0 0.0
    %3444 = vmatprep.subr.mxu0 0.0
    %3445 = vmatpush1.msra.mxu0 0.0
    %3446 = vmatprep.subr.mxu0 0.0
    %3447 = vmatpush1.msra.mxu0 0.0
    %3448 = vmatprep.subr.mxu0 0.0
    %3449 = vmatpush1.msra.mxu0 0.0
    %3450 = vmatprep.mubr.f32.mxu0 0.0
    %3451 = vmatmul.mubr.f32.gmra.mrb[0].mxu0 %v3384
    %v3452 = vpop.f32.mrb[0].mxu0
    %v3453 = vadd.f32 0.0, %v3452
    %v3454 = vpop.f32.mrb[0].mxu0
    %3455 = vdwg.mxu0
    %v3457 = vsel %vm215, %v3377, 0
    %v3460 = vsel %vm215, %v3453, 0
    %3462 = vmatprep.subr.mxu0 0.0
    %3463 = vmatpush1.msra.mxu0 %v2292
    %3464 = vmatprep.subr.mxu0 0.0
    %3465 = vmatpush1.msra.mxu0 0.0
    %3466 = vmatprep.subr.mxu0 0.0
    %3467 = vmatpush1.msra.mxu0 0.0
    %3468 = vmatprep.subr.mxu0 0.0
    %3469 = vmatpush1.msra.mxu0 0.0
    %3470 = vmatprep.subr.mxu0 0.0
    %3471 = vmatpush1.msra.mxu0 0.0
    %3472 = vmatprep.subr.mxu0 0.0
    %3473 = vmatpush1.msra.mxu0 0.0
    %3474 = vmatprep.subr.mxu0 0.0
    %3475 = vmatpush1.msra.mxu0 0.0
    %3476 = vmatprep.subr.mxu0 0.0
    %3477 = vmatpush1.msra.mxu0 0.0
    %3478 = vmatprep.subr.mxu0 0.0
    %3479 = vmatpush1.msra.mxu0 0.0
    %3480 = vmatprep.subr.mxu0 0.0
    %3481 = vmatpush1.msra.mxu0 0.0
    %3482 = vmatprep.subr.mxu0 0.0
    %3483 = vmatpush1.msra.mxu0 0.0
    %3484 = vmatprep.subr.mxu0 0.0
    %3485 = vmatpush1.msra.mxu0 0.0
    %3486 = vmatprep.subr.mxu0 0.0
    %3487 = vmatpush1.msra.mxu0 0.0
    %3488 = vmatprep.subr.mxu0 0.0
    %3489 = vmatpush1.msra.mxu0 0.0
    %3490 = vmatprep.subr.mxu0 0.0
    %3491 = vmatpush1.msra.mxu0 0.0
    %3492 = vmatprep.subr.mxu0 0.0
    %3493 = vmatpush1.msra.mxu0 0.0
    %3494 = vmatprep.subr.mxu0 0.0
    %3495 = vmatpush1.msra.mxu0 0.0
    %3496 = vmatprep.subr.mxu0 0.0
    %3497 = vmatpush1.msra.mxu0 0.0
    %3498 = vmatprep.subr.mxu0 0.0
    %3499 = vmatpush1.msra.mxu0 0.0
    %3500 = vmatprep.subr.mxu0 0.0
    %3501 = vmatpush1.msra.mxu0 0.0
    %3502 = vmatprep.subr.mxu0 0.0
    %3503 = vmatpush1.msra.mxu0 0.0
    %3504 = vmatprep.subr.mxu0 0.0
    %3505 = vmatpush1.msra.mxu0 0.0
    %3506 = vmatprep.subr.mxu0 0.0
    %3507 = vmatpush1.msra.mxu0 0.0
    %3508 = vmatprep.subr.mxu0 0.0
    %3509 = vmatpush1.msra.mxu0 0.0
    %3510 = vmatprep.subr.mxu0 0.0
    %3511 = vmatpush1.msra.mxu0 0.0
    %3512 = vmatprep.subr.mxu0 0.0
    %3513 = vmatpush1.msra.mxu0 0.0
    %3514 = vmatprep.subr.mxu0 0.0
    %3515 = vmatpush1.msra.mxu0 0.0
    %3516 = vmatprep.subr.mxu0 0.0
    %3517 = vmatpush1.msra.mxu0 0.0
    %3518 = vmatprep.subr.mxu0 0.0
    %3519 = vmatpush1.msra.mxu0 0.0
    %3520 = vmatprep.subr.mxu0 0.0
    %3521 = vmatpush1.msra.mxu0 0.0
    %3522 = vmatprep.subr.mxu0 0.0
    %3523 = vmatpush1.msra.mxu0 0.0
    %3524 = vmatprep.subr.mxu0 0.0
    %3525 = vmatpush1.msra.mxu0 0.0
    %3526 = vmatprep.mubr.f32.mxu0 0.0
    %3527 = vmatmul.mubr.f32.gmra.mrb[0].mxu0 %v3457
    %v3528 = vpop.f32.mrb[0].mxu0
    %v3529 = vadd.f32 0.0, %v3528
    %v3530 = vpop.f32.mrb[0].mxu0
    %3531 = vmatprep.mubr.f32.mxu0 0.0
    %3532 = vmatmul.mubr.f32.gmra.mrb[0].mxu0 %v3460
    %v3533 = vpop.f32.mrb[0].mxu0
    %v3534 = vadd.f32 0.0, %v3533
    %v3535 = vpop.f32.mrb[0].mxu0
    %3536 = vdwg.mxu0
    %v3537 = vadd.f32 %v3114, %v3529
    %v3538 = vadd.f32 %v3119, %v3534
    %3539 = vrot.lane.b32.xlu0 %v2281, 104
    %v3540 = vpop.permute.xlu0 %3539
    %3541 = vrot.lane.b32.xlu0 %v2281, 72
    %v3542 = vpop.permute.xlu0 %3541
    %v3543 = vsel %vm215, %v3540, 0
    %v3545 = vsel %vm215, %v3542, 0
    %3547 = vmatprep.subr.mxu0 0.0
    %3548 = vmatpush1.xpose.msra.mxu0 %v3545
    %3549 = vmatprep.subr.mxu0 0.0
    %3550 = vmatpush1.xpose.msra.mxu0 0.0
    %3551 = vmatprep.subr.mxu0 0.0
    %3552 = vmatpush1.xpose.msra.mxu0 0.0
    %3553 = vmatprep.subr.mxu0 0.0
    %3554 = vmatpush1.xpose.msra.mxu0 0.0
    %3555 = vmatprep.subr.mxu0 0.0
    %3556 = vmatpush1.xpose.msra.mxu0 0.0
    %3557 = vmatprep.subr.mxu0 0.0
    %3558 = vmatpush1.xpose.msra.mxu0 0.0
    %3559 = vmatprep.subr.mxu0 0.0
    %3560 = vmatpush1.xpose.msra.mxu0 0.0
    %3561 = vmatprep.subr.mxu0 0.0
    %3562 = vmatpush1.xpose.msra.mxu0 0.0
    %3563 = vmatprep.subr.mxu0 0.0
    %3564 = vmatpush1.xpose.msra.mxu0 0.0
    %3565 = vmatprep.subr.mxu0 0.0
    %3566 = vmatpush1.xpose.msra.mxu0 0.0
    %3567 = vmatprep.subr.mxu0 0.0
    %3568 = vmatpush1.xpose.msra.mxu0 0.0
    %3569 = vmatprep.subr.mxu0 0.0
    %3570 = vmatpush1.xpose.msra.mxu0 0.0
    %3571 = vmatprep.subr.mxu0 0.0
    %3572 = vmatpush1.xpose.msra.mxu0 0.0
    %3573 = vmatprep.subr.mxu0 0.0
    %3574 = vmatpush1.xpose.msra.mxu0 0.0
    %3575 = vmatprep.subr.mxu0 0.0
    %3576 = vmatpush1.xpose.msra.mxu0 0.0
    %3577 = vmatprep.subr.mxu0 0.0
    %3578 = vmatpush1.xpose.msra.mxu0 0.0
    %3579 = vmatprep.subr.mxu0 0.0
    %3580 = vmatpush1.xpose.msra.mxu0 0.0
    %3581 = vmatprep.subr.mxu0 0.0
    %3582 = vmatpush1.xpose.msra.mxu0 0.0
    %3583 = vmatprep.subr.mxu0 0.0
    %3584 = vmatpush1.xpose.msra.mxu0 0.0
    %3585 = vmatprep.subr.mxu0 0.0
    %3586 = vmatpush1.xpose.msra.mxu0 0.0
    %3587 = vmatprep.subr.mxu0 0.0
    %3588 = vmatpush1.xpose.msra.mxu0 0.0
    %3589 = vmatprep.subr.mxu0 0.0
    %3590 = vmatpush1.xpose.msra.mxu0 0.0
    %3591 = vmatprep.subr.mxu0 0.0
    %3592 = vmatpush1.xpose.msra.mxu0 0.0
    %3593 = vmatprep.subr.mxu0 0.0
    %3594 = vmatpush1.xpose.msra.mxu0 0.0
    %3595 = vmatprep.subr.mxu0 0.0
    %3596 = vmatpush1.xpose.msra.mxu0 0.0
    %3597 = vmatprep.subr.mxu0 0.0
    %3598 = vmatpush1.xpose.msra.mxu0 0.0
    %3599 = vmatprep.subr.mxu0 0.0
    %3600 = vmatpush1.xpose.msra.mxu0 0.0
    %3601 = vmatprep.subr.mxu0 0.0
    %3602 = vmatpush1.xpose.msra.mxu0 0.0
    %3603 = vmatprep.subr.mxu0 0.0
    %3604 = vmatpush1.xpose.msra.mxu0 0.0
    %3605 = vmatprep.subr.mxu0 0.0
    %3606 = vmatpush1.xpose.msra.mxu0 0.0
    %3607 = vmatprep.subr.mxu0 0.0
    %3608 = vmatpush1.xpose.msra.mxu0 0.0
    %3609 = vmatprep.subr.mxu0 0.0
    %3610 = vmatpush1.xpose.msra.mxu0 0.0
    %3611 = vmatprep.mubr.f32.mxu0 0.0
    %3612 = vmatmul.mubr.f32.gmra.mrb[0].mxu0 %v3543
    %v3613 = vpop.f32.mrb[0].mxu0
    %v3614 = vadd.f32 0.0, %v3613
    %v3615 = vpop.f32.mrb[0].mxu0
    %3616 = vdwg.mxu0
    %3617 = vrot.lane.b32.xlu0 %v2286, 104
    %v3618 = vpop.permute.xlu0 %3617
    %3619 = vrot.lane.b32.xlu0 %v2286, 72
    %v3620 = vpop.permute.xlu0 %3619
    %v3621 = vsel %vm215, %v3618, 0
    %v3623 = vsel %vm215, %v3620, 0
    %3625 = vmatprep.subr.mxu0 0.0
    %3626 = vmatpush1.xpose.msra.mxu0 %v3623
    %3627 = vmatprep.subr.mxu0 0.0
    %3628 = vmatpush1.xpose.msra.mxu0 0.0
    %3629 = vmatprep.subr.mxu0 0.0
    %3630 = vmatpush1.xpose.msra.mxu0 0.0
    %3631 = vmatprep.subr.mxu0 0.0
    %3632 = vmatpush1.xpose.msra.mxu0 0.0
    %3633 = vmatprep.subr.mxu0 0.0
    %3634 = vmatpush1.xpose.msra.mxu0 0.0
    %3635 = vmatprep.subr.mxu0 0.0
    %3636 = vmatpush1.xpose.msra.mxu0 0.0
    %3637 = vmatprep.subr.mxu0 0.0
    %3638 = vmatpush1.xpose.msra.mxu0 0.0
    %3639 = vmatprep.subr.mxu0 0.0
    %3640 = vmatpush1.xpose.msra.mxu0 0.0
    %3641 = vmatprep.subr.mxu0 0.0
    %3642 = vmatpush1.xpose.msra.mxu0 0.0
    %3643 = vmatprep.subr.mxu0 0.0
    %3644 = vmatpush1.xpose.msra.mxu0 0.0
    %3645 = vmatprep.subr.mxu0 0.0
    %3646 = vmatpush1.xpose.msra.mxu0 0.0
    %3647 = vmatprep.subr.mxu0 0.0
    %3648 = vmatpush1.xpose.msra.mxu0 0.0
    %3649 = vmatprep.subr.mxu0 0.0
    %3650 = vmatpush1.xpose.msra.mxu0 0.0
    %3651 = vmatprep.subr.mxu0 0.0
    %3652 = vmatpush1.xpose.msra.mxu0 0.0
    %3653 = vmatprep.subr.mxu0 0.0
    %3654 = vmatpush1.xpose.msra.mxu0 0.0
    %3655 = vmatprep.subr.mxu0 0.0
    %3656 = vmatpush1.xpose.msra.mxu0 0.0
    %3657 = vmatprep.subr.mxu0 0.0
    %3658 = vmatpush1.xpose.msra.mxu0 0.0
    %3659 = vmatprep.subr.mxu0 0.0
    %3660 = vmatpush1.xpose.msra.mxu0 0.0
    %3661 = vmatprep.subr.mxu0 0.0
    %3662 = vmatpush1.xpose.msra.mxu0 0.0
    %3663 = vmatprep.subr.mxu0 0.0
    %3664 = vmatpush1.xpose.msra.mxu0 0.0
    %3665 = vmatprep.subr.mxu0 0.0
    %3666 = vmatpush1.xpose.msra.mxu0 0.0
    %3667 = vmatprep.subr.mxu0 0.0
    %3668 = vmatpush1.xpose.msra.mxu0 0.0
    %3669 = vmatprep.subr.mxu0 0.0
    %3670 = vmatpush1.xpose.msra.mxu0 0.0
    %3671 = vmatprep.subr.mxu0 0.0
    %3672 = vmatpush1.xpose.msra.mxu0 0.0
    %3673 = vmatprep.subr.mxu0 0.0
    %3674 = vmatpush1.xpose.msra.mxu0 0.0
    %3675 = vmatprep.subr.mxu0 0.0
    %3676 = vmatpush1.xpose.msra.mxu0 0.0
    %3677 = vmatprep.subr.mxu0 0.0
    %3678 = vmatpush1.xpose.msra.mxu0 0.0
    %3679 = vmatprep.subr.mxu0 0.0
    %3680 = vmatpush1.xpose.msra.mxu0 0.0
    %3681 = vmatprep.subr.mxu0 0.0
    %3682 = vmatpush1.xpose.msra.mxu0 0.0
    %3683 = vmatprep.subr.mxu0 0.0
    %3684 = vmatpush1.xpose.msra.mxu0 0.0
    %3685 = vmatprep.subr.mxu0 0.0
    %3686 = vmatpush1.xpose.msra.mxu0 0.0
    %3687 = vmatprep.subr.mxu0 0.0
    %3688 = vmatpush1.xpose.msra.mxu0 0.0
    %3689 = vmatprep.mubr.f32.mxu0 0.0
    %3690 = vmatmul.mubr.f32.gmra.mrb[0].mxu0 %v3621
    %v3691 = vpop.f32.mrb[0].mxu0
    %v3692 = vadd.f32 0.0, %v3691
    %v3693 = vpop.f32.mrb[0].mxu0
    %3694 = vdwg.mxu0
    %v3695 = vmul.f32 %v3614, 0.35355338
    %v3696 = vmul.f32 %v3692, 0.35355338
    %v3697 = vadd.f32 %v3695, %v374
    %v3698 = vadd.f32 %v3696, %v378
    %v3699 = vsel %vm215, %v3697, -inf
    %3700 = vmax.xlane.f32.xlu0 %v3699
    %v3701 = vpop.xlane.xlu0 %3700
    %v3702 = vsel %vm215, %v3698, -inf
    %3703 = vmax.xlane.f32.xlu0 %v3702
    %v3704 = vpop.xlane.xlu0 %3703
    %v3705 = vsub.f32 %v3697, %v3701
    %v3706 = vsub.f32 %v3698, %v3704
    %v3707 = vmul.f32 %v3705, 1.442695
    %v3708 = vpow.pop %v3707
    %v3709 = vmul.f32 %v3706, 1.442695
    %v3710 = vpow.pop %v3709
    %v3711 = vsel %vm215, %v3708, 0.0
    %3712 = vadd.xlane.f32.xlu0 %v3711
    %v3713 = vpop.xlane.xlu0 %3712
    %v3714 = vsel %vm215, %v3710, 0.0
    %3715 = vadd.xlane.f32.xlu0 %v3714
    %v3716 = vpop.xlane.xlu0 %3715
    %v3717 = vrcp.pop %v3713
    %v3718 = vrcp.pop %v3716
    %v3719 = vmul.f32 %v3708, %v3717
    %v3720 = vmul.f32 %v3710, %v3718
    %3721 = vrot.lane.b32.xlu0 %v2281, 40
    %v3722 = vpop.permute.xlu0 %3721
    %v3725 = vsel %vm215, %v3719, 0
    %3727 = vmatprep.subr.mxu0 0.0
    %3728 = vmatpush1.msra.mxu0 %v3722
    %3729 = vmatprep.subr.mxu0 0.0
    %3730 = vmatpush1.msra.mxu0 0.0
    %3731 = vmatprep.subr.mxu0 0.0
    %3732 = vmatpush1.msra.mxu0 0.0
    %3733 = vmatprep.subr.mxu0 0.0
    %3734 = vmatpush1.msra.mxu0 0.0
    %3735 = vmatprep.subr.mxu0 0.0
    %3736 = vmatpush1.msra.mxu0 0.0
    %3737 = vmatprep.subr.mxu0 0.0
    %3738 = vmatpush1.msra.mxu0 0.0
    %3739 = vmatprep.subr.mxu0 0.0
    %3740 = vmatpush1.msra.mxu0 0.0
    %3741 = vmatprep.subr.mxu0 0.0
    %3742 = vmatpush1.msra.mxu0 0.0
    %3743 = vmatprep.subr.mxu0 0.0
    %3744 = vmatpush1.msra.mxu0 0.0
    %3745 = vmatprep.subr.mxu0 0.0
    %3746 = vmatpush1.msra.mxu0 0.0
    %3747 = vmatprep.subr.mxu0 0.0
    %3748 = vmatpush1.msra.mxu0 0.0
    %3749 = vmatprep.subr.mxu0 0.0
    %3750 = vmatpush1.msra.mxu0 0.0
    %3751 = vmatprep.subr.mxu0 0.0
    %3752 = vmatpush1.msra.mxu0 0.0
    %3753 = vmatprep.subr.mxu0 0.0
    %3754 = vmatpush1.msra.mxu0 0.0
    %3755 = vmatprep.subr.mxu0 0.0
    %3756 = vmatpush1.msra.mxu0 0.0
    %3757 = vmatprep.subr.mxu0 0.0
    %3758 = vmatpush1.msra.mxu0 0.0
    %3759 = vmatprep.subr.mxu0 0.0
    %3760 = vmatpush1.msra.mxu0 0.0
    %3761 = vmatprep.subr.mxu0 0.0
    %3762 = vmatpush1.msra.mxu0 0.0
    %3763 = vmatprep.subr.mxu0 0.0
    %3764 = vmatpush1.msra.mxu0 0.0
    %3765 = vmatprep.subr.mxu0 0.0
    %3766 = vmatpush1.msra.mxu0 0.0
    %3767 = vmatprep.subr.mxu0 0.0
    %3768 = vmatpush1.msra.mxu0 0.0
    %3769 = vmatprep.subr.mxu0 0.0
    %3770 = vmatpush1.msra.mxu0 0.0
    %3771 = vmatprep.subr.mxu0 0.0
    %3772 = vmatpush1.msra.mxu0 0.0
    %3773 = vmatprep.subr.mxu0 0.0
    %3774 = vmatpush1.msra.mxu0 0.0
    %3775 = vmatprep.subr.mxu0 0.0
    %3776 = vmatpush1.msra.mxu0 0.0
    %3777 = vmatprep.subr.mxu0 0.0
    %3778 = vmatpush1.msra.mxu0 0.0
    %3779 = vmatprep.subr.mxu0 0.0
    %3780 = vmatpush1.msra.mxu0 0.0
    %3781 = vmatprep.subr.mxu0 0.0
    %3782 = vmatpush1.msra.mxu0 0.0
    %3783 = vmatprep.subr.mxu0 0.0
    %3784 = vmatpush1.msra.mxu0 0.0
    %3785 = vmatprep.subr.mxu0 0.0
    %3786 = vmatpush1.msra.mxu0 0.0
    %3787 = vmatprep.subr.mxu0 0.0
    %3788 = vmatpush1.msra.mxu0 0.0
    %3789 = vmatprep.subr.mxu0 0.0
    %3790 = vmatpush1.msra.mxu0 0.0
    %3791 = vmatprep.mubr.f32.mxu0 0.0
    %3792 = vmatmul.mubr.f32.gmra.mrb[0].mxu0 %v3725
    %v3793 = vpop.f32.mrb[0].mxu0
    %v3794 = vadd.f32 0.0, %v3793
    %v3795 = vpop.f32.mrb[0].mxu0
    %3796 = vdwg.mxu0
    %3797 = vrot.lane.b32.xlu0 %v2286, 40
    %v3798 = vpop.permute.xlu0 %3797
    %v3801 = vsel %vm215, %v3720, 0
    %3803 = vmatprep.subr.mxu0 0.0
    %3804 = vmatpush1.msra.mxu0 %v3798
    %3805 = vmatprep.subr.mxu0 0.0
    %3806 = vmatpush1.msra.mxu0 0.0
    %3807 = vmatprep.subr.mxu0 0.0
    %3808 = vmatpush1.msra.mxu0 0.0
    %3809 = vmatprep.subr.mxu0 0.0
    %3810 = vmatpush1.msra.mxu0 0.0
    %3811 = vmatprep.subr.mxu0 0.0
    %3812 = vmatpush1.msra.mxu0 0.0
    %3813 = vmatprep.subr.mxu0 0.0
    %3814 = vmatpush1.msra.mxu0 0.0
    %3815 = vmatprep.subr.mxu0 0.0
    %3816 = vmatpush1.msra.mxu0 0.0
    %3817 = vmatprep.subr.mxu0 0.0
    %3818 = vmatpush1.msra.mxu0 0.0
    %3819 = vmatprep.subr.mxu0 0.0
    %3820 = vmatpush1.msra.mxu0 0.0
    %3821 = vmatprep.subr.mxu0 0.0
    %3822 = vmatpush1.msra.mxu0 0.0
    %3823 = vmatprep.subr.mxu0 0.0
    %3824 = vmatpush1.msra.mxu0 0.0
    %3825 = vmatprep.subr.mxu0 0.0
    %3826 = vmatpush1.msra.mxu0 0.0
    %3827 = vmatprep.subr.mxu0 0.0
    %3828 = vmatpush1.msra.mxu0 0.0
    %3829 = vmatprep.subr.mxu0 0.0
    %3830 = vmatpush1.msra.mxu0 0.0
    %3831 = vmatprep.subr.mxu0 0.0
    %3832 = vmatpush1.msra.mxu0 0.0
    %3833 = vmatprep.subr.mxu0 0.0
    %3834 = vmatpush1.msra.mxu0 0.0
    %3835 = vmatprep.subr.mxu0 0.0
    %3836 = vmatpush1.msra.mxu0 0.0
    %3837 = vmatprep.subr.mxu0 0.0
    %3838 = vmatpush1.msra.mxu0 0.0
    %3839 = vmatprep.subr.mxu0 0.0
    %3840 = vmatpush1.msra.mxu0 0.0
    %3841 = vmatprep.subr.mxu0 0.0
    %3842 = vmatpush1.msra.mxu0 0.0
    %3843 = vmatprep.subr.mxu0 0.0
    %3844 = vmatpush1.msra.mxu0 0.0
    %3845 = vmatprep.subr.mxu0 0.0
    %3846 = vmatpush1.msra.mxu0 0.0
    %3847 = vmatprep.subr.mxu0 0.0
    %3848 = vmatpush1.msra.mxu0 0.0
    %3849 = vmatprep.subr.mxu0 0.0
    %3850 = vmatpush1.msra.mxu0 0.0
    %3851 = vmatprep.subr.mxu0 0.0
    %3852 = vmatpush1.msra.mxu0 0.0
    %3853 = vmatprep.subr.mxu0 0.0
    %3854 = vmatpush1.msra.mxu0 0.0
    %3855 = vmatprep.subr.mxu0 0.0
    %3856 = vmatpush1.msra.mxu0 0.0
    %3857 = vmatprep.subr.mxu0 0.0
    %3858 = vmatpush1.msra.mxu0 0.0
    %3859 = vmatprep.subr.mxu0 0.0
    %3860 = vmatpush1.msra.mxu0 0.0
    %3861 = vmatprep.subr.mxu0 0.0
    %3862 = vmatpush1.msra.mxu0 0.0
    %3863 = vmatprep.subr.mxu0 0.0
    %3864 = vmatpush1.msra.mxu0 0.0
    %3865 = vmatprep.subr.mxu0 0.0
    %3866 = vmatpush1.msra.mxu0 0.0
    %3867 = vmatprep.mubr.f32.mxu0 0.0
    %3868 = vmatmul.mubr.f32.gmra.mrb[0].mxu0 %v3801
    %v3869 = vpop.f32.mrb[0].mxu0
    %v3870 = vadd.f32 0.0, %v3869
    %v3871 = vpop.f32.mrb[0].mxu0
    %3872 = vdwg.mxu0
    %v3874 = vsel %vm215, %v3794, 0
    %v3877 = vsel %vm215, %v3870, 0
    %3879 = vmatprep.subr.mxu0 0.0
    %3880 = vmatpush1.msra.mxu0 %v2293
    %3881 = vmatprep.subr.mxu0 0.0
    %3882 = vmatpush1.msra.mxu0 0.0
    %3883 = vmatprep.subr.mxu0 0.0
    %3884 = vmatpush1.msra.mxu0 0.0
    %3885 = vmatprep.subr.mxu0 0.0
    %3886 = vmatpush1.msra.mxu0 0.0
    %3887 = vmatprep.subr.mxu0 0.0
    %3888 = vmatpush1.msra.mxu0 0.0
    %3889 = vmatprep.subr.mxu0 0.0
    %3890 = vmatpush1.msra.mxu0 0.0
    %3891 = vmatprep.subr.mxu0 0.0
    %3892 = vmatpush1.msra.mxu0 0.0
    %3893 = vmatprep.subr.mxu0 0.0
    %3894 = vmatpush1.msra.mxu0 0.0
    %3895 = vmatprep.subr.mxu0 0.0
    %3896 = vmatpush1.msra.mxu0 0.0
    %3897 = vmatprep.subr.mxu0 0.0
    %3898 = vmatpush1.msra.mxu0 0.0
    %3899 = vmatprep.subr.mxu0 0.0
    %3900 = vmatpush1.msra.mxu0 0.0
    %3901 = vmatprep.subr.mxu0 0.0
    %3902 = vmatpush1.msra.mxu0 0.0
    %3903 = vmatprep.subr.mxu0 0.0
    %3904 = vmatpush1.msra.mxu0 0.0
    %3905 = vmatprep.subr.mxu0 0.0
    %3906 = vmatpush1.msra.mxu0 0.0
    %3907 = vmatprep.subr.mxu0 0.0
    %3908 = vmatpush1.msra.mxu0 0.0
    %3909 = vmatprep.subr.mxu0 0.0
    %3910 = vmatpush1.msra.mxu0 0.0
    %3911 = vmatprep.subr.mxu0 0.0
    %3912 = vmatpush1.msra.mxu0 0.0
    %3913 = vmatprep.subr.mxu0 0.0
    %3914 = vmatpush1.msra.mxu0 0.0
    %3915 = vmatprep.subr.mxu0 0.0
    %3916 = vmatpush1.msra.mxu0 0.0
    %3917 = vmatprep.subr.mxu0 0.0
    %3918 = vmatpush1.msra.mxu0 0.0
    %3919 = vmatprep.subr.mxu0 0.0
    %3920 = vmatpush1.msra.mxu0 0.0
    %3921 = vmatprep.subr.mxu0 0.0
    %3922 = vmatpush1.msra.mxu0 0.0
    %3923 = vmatprep.subr.mxu0 0.0
    %3924 = vmatpush1.msra.mxu0 0.0
    %3925 = vmatprep.subr.mxu0 0.0
    %3926 = vmatpush1.msra.mxu0 0.0
    %3927 = vmatprep.subr.mxu0 0.0
    %3928 = vmatpush1.msra.mxu0 0.0
    %3929 = vmatprep.subr.mxu0 0.0
    %3930 = vmatpush1.msra.mxu0 0.0
    %3931 = vmatprep.subr.mxu0 0.0
    %3932 = vmatpush1.msra.mxu0 0.0
    %3933 = vmatprep.subr.mxu0 0.0
    %3934 = vmatpush1.msra.mxu0 0.0
    %3935 = vmatprep.subr.mxu0 0.0
    %3936 = vmatpush1.msra.mxu0 0.0
    %3937 = vmatprep.subr.mxu0 0.0
    %3938 = vmatpush1.msra.mxu0 0.0
    %3939 = vmatprep.subr.mxu0 0.0
    %3940 = vmatpush1.msra.mxu0 0.0
    %3941 = vmatprep.subr.mxu0 0.0
    %3942 = vmatpush1.msra.mxu0 0.0
    %3943 = vmatprep.mubr.f32.mxu0 0.0
    %3944 = vmatmul.mubr.f32.gmra.mrb[0].mxu0 %v3874
    %v3945 = vpop.f32.mrb[0].mxu0
    %v3946 = vadd.f32 0.0, %v3945
    %v3947 = vpop.f32.mrb[0].mxu0
    %3948 = vmatprep.mubr.f32.mxu0 0.0
    %3949 = vmatmul.mubr.f32.gmra.mrb[0].mxu0 %v3877
    %v3950 = vpop.f32.mrb[0].mxu0
    %v3951 = vadd.f32 0.0, %v3950
    %v3952 = vpop.f32.mrb[0].mxu0
    %3953 = vdwg.mxu0
    %v3954 = vadd.f32 %v3537, %v3946
    %v3955 = vadd.f32 %v3538, %v3951
    %s3956 = scalar_lea.vmem %s7, 1
    %v3957 = vld [vmem:[%s3956] sm:$0x1]
    %v3959 = vlaneseq
    %v3960 = vshrl.u32 %v3959, 7
    %v3961 = vsub.s32 0, %v3960
    %v3962 = vrot.slane %v3957, %v3961
    %v3964 = vadd.f32 %v3954, %v3962
    %v3965 = vadd.f32 %v3955, %v3962
    %v3966 = vadd.f32 %v3964, %v2193
    %v3967 = vadd.f32 %v3965, %v2194
    %s3968 = scalar_lea.vmem %s8, 1
    %v3969 = vld [vmem:[%s3968] sm:$0x1]
    %s3970 = scalar_lea.vmem %s9, 1
    %v3971 = vld [vmem:[%s3970] sm:$0x1]
    %v3972 = vsel %vm70, %v3966, 0.0
    %3973 = vadd.xlane.f32.xlu0 %v3972
    %v3974 = vpop.xlane.xlu0 %3973
    %v3975 = vsel %vm70, %v3967, 0.0
    %3976 = vadd.xlane.f32.xlu0 %v3975
    %v3977 = vpop.xlane.xlu0 %3976
    %v3978 = vmul.f32 %v3974, %v77
    %v3979 = vmul.f32 %v3977, %v77
    %v3980 = vsub.f32 %v3966, %v3978
    %v3981 = vsub.f32 %v3967, %v3979
    %v3982 = vmul.f32 %v3980, %v3980
    %v3983 = vmul.f32 %v3981, %v3981
    %v3984 = vsel %vm70, %v3982, 0.0
    %3985 = vadd.xlane.f32.xlu0 %v3984
    %v3986 = vpop.xlane.xlu0 %3985
    %v3987 = vsel %vm70, %v3983, 0.0
    %3988 = vadd.xlane.f32.xlu0 %v3987
    %v3989 = vpop.xlane.xlu0 %3988
    %v3990 = vmul.f32 %v3986, %v77
    %v3991 = vmul.f32 %v3989, %v77
    %v3992 = vadd.f32 %v3990, 1e-12
    %v3993 = vadd.f32 %v3991, 1e-12
    %v3994 = vrsqrt.pop %v3992
    %v3995 = vrsqrt.pop %v3993
    %v3996 = vmul.f32 %v3980, %v3994
    %v3997 = vmul.f32 %v3981, %v3995
    %v3999 = vlaneseq
    %v4000 = vshrl.u32 %v3999, 7
    %v4001 = vsub.s32 0, %v4000
    %v4002 = vrot.slane %v3969, %v4001
    %v4004 = vmul.f32 %v3996, %v4002
    %v4005 = vmul.f32 %v3997, %v4002
    %v4007 = vlaneseq
    %v4008 = vshrl.u32 %v4007, 7
    %v4009 = vsub.s32 0, %v4008
    %v4010 = vrot.slane %v3971, %v4009
    %v4012 = vadd.f32 %v4004, %v4010
    %v4013 = vadd.f32 %v4005, %v4010
    %s4014 = scalar_lea.vmem %s10, 32
    %v4015 = vld [vmem:[%s4014] sm:$0xff]
    %v4016 = vld [vmem:[%s4014 + $0x8] sm:$0xff]
    %v4017 = vld [vmem:[%s4014 + $0x10] sm:$0xff]
    %v4018 = vld [vmem:[%s4014 + $0x18] sm:$0xff]
    %s4019 = scalar_lea.vmem %s11, 1
    %v4020 = vld [vmem:[%s4019] sm:$0x1]
    %v4022 = vlaneseq
    %v4023 = vshrl.u32 %v4022, 7
    %v4024 = vsub.s32 0, %v4023
    %v4025 = vrot.slane %v4020, %v4024
    %v4028 = vsel %vm70, %v4012, 0
    %v4031 = vsel %vm70, %v4013, 0
    %4033 = vmatprep.subr.mxu0 0.0
    %4034 = vmatpush1.msra.mxu0 %v4015
    %4035 = vmatprep.subr.mxu0 0.0
    %4036 = vmatpush1.msra.mxu0 %v4016
    %4037 = vmatprep.subr.mxu0 0.0
    %4038 = vmatpush1.msra.mxu0 %v4017
    %4039 = vmatprep.subr.mxu0 0.0
    %4040 = vmatpush1.msra.mxu0 %v4018
    %4041 = vmatprep.subr.mxu0 0.0
    %4042 = vmatpush1.msra.mxu0 0.0
    %4043 = vmatprep.subr.mxu0 0.0
    %4044 = vmatpush1.msra.mxu0 0.0
    %4045 = vmatprep.subr.mxu0 0.0
    %4046 = vmatpush1.msra.mxu0 0.0
    %4047 = vmatprep.subr.mxu0 0.0
    %4048 = vmatpush1.msra.mxu0 0.0
    %4049 = vmatprep.subr.mxu0 0.0
    %4050 = vmatpush1.msra.mxu0 0.0
    %4051 = vmatprep.subr.mxu0 0.0
    %4052 = vmatpush1.msra.mxu0 0.0
    %4053 = vmatprep.subr.mxu0 0.0
    %4054 = vmatpush1.msra.mxu0 0.0
    %4055 = vmatprep.subr.mxu0 0.0
    %4056 = vmatpush1.msra.mxu0 0.0
    %4057 = vmatprep.subr.mxu0 0.0
    %4058 = vmatpush1.msra.mxu0 0.0
    %4059 = vmatprep.subr.mxu0 0.0
    %4060 = vmatpush1.msra.mxu0 0.0
    %4061 = vmatprep.subr.mxu0 0.0
    %4062 = vmatpush1.msra.mxu0 0.0
    %4063 = vmatprep.subr.mxu0 0.0
    %4064 = vmatpush1.msra.mxu0 0.0
    %4065 = vmatprep.subr.mxu0 0.0
    %4066 = vmatpush1.msra.mxu0 0.0
    %4067 = vmatprep.subr.mxu0 0.0
    %4068 = vmatpush1.msra.mxu0 0.0
    %4069 = vmatprep.subr.mxu0 0.0
    %4070 = vmatpush1.msra.mxu0 0.0
    %4071 = vmatprep.subr.mxu0 0.0
    %4072 = vmatpush1.msra.mxu0 0.0
    %4073 = vmatprep.subr.mxu0 0.0
    %4074 = vmatpush1.msra.mxu0 0.0
    %4075 = vmatprep.subr.mxu0 0.0
    %4076 = vmatpush1.msra.mxu0 0.0
    %4077 = vmatprep.subr.mxu0 0.0
    %4078 = vmatpush1.msra.mxu0 0.0
    %4079 = vmatprep.subr.mxu0 0.0
    %4080 = vmatpush1.msra.mxu0 0.0
    %4081 = vmatprep.subr.mxu0 0.0
    %4082 = vmatpush1.msra.mxu0 0.0
    %4083 = vmatprep.subr.mxu0 0.0
    %4084 = vmatpush1.msra.mxu0 0.0
    %4085 = vmatprep.subr.mxu0 0.0
    %4086 = vmatpush1.msra.mxu0 0.0
    %4087 = vmatprep.subr.mxu0 0.0
    %4088 = vmatpush1.msra.mxu0 0.0
    %4089 = vmatprep.subr.mxu0 0.0
    %4090 = vmatpush1.msra.mxu0 0.0
    %4091 = vmatprep.subr.mxu0 0.0
    %4092 = vmatpush1.msra.mxu0 0.0
    %4093 = vmatprep.subr.mxu0 0.0
    %4094 = vmatpush1.msra.mxu0 0.0
    %4095 = vmatprep.subr.mxu0 0.0
    %4096 = vmatpush1.msra.mxu0 0.0
    %4097 = vmatprep.mubr.f32.mxu0 0.0
    %4098 = vmatmul.mubr.f32.gmra.mrb[0].mxu0 %v4028
    %v4099 = vpop.f32.mrb[0].mxu0
    %v4100 = vadd.f32 %v4025, %v4099
    %v4101 = vpop.f32.mrb[0].mxu0
    %4102 = vmatprep.mubr.f32.mxu0 0.0
    %4103 = vmatmul.mubr.f32.gmra.mrb[0].mxu0 %v4031
    %v4104 = vpop.f32.mrb[0].mxu0
    %v4105 = vadd.f32 %v4025, %v4104
    %v4106 = vpop.f32.mrb[0].mxu0
    %4107 = vdwg.mxu0
    %v4108 = vmul.f32 %v4100, 0.5
    %v4109 = vmul.f32 %v4105, 0.5
    %v4110 = vmul.f32 %v4100, 0.044715
    %v4111 = vmul.f32 %v4105, 0.044715
    %v4112 = vmul.f32 %v4110, %v4100
    %v4113 = vmul.f32 %v4111, %v4105
    %v4114 = vmul.f32 %v4112, %v4100
    %v4115 = vmul.f32 %v4113, %v4105
    %v4116 = vadd.f32 %v4100, %v4114
    %v4117 = vadd.f32 %v4105, %v4115
    %v4118 = vmul.f32 %v4116, 0.7978846
    %v4119 = vmul.f32 %v4117, 0.7978846
    %v4120 = vtanh.pop %v4118
    %v4121 = vtanh.pop %v4119
    %v4122 = vadd.f32 %v4120, 1.0
    %v4123 = vadd.f32 %v4121, 1.0
    %v4124 = vmul.f32 %v4108, %v4122
    %v4125 = vmul.f32 %v4109, %v4123
    %s4126 = scalar_lea.vmem %s12, 64
    %v4127 = vld [vmem:[%s4126] sm:$0xff]
    %v4128 = vld [vmem:[%s4126 + $0x8] sm:$0xff]
    %v4129 = vld [vmem:[%s4126 + $0x10] sm:$0xff]
    %v4130 = vld [vmem:[%s4126 + $0x18] sm:$0xff]
    %v4131 = vld [vmem:[%s4126 + $0x20] sm:$0xff]
    %v4132 = vld [vmem:[%s4126 + $0x28] sm:$0xff]
    %v4133 = vld [vmem:[%s4126 + $0x30] sm:$0xff]
    %v4134 = vld [vmem:[%s4126 + $0x38] sm:$0xff]
    %s4135 = scalar_lea.vmem %s13, 1
    %v4136 = vld [vmem:[%s4135] sm:$0x1]
    %v4138 = vlaneseq
    %v4139 = vshrl.u32 %v4138, 7
    %v4140 = vsub.s32 0, %v4139
    %v4141 = vrot.slane %v4136, %v4140
    %v4144 = vsel %vm2067, %v4124, 0
    %v4147 = vsel %vm2067, %v4125, 0
    %4149 = vmatprep.subr.mxu0 0.0
    %4150 = vmatpush1.msra.mxu0 %v4127
    %4151 = vmatprep.subr.mxu0 0.0
    %4152 = vmatpush1.msra.mxu0 %v4128
    %4153 = vmatprep.subr.mxu0 0.0
    %4154 = vmatpush1.msra.mxu0 %v4129
    %4155 = vmatprep.subr.mxu0 0.0
    %4156 = vmatpush1.msra.mxu0 %v4130
    %4157 = vmatprep.subr.mxu0 0.0
    %4158 = vmatpush1.msra.mxu0 %v4131
    %4159 = vmatprep.subr.mxu0 0.0
    %4160 = vmatpush1.msra.mxu0 %v4132
    %4161 = vmatprep.subr.mxu0 0.0
    %4162 = vmatpush1.msra.mxu0 %v4133
    %4163 = vmatprep.subr.mxu0 0.0
    %4164 = vmatpush1.msra.mxu0 %v4134
    %4165 = vmatprep.subr.mxu0 0.0
    %4166 = vmatpush1.msra.mxu0 0.0
    %4167 = vmatprep.subr.mxu0 0.0
    %4168 = vmatpush1.msra.mxu0 0.0
    %4169 = vmatprep.subr.mxu0 0.0
    %4170 = vmatpush1.msra.mxu0 0.0
    %4171 = vmatprep.subr.mxu0 0.0
    %4172 = vmatpush1.msra.mxu0 0.0
    %4173 = vmatprep.subr.mxu0 0.0
    %4174 = vmatpush1.msra.mxu0 0.0
    %4175 = vmatprep.subr.mxu0 0.0
    %4176 = vmatpush1.msra.mxu0 0.0
    %4177 = vmatprep.subr.mxu0 0.0
    %4178 = vmatpush1.msra.mxu0 0.0
    %4179 = vmatprep.subr.mxu0 0.0
    %4180 = vmatpush1.msra.mxu0 0.0
    %4181 = vmatprep.subr.mxu0 0.0
    %4182 = vmatpush1.msra.mxu0 0.0
    %4183 = vmatprep.subr.mxu0 0.0
    %4184 = vmatpush1.msra.mxu0 0.0
    %4185 = vmatprep.subr.mxu0 0.0
    %4186 = vmatpush1.msra.mxu0 0.0
    %4187 = vmatprep.subr.mxu0 0.0
    %4188 = vmatpush1.msra.mxu0 0.0
    %4189 = vmatprep.subr.mxu0 0.0
    %4190 = vmatpush1.msra.mxu0 0.0
    %4191 = vmatprep.subr.mxu0 0.0
    %4192 = vmatpush1.msra.mxu0 0.0
    %4193 = vmatprep.subr.mxu0 0.0
    %4194 = vmatpush1.msra.mxu0 0.0
    %4195 = vmatprep.subr.mxu0 0.0
    %4196 = vmatpush1.msra.mxu0 0.0
    %4197 = vmatprep.subr.mxu0 0.0
    %4198 = vmatpush1.msra.mxu0 0.0
    %4199 = vmatprep.subr.mxu0 0.0
    %4200 = vmatpush1.msra.mxu0 0.0
    %4201 = vmatprep.subr.mxu0 0.0
    %4202 = vmatpush1.msra.mxu0 0.0
    %4203 = vmatprep.subr.mxu0 0.0
    %4204 = vmatpush1.msra.mxu0 0.0
    %4205 = vmatprep.subr.mxu0 0.0
    %4206 = vmatpush1.msra.mxu0 0.0
    %4207 = vmatprep.subr.mxu0 0.0
    %4208 = vmatpush1.msra.mxu0 0.0
    %4209 = vmatprep.subr.mxu0 0.0
    %4210 = vmatpush1.msra.mxu0 0.0
    %4211 = vmatprep.subr.mxu0 0.0
    %4212 = vmatpush1.msra.mxu0 0.0
    %4213 = vmatprep.mubr.f32.mxu0 0.0
    %4214 = vmatmul.mubr.f32.gmra.mrb[0].mxu0 %v4144
    %v4215 = vpop.f32.mrb[0].mxu0
    %v4216 = vadd.f32 %v4141, %v4215
    %v4217 = vpop.f32.mrb[0].mxu0
    %4218 = vmatprep.mubr.f32.mxu0 0.0
    %4219 = vmatmul.mubr.f32.gmra.mrb[0].mxu0 %v4147
    %v4220 = vpop.f32.mrb[0].mxu0
    %v4221 = vadd.f32 %v4141, %v4220
    %v4222 = vpop.f32.mrb[0].mxu0
    %4223 = vdwg.mxu0
    %v4224 = vadd.f32 %v4216, %v4012
    %v4225 = vadd.f32 %v4221, %v4013
    %s4226 = scalar_lea.vmem %s14, 1
    %v4227 = vld [vmem:[%s4226] sm:$0x1]
    %s4228 = scalar_lea.vmem %s15, 1
    %v4229 = vld [vmem:[%s4228] sm:$0x1]
    %v4230 = vsel %vm70, %v4224, 0.0
    %4231 = vadd.xlane.f32.xlu0 %v4230
    %v4232 = vpop.xlane.xlu0 %4231
    %v4233 = vsel %vm70, %v4225, 0.0
    %4234 = vadd.xlane.f32.xlu0 %v4233
    %v4235 = vpop.xlane.xlu0 %4234
    %v4236 = vmul.f32 %v4232, %v77
    %v4237 = vmul.f32 %v4235, %v77
    %v4238 = vsub.f32 %v4224, %v4236
    %v4239 = vsub.f32 %v4225, %v4237
    %v4240 = vmul.f32 %v4238, %v4238
    %v4241 = vmul.f32 %v4239, %v4239
    %v4242 = vsel %vm70, %v4240, 0.0
    %4243 = vadd.xlane.f32.xlu0 %v4242
    %v4244 = vpop.xlane.xlu0 %4243
    %v4245 = vsel %vm70, %v4241, 0.0
    %4246 = vadd.xlane.f32.xlu0 %v4245
    %v4247 = vpop.xlane.xlu0 %4246
    %v4248 = vmul.f32 %v4244, %v77
    %v4249 = vmul.f32 %v4247, %v77
    %v4250 = vadd.f32 %v4248, 1e-12
    %v4251 = vadd.f32 %v4249, 1e-12
    %v4252 = vrsqrt.pop %v4250
    %v4253 = vrsqrt.pop %v4251
    %v4254 = vmul.f32 %v4238, %v4252
    %v4255 = vmul.f32 %v4239, %v4253
    %v4257 = vlaneseq
    %v4258 = vshrl.u32 %v4257, 7
    %v4259 = vsub.s32 0, %v4258
    %v4260 = vrot.slane %v4227, %v4259
    %v4262 = vmul.f32 %v4254, %v4260
    %v4263 = vmul.f32 %v4255, %v4260
    %v4265 = vlaneseq
    %v4266 = vshrl.u32 %v4265, 7
    %v4267 = vsub.s32 0, %v4266
    %v4268 = vrot.slane %v4229, %v4267
    %v4270 = vadd.f32 %v4262, %v4268
    %v4271 = vadd.f32 %v4263, %v4268
    %v4272 = vlaneseq
    %v4273 = vshrl.u32 %v4272, 7
    %v4274 = vlaneseq
    %v4275 = vand.u32 %v4274, 127
    %v4276 = vmul.u32 %v4273, 8
    %vm4277 = vcmp.eq.s32.totalorder %v4275, %v4276
    %v4278 = vsel %vm4277, 1, 0
    %v4279 = vcvt.s32.f32 %v4278
    %vm4280 = vcmask 130048
    %v4282 = vsel %vm4280, %v4279, 0
    %4284 = vmatprep.subr.mxu0 0.0
    %4285 = vmatpush1.msra.mxu0 %v4270
    %4286 = vmatprep.subr.mxu0 0.0
    %4287 = vmatpush1.msra.mxu0 %v4271
    %4288 = vmatprep.subr.mxu0 0.0
    %4289 = vmatpush1.msra.mxu0 0.0
    %4290 = vmatprep.subr.mxu0 0.0
    %4291 = vmatpush1.msra.mxu0 0.0
    %4292 = vmatprep.subr.mxu0 0.0
    %4293 = vmatpush1.msra.mxu0 0.0
    %4294 = vmatprep.subr.mxu0 0.0
    %4295 = vmatpush1.msra.mxu0 0.0
    %4296 = vmatprep.subr.mxu0 0.0
    %4297 = vmatpush1.msra.mxu0 0.0
    %4298 = vmatprep.subr.mxu0 0.0
    %4299 = vmatpush1.msra.mxu0 0.0
    %4300 = vmatprep.subr.mxu0 0.0
    %4301 = vmatpush1.msra.mxu0 0.0
    %4302 = vmatprep.subr.mxu0 0.0
    %4303 = vmatpush1.msra.mxu0 0.0
    %4304 = vmatprep.subr.mxu0 0.0
    %4305 = vmatpush1.msra.mxu0 0.0
    %4306 = vmatprep.subr.mxu0 0.0
    %4307 = vmatpush1.msra.mxu0 0.0
    %4308 = vmatprep.subr.mxu0 0.0
    %4309 = vmatpush1.msra.mxu0 0.0
    %4310 = vmatprep.subr.mxu0 0.0
    %4311 = vmatpush1.msra.mxu0 0.0
    %4312 = vmatprep.subr.mxu0 0.0
    %4313 = vmatpush1.msra.mxu0 0.0
    %4314 = vmatprep.subr.mxu0 0.0
    %4315 = vmatpush1.msra.mxu0 0.0
    %4316 = vmatprep.subr.mxu0 0.0
    %4317 = vmatpush1.msra.mxu0 0.0
    %4318 = vmatprep.subr.mxu0 0.0
    %4319 = vmatpush1.msra.mxu0 0.0
    %4320 = vmatprep.subr.mxu0 0.0
    %4321 = vmatpush1.msra.mxu0 0.0
    %4322 = vmatprep.subr.mxu0 0.0
    %4323 = vmatpush1.msra.mxu0 0.0
    %4324 = vmatprep.subr.mxu0 0.0
    %4325 = vmatpush1.msra.mxu0 0.0
    %4326 = vmatprep.subr.mxu0 0.0
    %4327 = vmatpush1.msra.mxu0 0.0
    %4328 = vmatprep.subr.mxu0 0.0
    %4329 = vmatpush1.msra.mxu0 0.0
    %4330 = vmatprep.subr.mxu0 0.0
    %4331 = vmatpush1.msra.mxu0 0.0
    %4332 = vmatprep.subr.mxu0 0.0
    %4333 = vmatpush1.msra.mxu0 0.0
    %4334 = vmatprep.subr.mxu0 0.0
    %4335 = vmatpush1.msra.mxu0 0.0
    %4336 = vmatprep.subr.mxu0 0.0
    %4337 = vmatpush1.msra.mxu0 0.0
    %4338 = vmatprep.subr.mxu0 0.0
    %4339 = vmatpush1.msra.mxu0 0.0
    %4340 = vmatprep.subr.mxu0 0.0
    %4341 = vmatpush1.msra.mxu0 0.0
    %4342 = vmatprep.subr.mxu0 0.0
    %4343 = vmatpush1.msra.mxu0 0.0
    %4344 = vmatprep.subr.mxu0 0.0
    %4345 = vmatpush1.msra.mxu0 0.0
    %4346 = vmatprep.subr.mxu0 0.0
    %4347 = vmatpush1.msra.mxu0 0.0
    %4348 = vmatprep.mubr.f32.mxu0 0.0
    %4349 = vmatmul.mubr.f32.gmra.mrb[0].mxu0 %v4282
    %v4350 = vpop.f32.mrb[0].mxu0
    %v4351 = vadd.f32 0.0, %v4350
    %v4352 = vpop.f32.mrb[0].mxu0
    %4353 = vdwg.mxu0
    %v4354 = vld [vmem:[%s16] sm:$0xff]
    %v4355 = vld [vmem:[%s16 + $0x8] sm:$0xff]
    %v4356 = vld [vmem:[%s16 + $0x10] sm:$0xff]
    %v4357 = vld [vmem:[%s16 + $0x18] sm:$0xff]
    %v4358 = vld [vmem:[%s17] sm:$0x1]
    %v4360 = vlaneseq
    %v4361 = vshrl.u32 %v4360, 7
    %v4362 = vsub.s32 0, %v4361
    %v4363 = vrot.slane %v4358, %v4362
    %v4366 = vsel %vm70, %v4351, 0
    %4368 = vmatprep.subr.mxu0 0.0
    %4369 = vmatpush1.msra.mxu0 %v4354
    %4370 = vmatprep.subr.mxu0 0.0
    %4371 = vmatpush1.msra.mxu0 %v4355
    %4372 = vmatprep.subr.mxu0 0.0
    %4373 = vmatpush1.msra.mxu0 %v4356
    %4374 = vmatprep.subr.mxu0 0.0
    %4375 = vmatpush1.msra.mxu0 %v4357
    %4376 = vmatprep.subr.mxu0 0.0
    %4377 = vmatpush1.msra.mxu0 0.0
    %4378 = vmatprep.subr.mxu0 0.0
    %4379 = vmatpush1.msra.mxu0 0.0
    %4380 = vmatprep.subr.mxu0 0.0
    %4381 = vmatpush1.msra.mxu0 0.0
    %4382 = vmatprep.subr.mxu0 0.0
    %4383 = vmatpush1.msra.mxu0 0.0
    %4384 = vmatprep.subr.mxu0 0.0
    %4385 = vmatpush1.msra.mxu0 0.0
    %4386 = vmatprep.subr.mxu0 0.0
    %4387 = vmatpush1.msra.mxu0 0.0
    %4388 = vmatprep.subr.mxu0 0.0
    %4389 = vmatpush1.msra.mxu0 0.0
    %4390 = vmatprep.subr.mxu0 0.0
    %4391 = vmatpush1.msra.mxu0 0.0
    %4392 = vmatprep.subr.mxu0 0.0
    %4393 = vmatpush1.msra.mxu0 0.0
    %4394 = vmatprep.subr.mxu0 0.0
    %4395 = vmatpush1.msra.mxu0 0.0
    %4396 = vmatprep.subr.mxu0 0.0
    %4397 = vmatpush1.msra.mxu0 0.0
    %4398 = vmatprep.subr.mxu0 0.0
    %4399 = vmatpush1.msra.mxu0 0.0
    %4400 = vmatprep.subr.mxu0 0.0
    %4401 = vmatpush1.msra.mxu0 0.0
    %4402 = vmatprep.subr.mxu0 0.0
    %4403 = vmatpush1.msra.mxu0 0.0
    %4404 = vmatprep.subr.mxu0 0.0
    %4405 = vmatpush1.msra.mxu0 0.0
    %4406 = vmatprep.subr.mxu0 0.0
    %4407 = vmatpush1.msra.mxu0 0.0
    %4408 = vmatprep.subr.mxu0 0.0
    %4409 = vmatpush1.msra.mxu0 0.0
    %4410 = vmatprep.subr.mxu0 0.0
    %4411 = vmatpush1.msra.mxu0 0.0
    %4412 = vmatprep.subr.mxu0 0.0
    %4413 = vmatpush1.msra.mxu0 0.0
    %4414 = vmatprep.subr.mxu0 0.0
    %4415 = vmatpush1.msra.mxu0 0.0
    %4416 = vmatprep.subr.mxu0 0.0
    %4417 = vmatpush1.msra.mxu0 0.0
    %4418 = vmatprep.subr.mxu0 0.0
    %4419 = vmatpush1.msra.mxu0 0.0
    %4420 = vmatprep.subr.mxu0 0.0
    %4421 = vmatpush1.msra.mxu0 0.0
    %4422 = vmatprep.subr.mxu0 0.0
    %4423 = vmatpush1.msra.mxu0 0.0
    %4424 = vmatprep.subr.mxu0 0.0
    %4425 = vmatpush1.msra.mxu0 0.0
    %4426 = vmatprep.subr.mxu0 0.0
    %4427 = vmatpush1.msra.mxu0 0.0
    %4428 = vmatprep.subr.mxu0 0.0
    %4429 = vmatpush1.msra.mxu0 0.0
    %4430 = vmatprep.subr.mxu0 0.0
    %4431 = vmatpush1.msra.mxu0 0.0
    %4432 = vmatprep.mubr.f32.mxu0 0.0
    %4433 = vmatmul.mubr.f32.gmra.mrb[0].mxu0 %v4366
    %v4434 = vpop.f32.mrb[0].mxu0
    %v4435 = vadd.f32 %v4363, %v4434
    %v4436 = vpop.f32.mrb[0].mxu0
    %4437 = vdwg.mxu0
    %v4438 = vtanh.pop %v4435
    %v4439 = vld [vmem:[%s18] sm:$0xff]
    %v4440 = vld [vmem:[%s18 + $0x8] sm:$0xff]
    %v4441 = vld [vmem:[%s18 + $0x10] sm:$0xff]
    %v4442 = vld [vmem:[%s18 + $0x18] sm:$0xff]
    %v4443 = vld [vmem:[%s19] sm:$0x1]
    %v4445 = vlaneseq
    %v4446 = vshrl.u32 %v4445, 7
    %v4447 = vsub.s32 0, %v4446
    %v4448 = vrot.slane %v4443, %v4447
    %v4451 = vsel %vm70, %v4438, 0
    %4453 = vmatprep.subr.mxu0 0.0
    %4454 = vmatpush1.msra.mxu0 %v4439
    %4455 = vmatprep.subr.mxu0 0.0
    %4456 = vmatpush1.msra.mxu0 %v4440
    %4457 = vmatprep.subr.mxu0 0.0
    %4458 = vmatpush1.msra.mxu0 %v4441
    %4459 = vmatprep.subr.mxu0 0.0
    %4460 = vmatpush1.msra.mxu0 %v4442
    %4461 = vmatprep.subr.mxu0 0.0
    %4462 = vmatpush1.msra.mxu0 0.0
    %4463 = vmatprep.subr.mxu0 0.0
    %4464 = vmatpush1.msra.mxu0 0.0
    %4465 = vmatprep.subr.mxu0 0.0
    %4466 = vmatpush1.msra.mxu0 0.0
    %4467 = vmatprep.subr.mxu0 0.0
    %4468 = vmatpush1.msra.mxu0 0.0
    %4469 = vmatprep.subr.mxu0 0.0
    %4470 = vmatpush1.msra.mxu0 0.0
    %4471 = vmatprep.subr.mxu0 0.0
    %4472 = vmatpush1.msra.mxu0 0.0
    %4473 = vmatprep.subr.mxu0 0.0
    %4474 = vmatpush1.msra.mxu0 0.0
    %4475 = vmatprep.subr.mxu0 0.0
    %4476 = vmatpush1.msra.mxu0 0.0
    %4477 = vmatprep.subr.mxu0 0.0
    %4478 = vmatpush1.msra.mxu0 0.0
    %4479 = vmatprep.subr.mxu0 0.0
    %4480 = vmatpush1.msra.mxu0 0.0
    %4481 = vmatprep.subr.mxu0 0.0
    %4482 = vmatpush1.msra.mxu0 0.0
    %4483 = vmatprep.subr.mxu0 0.0
    %4484 = vmatpush1.msra.mxu0 0.0
    %4485 = vmatprep.subr.mxu0 0.0
    %4486 = vmatpush1.msra.mxu0 0.0
    %4487 = vmatprep.subr.mxu0 0.0
    %4488 = vmatpush1.msra.mxu0 0.0
    %4489 = vmatprep.subr.mxu0 0.0
    %4490 = vmatpush1.msra.mxu0 0.0
    %4491 = vmatprep.subr.mxu0 0.0
    %4492 = vmatpush1.msra.mxu0 0.0
    %4493 = vmatprep.subr.mxu0 0.0
    %4494 = vmatpush1.msra.mxu0 0.0
    %4495 = vmatprep.subr.mxu0 0.0
    %4496 = vmatpush1.msra.mxu0 0.0
    %4497 = vmatprep.subr.mxu0 0.0
    %4498 = vmatpush1.msra.mxu0 0.0
    %4499 = vmatprep.subr.mxu0 0.0
    %4500 = vmatpush1.msra.mxu0 0.0
    %4501 = vmatprep.subr.mxu0 0.0
    %4502 = vmatpush1.msra.mxu0 0.0
    %4503 = vmatprep.subr.mxu0 0.0
    %4504 = vmatpush1.msra.mxu0 0.0
    %4505 = vmatprep.subr.mxu0 0.0
    %4506 = vmatpush1.msra.mxu0 0.0
    %4507 = vmatprep.subr.mxu0 0.0
    %4508 = vmatpush1.msra.mxu0 0.0
    %4509 = vmatprep.subr.mxu0 0.0
    %4510 = vmatpush1.msra.mxu0 0.0
    %4511 = vmatprep.subr.mxu0 0.0
    %4512 = vmatpush1.msra.mxu0 0.0
    %4513 = vmatprep.subr.mxu0 0.0
    %4514 = vmatpush1.msra.mxu0 0.0
    %4515 = vmatprep.subr.mxu0 0.0
    %4516 = vmatpush1.msra.mxu0 0.0
    %4517 = vmatprep.mubr.f32.mxu0 0.0
    %4518 = vmatmul.mubr.f32.gmra.mrb[0].mxu0 %v4451
    %v4519 = vpop.f32.mrb[0].mxu0
    %v4520 = vadd.f32 %v4448, %v4519
    %v4521 = vpop.f32.mrb[0].mxu0
    %4522 = vdwg.mxu0
    %4523 = vst [vmem:[#allocation2] sm:$0x3] %v4520
    // Predicated region
    $region82: #{resume_classifier_forward.1} parent=1 // pred_check
      _
    $region83: #{resume_classifier_forward.1} parent=1 // pred_check_branch
      %4525 = sbr.rel (0) target = $region85
    $region84: #{resume_classifier_forward.1} parent=1 // pred_region
      %s4527 = ssub.s32 32, 32
      %4528 = vsyncadd [#allocation3], %s4527
      %s4530 = sshll.u32 [#allocation2], 4
      %s4531 = int_to_ptr.vmem [resolvable:$true] %s4530
      %4533 = dma.vmem_to_hbm [thread:$0]  %s4531, 32, %s20, [#allocation3]
    $region85: #{resume_classifier_forward.1} parent=1 // pred_fallthru
      _
    // Predicated region
    $region86: #{resume_classifier_forward.1} parent=1 // pred_check
      _
    $region87: #{resume_classifier_forward.1} parent=1 // pred_check_branch
      %4535 = sbr.rel (0) target = $region89
    $region88: #{resume_classifier_forward.1} parent=1 // pred_region
      %4536 = dma.done [#allocation3], 32
    $region89: #{resume_classifier_forward.1} parent=1 // pred_fallthru
      _
    %4537 = vsyncpa [#allocation3], 1

</llo_original>
